<compile_context>
chip_gen: v7x
topology: tpu7x:2x2x1
jax: 0.10.0
libtpu: 0.0.40
codegen_flags: <defaults>
</compile_context>

<pallas_src>
import math
from functools import partial

import jax
import jax.numpy as jnp
from jax.experimental import pallas as pl
from jax.experimental.pallas import tpu as pltpu

LN_EPS = 1e-5   # torch nn.LayerNorm default
VROWS = 10      # packed vector rows per layer: ln1_w, ln1_b, bq, bk, bv, bp, ln2_w, ln2_b, b1, b2


# ----------------------------- in-kernel helpers -----------------------------

def _erf(x):
    # Abramowitz & Stegun 7.1.26 rational approximation (abs err ~1.5e-7),
    # matching torch's exact-erf GELU to f32 precision with Mosaic-friendly ops.
    a1, a2, a3, a4, a5 = 0.254829592, -0.284496736, 1.421413741, -1.453152027, 1.061405429
    p = 0.3275911
    sign = jnp.where(x >= 0.0, 1.0, -1.0)
    ax = jnp.abs(x)
    t = 1.0 / (1.0 + p * ax)
    poly = ((((a5 * t + a4) * t + a3) * t + a2) * t + a1) * t
    return sign * (1.0 - poly * jnp.exp(-ax * ax))


def _gelu(x):
    # exact (erf) GELU, matching torch nn.GELU() default (approximate='none')
    return 0.5 * x * (1.0 + _erf(x * 0.7071067811865476))


def _layernorm(x, w, b):
    mu = jnp.mean(x, axis=-1, keepdims=True)
    var = jnp.mean((x - mu) ** 2, axis=-1, keepdims=True)   # biased var (torch)
    return (x - mu) * jax.lax.rsqrt(var + LN_EPS) * w + b


# ------------------------------ fused Pallas kernel ---------------------------

def fused_kernel(n_layer, n_head, x_ref, vec_ref, wqkv_ref, wpw2_ref, w1_ref,
                 logits_ref, attn_ref):
    """Whole transformer forward on one batch element's (T, C) activations."""
    x = x_ref[...]                                   # (T, C) f32
    T, C = x.shape
    D = C // n_head
    scale = 1.0 / math.sqrt(D)

    def vrow(i, w=C):                                # (1, w) slice of the packed vec buffer
        return vec_ref[i:i + 1, :w]

    for l in range(n_layer):                         # static unroll over layers
        r = l * VROWS

        # ---- ln1 + fused QKV projection: one (T,C)@(C,3C) MXU op per layer ----
        h = _layernorm(x, vrow(r + 0), vrow(r + 1))
        qkv = jnp.dot(h, wqkv_ref[l * C:(l + 1) * C, :],
                      preferred_element_type=jnp.float32)          # (T, 3C)
        q = qkv[:, 0 * C:1 * C] + vrow(r + 2)
        k = qkv[:, 1 * C:2 * C] + vrow(r + 3)
        v = qkv[:, 2 * C:3 * C] + vrow(r + 4)

        # ---- per-head attention (static unroll); outputs lane-concatenated ----
        heads = []
        for hi in range(n_head):
            sl = slice(hi * D, (hi + 1) * D)
            qh, kh, vh = q[:, sl], k[:, sl], v[:, sl]
            s = jax.lax.dot_general(qh, kh, (((1,), (1,)), ((), ())),
                                    preferred_element_type=jnp.float32) * scale  # (T, T)
            m = jnp.max(s, axis=-1, keepdims=True)
            e = jnp.exp(s - m)
            att = e / jnp.sum(e, axis=-1, keepdims=True)           # softmax over keys
            attn_ref[l * n_head + hi] = att                        # per-batch (T, T) map
            heads.append(jnp.dot(att, vh, preferred_element_type=jnp.float32))
        y = jnp.concatenate(heads, axis=-1)                        # (T, C)

        # ---- single full-C output projection + residual ----
        wp = wpw2_ref[l * 5 * C: l * 5 * C + C, :]                 # (C, C)
        x = x + jnp.dot(y, wp, preferred_element_type=jnp.float32) + vrow(r + 5)

        # ---- ln2 + GELU MLP + residual ----
        h2 = _layernorm(x, vrow(r + 6), vrow(r + 7))
        a = jnp.dot(h2, w1_ref[l * C:(l + 1) * C, :],
                    preferred_element_type=jnp.float32) + vrow(r + 8, 4 * C)
        g = _gelu(a)
        w2 = wpw2_ref[l * 5 * C + C:(l + 1) * 5 * C, :]            # (4C, C)
        x = x + jnp.dot(g, w2, preferred_element_type=jnp.float32) + vrow(r + 9)

    # ---- final LayerNorm + head (C -> 1, no bias) fused in the same kernel ----
    fr = n_layer * VROWS
    hf = _layernorm(x, vrow(fr + 0), vrow(fr + 1))
    logits_ref[...] = jnp.sum(hf * vrow(fr + 2), axis=-1, keepdims=True)


# ------------------------------ pallas_call wrapper ----------------------------

def run_fused(x3, packed, n_head):
    """x3: (B, T, C) activations; returns logits (B,T,1) and attn (B,L,H,T,T)."""
    B, T, C = x3.shape
    vecs, wqkv, wpw2, w1 = packed
    L = (vecs.shape[0] - 3) // VROWS
    H = n_head

    def wspec(a):
        nd = a.ndim
        return pl.BlockSpec(a.shape, lambda b, _nd=nd: (0,) * _nd)

    logits, attn_flat = pl.pallas_call(
        partial(fused_kernel, L, H),
        grid=(B,),   # one batch element per step; parallel -> uses both v7x TCs
        in_specs=[pl.BlockSpec((None, T, C), lambda b: (b, 0, 0)),
                  wspec(vecs), wspec(wqkv), wspec(wpw2), wspec(w1)],
        out_specs=(pl.BlockSpec((None, T, 1), lambda b: (b, 0, 0)),
                   pl.BlockSpec((None, L * H, T, T), lambda b: (b, 0, 0, 0))),
        out_shape=(jax.ShapeDtypeStruct((B, T, 1), jnp.float32),
                   jax.ShapeDtypeStruct((B, L * H, T, T), jnp.float32)),
        compiler_params=pltpu.CompilerParams(dimension_semantics=("parallel",)),
    )(x3, vecs, wqkv, wpw2, w1)
    return logits, attn_flat.reshape(B, L, H, T, T)


# ------------------------------ parameters & packing ---------------------------

def init_params(key, vocab_size, n_embd, n_head, n_layer, num_miec):
    """Deterministic synthetic init mirroring att_model._init_weights (natural layout)."""
    C = n_embd
    ks = iter(jax.random.split(key, 64))
    nrm = lambda shape, std=0.02: jax.random.normal(next(ks), shape, jnp.float32) * std

    params = dict(
        tok_emb=nrm((vocab_size, C)),
        clu_emb=nrm((13, C)),
        type_emb=nrm((2, C)),
        pos_emb=jax.random.normal(next(ks), (1, 15, C), jnp.float32),  # torch.randn (std 1)
        miec2_w=nrm((num_miec, C)), miec2_b=jnp.zeros((C,), jnp.float32),
        miec3_w=nrm((num_miec, C)), miec3_b=jnp.zeros((C,), jnp.float32),
        miec4_w=nrm((num_miec, C)), miec4_b=jnp.zeros((C,), jnp.float32),
        lnf_w=jnp.ones((C,), jnp.float32), lnf_b=jnp.zeros((C,), jnp.float32),
        head_w=nrm((C, 1)),   # head: Linear(n_embd, 1, bias=False)
        # note: miec_nn (first) and linein exist in the torch module but are unused in forward
    )
    blocks = dict(
        ln1_w=jnp.ones((n_layer, C), jnp.float32), ln1_b=jnp.zeros((n_layer, C), jnp.float32),
        wq=nrm((n_layer, C, C)), bq=jnp.zeros((n_layer, C), jnp.float32),
        wk=nrm((n_layer, C, C)), bk=jnp.zeros((n_layer, C), jnp.float32),
        wv=nrm((n_layer, C, C)), bv=jnp.zeros((n_layer, C), jnp.float32),
        wp=nrm((n_layer, C, C)), bp=jnp.zeros((n_layer, C), jnp.float32),
        ln2_w=jnp.ones((n_layer, C), jnp.float32), ln2_b=jnp.zeros((n_layer, C), jnp.float32),
        w1=nrm((n_layer, C, 4 * C)), b1=jnp.zeros((n_layer, 4 * C), jnp.float32),
        w2=nrm((n_layer, 4 * C, C)), b2=jnp.zeros((n_layer, C), jnp.float32),
    )
    params['blocks'] = blocks
    return params


def pack_params(params):
    """Pack per-layer params into 4 stacked buffers (one DMA each in the kernel)."""
    blk = params['blocks']
    L, C = blk['ln1_w'].shape
    W = 4 * C
    pad = lambda v: jnp.pad(v, (0, W - v.shape[0]))

    rows = []
    for l in range(L):
        rows += [pad(blk['ln1_w'][l]), pad(blk['ln1_b'][l]),
                 pad(blk['bq'][l]), pad(blk['bk'][l]), pad(blk['bv'][l]),
                 pad(blk['bp'][l]),
                 pad(blk['ln2_w'][l]), pad(blk['ln2_b'][l]),
                 blk['b1'][l],                       # full-width (4C,) row
                 pad(blk['b2'][l])]
    rows += [pad(params['lnf_w']), pad(params['lnf_b']), pad(params['head_w'][:, 0])]
    vecs = jnp.stack(rows, axis=0).astype(jnp.float32)             # (VROWS*L + 3, 4C)

    wqkv = jnp.concatenate(
        [jnp.concatenate([blk['wq'][l], blk['wk'][l], blk['wv'][l]], axis=1) for l in range(L)],
        axis=0)                                                    # (L*C, 3C)
    wpw2 = jnp.concatenate(
        [jnp.concatenate([blk['wp'][l], blk['w2'][l]], axis=0) for l in range(L)],
        axis=0)                                                    # (L*5C, C)
    w1 = blk['w1'].reshape(L * C, 4 * C)                           # (L*C, 4C)
    return vecs, wqkv, wpw2, w1


# ------------------------------------ forward -----------------------------------

@partial(jax.jit, static_argnames=("n_head",))
def att_model_forward(params, packed, idx, prop, cluster, targets=None, *, n_head):
    """Mirrors att_model.forward (eval mode, dropouts are identity)."""
    tok = params['tok_emb'][idx]                                   # (B, 10, C)
    x = tok + params['type_emb'][1][None, None, :]                 # type id = 1
    con = params['type_emb'][0][None, None, :] + params['clu_emb'][cluster][:, None, :]
    miec2 = (prop[:, 0] @ params['miec2_w'] + params['miec2_b'])[:, None, :]
    miec3 = (prop[:, 1] @ params['miec3_w'] + params['miec3_b'])[:, None, :]
    miec4 = (prop[:, 2] @ params['miec4_w'] + params['miec4_b'])[:, None, :]
    x = jnp.concatenate([con, x, miec2, miec3, miec4], axis=1)     # (B, 14, C)
    x = x + params['pos_emb'][:, :-1, :]                           # drop(...) == identity

    logits, attn_full = run_fused(x, packed, n_head)               # (B,T,1), (B,L,H,T,T)
    n_layer = attn_full.shape[1]
    attn_maps = [attn_full[:, l] for l in range(n_layer)]          # each (B, H, T, T)

    loss = None
    if targets is not None:
        loss = jnp.mean((logits[:, -1, 0] - targets.reshape(-1)) ** 2)
    return logits, loss, attn_maps


# ------------------------------------ main --------------------------------------

if __name__ == "__main__":
    vocab_size, n_embd, n_head, n_layer, num_miec = 16, 32, 4, 2, 8
    B = 2  # sequence layout: T = 1 (cluster) + 10 (tokens) + 3 (miec) = 14

    key = jax.random.PRNGKey(0)
    kp, ki, kc, kr = jax.random.split(key, 4)
    params = init_params(kp, vocab_size, n_embd, n_head, n_layer, num_miec)
    packed = pack_params(params)   # pack once; reused every forward call

    idx = jax.random.randint(ki, (B, 10), 0, vocab_size, dtype=jnp.int32)
    cluster = jax.random.randint(kc, (B,), 0, 13, dtype=jnp.int32)
    prop = jax.random.normal(kr, (B, 3, num_miec), jnp.float32)

    logits, loss, attn_maps = att_model_forward(params, packed, idx, prop, cluster,
                                                n_head=n_head)
    jax.block_until_ready(logits)
    jax.block_until_ready(attn_maps)

    assert logits.shape == (B, 14, 1)
    assert len(attn_maps) == n_layer
    assert attn_maps[0].shape == (B, n_head, 14, 14)
    print("KERNEL_OK")
</pallas_src>

<mosaic_0001>
module attributes {stable_mosaic.version = 11 : i64} {
  func.func @fused_kernel(%arg0: i32, %arg1: memref<1x14x32xf32, #tpu.memory_space<vmem>>, %arg2: memref<23x128xf32, #tpu.memory_space<vmem>>, %arg3: memref<64x96xf32, #tpu.memory_space<vmem>>, %arg4: memref<320x32xf32, #tpu.memory_space<vmem>>, %arg5: memref<64x128xf32, #tpu.memory_space<vmem>>, %arg6: memref<1x14x1xf32, #tpu.memory_space<vmem>>, %arg7: memref<1x8x14x14xf32, #tpu.memory_space<vmem>>) attributes {dimension_semantics = [#tpu.dimension_semantics<parallel>], iteration_bounds = array<i64: 2>, scalar_prefetch = 0 : i64, scratch_operands = 0 : i64, tpu.core_type = #tpu.core_type<tc>, window_params = [{transform_indices = @transform_0, window_bounds = array<i64: 1, 14, 32>}, {pipeline_mode = #tpu.pipeline_mode<synchronous>, transform_indices = @transform_1, window_bounds = array<i64: 23, 128>}, {pipeline_mode = #tpu.pipeline_mode<synchronous>, transform_indices = @transform_2, window_bounds = array<i64: 64, 96>}, {pipeline_mode = #tpu.pipeline_mode<synchronous>, transform_indices = @transform_3, window_bounds = array<i64: 320, 32>}, {pipeline_mode = #tpu.pipeline_mode<synchronous>, transform_indices = @transform_4, window_bounds = array<i64: 64, 128>}, {transform_indices = @transform_5, window_bounds = array<i64: 1, 14, 1>}, {transform_indices = @transform_6, window_bounds = array<i64: 1, 8, 14, 14>}]} {
    %c0 = arith.constant 0 : index
    %c0_0 = arith.constant 0 : index
    %c0_1 = arith.constant 0 : index
    %0 = vector.load %arg1[%c0, %c0_0, %c0_1] : memref<1x14x32xf32, #tpu.memory_space<vmem>>, vector<1x14x32xf32>
    %1 = vector.shape_cast %0 : vector<1x14x32xf32> to vector<14x32xf32>
    %c0_2 = arith.constant 0 : index
    %c0_3 = arith.constant 0 : index
    %2 = vector.load %arg2[%c0_2, %c0_3] : memref<23x128xf32, #tpu.memory_space<vmem>>, vector<1x32xf32>
    %c1 = arith.constant 1 : index
    %c0_4 = arith.constant 0 : index
    %3 = vector.load %arg2[%c1, %c0_4] : memref<23x128xf32, #tpu.memory_space<vmem>>, vector<1x32xf32>
    %cst = arith.constant dense<0.000000e+00> : vector<14xf32>
    %4 = vector.multi_reduction <add>, %1, %cst [1] : vector<14x32xf32> to vector<14xf32>
    %5 = vector.shape_cast %4 : vector<14xf32> to vector<14x1xf32>
    %cst_5 = arith.constant 3.200000e+01 : f32
    %6 = vector.broadcast %cst_5 : f32 to vector<14x1xf32>
    %7 = arith.divf %5, %6 : vector<14x1xf32>
    %8 = vector.broadcast %7 : vector<14x1xf32> to vector<14x32xf32>
    %9 = arith.subf %1, %8 : vector<14x32xf32>
    %10 = arith.mulf %9, %9 : vector<14x32xf32>
    %cst_6 = arith.constant dense<0.000000e+00> : vector<14xf32>
    %11 = vector.multi_reduction <add>, %10, %cst_6 [1] : vector<14x32xf32> to vector<14xf32>
    %12 = vector.shape_cast %11 : vector<14xf32> to vector<14x1xf32>
    %cst_7 = arith.constant 3.200000e+01 : f32
    %13 = vector.broadcast %cst_7 : f32 to vector<14x1xf32>
    %14 = arith.divf %12, %13 : vector<14x1xf32>
    %15 = vector.broadcast %7 : vector<14x1xf32> to vector<14x32xf32>
    %16 = arith.subf %1, %15 : vector<14x32xf32>
    %cst_8 = arith.constant 9.99999974E-6 : f32
    %17 = vector.broadcast %cst_8 : f32 to vector<14x1xf32>
    %18 = arith.addf %14, %17 : vector<14x1xf32>
    %19 = math.rsqrt %18 : vector<14x1xf32>
    %20 = vector.broadcast %19 : vector<14x1xf32> to vector<14x32xf32>
    %21 = arith.mulf %16, %20 : vector<14x32xf32>
    %22 = vector.broadcast %2 : vector<1x32xf32> to vector<14x32xf32>
    %23 = arith.mulf %21, %22 : vector<14x32xf32>
    %24 = vector.broadcast %3 : vector<1x32xf32> to vector<14x32xf32>
    %25 = arith.addf %23, %24 : vector<14x32xf32>
    %c0_9 = arith.constant 0 : index
    %c0_10 = arith.constant 0 : index
    %26 = vector.load %arg3[%c0_9, %c0_10] : memref<64x96xf32, #tpu.memory_space<vmem>>, vector<32x96xf32>
    %cst_11 = arith.constant dense<0.000000e+00> : vector<14x96xf32>
    %27 = tpu.matmul %25, %26, %cst_11 {dimension_numbers = #tpu.dot_dimension_numbers<[1], [0], [0], [1], [0, 0, 1, 1], [], []>} : vector<14x32xf32>, vector<32x96xf32>, vector<14x96xf32> -> vector<14x96xf32>
    %28 = vector.extract_strided_slice %27 {offsets = [0, 0], sizes = [14, 32], strides = [1, 1]} : vector<14x96xf32> to vector<14x32xf32>
    %c2 = arith.constant 2 : index
    %c0_12 = arith.constant 0 : index
    %29 = vector.load %arg2[%c2, %c0_12] : memref<23x128xf32, #tpu.memory_space<vmem>>, vector<1x32xf32>
    %30 = vector.broadcast %29 : vector<1x32xf32> to vector<14x32xf32>
    %31 = arith.addf %28, %30 : vector<14x32xf32>
    %32 = vector.extract_strided_slice %27 {offsets = [0, 32], sizes = [14, 32], strides = [1, 1]} : vector<14x96xf32> to vector<14x32xf32>
    %c3 = arith.constant 3 : index
    %c0_13 = arith.constant 0 : index
    %33 = vector.load %arg2[%c3, %c0_13] : memref<23x128xf32, #tpu.memory_space<vmem>>, vector<1x32xf32>
    %34 = vector.broadcast %33 : vector<1x32xf32> to vector<14x32xf32>
    %35 = arith.addf %32, %34 : vector<14x32xf32>
    %36 = vector.extract_strided_slice %27 {offsets = [0, 64], sizes = [14, 32], strides = [1, 1]} : vector<14x96xf32> to vector<14x32xf32>
    %c4 = arith.constant 4 : index
    %c0_14 = arith.constant 0 : index
    %37 = vector.load %arg2[%c4, %c0_14] : memref<23x128xf32, #tpu.memory_space<vmem>>, vector<1x32xf32>
    %38 = vector.broadcast %37 : vector<1x32xf32> to vector<14x32xf32>
    %39 = arith.addf %36, %38 : vector<14x32xf32>
    %40 = vector.extract_strided_slice %31 {offsets = [0, 0], sizes = [14, 8], strides = [1, 1]} : vector<14x32xf32> to vector<14x8xf32>
    %41 = vector.extract_strided_slice %35 {offsets = [0, 0], sizes = [14, 8], strides = [1, 1]} : vector<14x32xf32> to vector<14x8xf32>
    %42 = vector.extract_strided_slice %39 {offsets = [0, 0], sizes = [14, 8], strides = [1, 1]} : vector<14x32xf32> to vector<14x8xf32>
    %cst_15 = arith.constant dense<0.000000e+00> : vector<14x14xf32>
    %43 = tpu.matmul %40, %41, %cst_15 {dimension_numbers = #tpu.dot_dimension_numbers<[1], [1], [0], [0], [0, 0, 1, 0], [], []>} : vector<14x8xf32>, vector<14x8xf32>, vector<14x14xf32> -> vector<14x14xf32>
    %cst_16 = arith.constant 0.353553385 : f32
    %44 = vector.broadcast %cst_16 : f32 to vector<14x14xf32>
    %45 = arith.mulf %43, %44 : vector<14x14xf32>
    %cst_17 = arith.constant dense<0xFF800000> : vector<14xf32>
    %46 = vector.multi_reduction <maximumf>, %45, %cst_17 [1] : vector<14x14xf32> to vector<14xf32>
    %47 = vector.shape_cast %46 : vector<14xf32> to vector<14x1xf32>
    %48 = vector.broadcast %47 : vector<14x1xf32> to vector<14x14xf32>
    %49 = arith.subf %45, %48 : vector<14x14xf32>
    %50 = math.exp %49 : vector<14x14xf32>
    %cst_18 = arith.constant dense<0.000000e+00> : vector<14xf32>
    %51 = vector.multi_reduction <add>, %50, %cst_18 [1] : vector<14x14xf32> to vector<14xf32>
    %52 = vector.shape_cast %51 : vector<14xf32> to vector<14x1xf32>
    %53 = vector.broadcast %52 : vector<14x1xf32> to vector<14x14xf32>
    %54 = arith.divf %50, %53 : vector<14x14xf32>
    %c0_19 = arith.constant 0 : index
    %c0_20 = arith.constant 0 : index
    %c0_21 = arith.constant 0 : index
    %c0_22 = arith.constant 0 : index
    %55 = vector.load %arg7[%c0_19, %c0_20, %c0_21, %c0_22] : memref<1x8x14x14xf32, #tpu.memory_space<vmem>>, vector<1x1x14x14xf32>
    %56 = vector.shape_cast %55 : vector<1x1x14x14xf32> to vector<14x14xf32>
    %57 = vector.shape_cast %54 : vector<14x14xf32> to vector<1x1x14x14xf32>
    tpu.vector_store %arg7[%c0_19, %c0_20, %c0_21, %c0_22], %57 {strides = array<i32>} : memref<1x8x14x14xf32, #tpu.memory_space<vmem>>, vector<1x1x14x14xf32>,
    %cst_23 = arith.constant dense<0.000000e+00> : vector<14x8xf32>
    %58 = tpu.matmul %54, %42, %cst_23 {dimension_numbers = #tpu.dot_dimension_numbers<[1], [0], [0], [1], [0, 0, 1, 1], [], []>} : vector<14x14xf32>, vector<14x8xf32>, vector<14x8xf32> -> vector<14x8xf32>
    %59 = vector.extract_strided_slice %31 {offsets = [0, 8], sizes = [14, 8], strides = [1, 1]} : vector<14x32xf32> to vector<14x8xf32>
    %60 = vector.extract_strided_slice %35 {offsets = [0, 8], sizes = [14, 8], strides = [1, 1]} : vector<14x32xf32> to vector<14x8xf32>
    %61 = vector.extract_strided_slice %39 {offsets = [0, 8], sizes = [14, 8], strides = [1, 1]} : vector<14x32xf32> to vector<14x8xf32>
    %cst_24 = arith.constant dense<0.000000e+00> : vector<14x14xf32>
    %62 = tpu.matmul %59, %60, %cst_24 {dimension_numbers = #tpu.dot_dimension_numbers<[1], [1], [0], [0], [0, 0, 1, 0], [], []>} : vector<14x8xf32>, vector<14x8xf32>, vector<14x14xf32> -> vector<14x14xf32>
    %cst_25 = arith.constant 0.353553385 : f32
    %63 = vector.broadcast %cst_25 : f32 to vector<14x14xf32>
    %64 = arith.mulf %62, %63 : vector<14x14xf32>
    %cst_26 = arith.constant dense<0xFF800000> : vector<14xf32>
    %65 = vector.multi_reduction <maximumf>, %64, %cst_26 [1] : vector<14x14xf32> to vector<14xf32>
    %66 = vector.shape_cast %65 : vector<14xf32> to vector<14x1xf32>
    %67 = vector.broadcast %66 : vector<14x1xf32> to vector<14x14xf32>
    %68 = arith.subf %64, %67 : vector<14x14xf32>
    %69 = math.exp %68 : vector<14x14xf32>
    %cst_27 = arith.constant dense<0.000000e+00> : vector<14xf32>
    %70 = vector.multi_reduction <add>, %69, %cst_27 [1] : vector<14x14xf32> to vector<14xf32>
    %71 = vector.shape_cast %70 : vector<14xf32> to vector<14x1xf32>
    %72 = vector.broadcast %71 : vector<14x1xf32> to vector<14x14xf32>
    %73 = arith.divf %69, %72 : vector<14x14xf32>
    %c0_28 = arith.constant 0 : index
    %c1_29 = arith.constant 1 : index
    %c0_30 = arith.constant 0 : index
    %c0_31 = arith.constant 0 : index
    %74 = vector.load %arg7[%c0_28, %c1_29, %c0_30, %c0_31] : memref<1x8x14x14xf32, #tpu.memory_space<vmem>>, vector<1x1x14x14xf32>
    %75 = vector.shape_cast %74 : vector<1x1x14x14xf32> to vector<14x14xf32>
    %76 = vector.shape_cast %73 : vector<14x14xf32> to vector<1x1x14x14xf32>
    tpu.vector_store %arg7[%c0_28, %c1_29, %c0_30, %c0_31], %76 {strides = array<i32>} : memref<1x8x14x14xf32, #tpu.memory_space<vmem>>, vector<1x1x14x14xf32>,
    %cst_32 = arith.constant dense<0.000000e+00> : vector<14x8xf32>
    %77 = tpu.matmul %73, %61, %cst_32 {dimension_numbers = #tpu.dot_dimension_numbers<[1], [0], [0], [1], [0, 0, 1, 1], [], []>} : vector<14x14xf32>, vector<14x8xf32>, vector<14x8xf32> -> vector<14x8xf32>
    %78 = vector.extract_strided_slice %31 {offsets = [0, 16], sizes = [14, 8], strides = [1, 1]} : vector<14x32xf32> to vector<14x8xf32>
    %79 = vector.extract_strided_slice %35 {offsets = [0, 16], sizes = [14, 8], strides = [1, 1]} : vector<14x32xf32> to vector<14x8xf32>
    %80 = vector.extract_strided_slice %39 {offsets = [0, 16], sizes = [14, 8], strides = [1, 1]} : vector<14x32xf32> to vector<14x8xf32>
    %cst_33 = arith.constant dense<0.000000e+00> : vector<14x14xf32>
    %81 = tpu.matmul %78, %79, %cst_33 {dimension_numbers = #tpu.dot_dimension_numbers<[1], [1], [0], [0], [0, 0, 1, 0], [], []>} : vector<14x8xf32>, vector<14x8xf32>, vector<14x14xf32> -> vector<14x14xf32>
    %cst_34 = arith.constant 0.353553385 : f32
    %82 = vector.broadcast %cst_34 : f32 to vector<14x14xf32>
    %83 = arith.mulf %81, %82 : vector<14x14xf32>
    %cst_35 = arith.constant dense<0xFF800000> : vector<14xf32>
    %84 = vector.multi_reduction <maximumf>, %83, %cst_35 [1] : vector<14x14xf32> to vector<14xf32>
    %85 = vector.shape_cast %84 : vector<14xf32> to vector<14x1xf32>
    %86 = vector.broadcast %85 : vector<14x1xf32> to vector<14x14xf32>
    %87 = arith.subf %83, %86 : vector<14x14xf32>
    %88 = math.exp %87 : vector<14x14xf32>
    %cst_36 = arith.constant dense<0.000000e+00> : vector<14xf32>
    %89 = vector.multi_reduction <add>, %88, %cst_36 [1] : vector<14x14xf32> to vector<14xf32>
    %90 = vector.shape_cast %89 : vector<14xf32> to vector<14x1xf32>
    %91 = vector.broadcast %90 : vector<14x1xf32> to vector<14x14xf32>
    %92 = arith.divf %88, %91 : vector<14x14xf32>
    %c0_37 = arith.constant 0 : index
    %c2_38 = arith.constant 2 : index
    %c0_39 = arith.constant 0 : index
    %c0_40 = arith.constant 0 : index
    %93 = vector.load %arg7[%c0_37, %c2_38, %c0_39, %c0_40] : memref<1x8x14x14xf32, #tpu.memory_space<vmem>>, vector<1x1x14x14xf32>
    %94 = vector.shape_cast %93 : vector<1x1x14x14xf32> to vector<14x14xf32>
    %95 = vector.shape_cast %92 : vector<14x14xf32> to vector<1x1x14x14xf32>
    tpu.vector_store %arg7[%c0_37, %c2_38, %c0_39, %c0_40], %95 {strides = array<i32>} : memref<1x8x14x14xf32, #tpu.memory_space<vmem>>, vector<1x1x14x14xf32>,
    %cst_41 = arith.constant dense<0.000000e+00> : vector<14x8xf32>
    %96 = tpu.matmul %92, %80, %cst_41 {dimension_numbers = #tpu.dot_dimension_numbers<[1], [0], [0], [1], [0, 0, 1, 1], [], []>} : vector<14x14xf32>, vector<14x8xf32>, vector<14x8xf32> -> vector<14x8xf32>
    %97 = vector.extract_strided_slice %31 {offsets = [0, 24], sizes = [14, 8], strides = [1, 1]} : vector<14x32xf32> to vector<14x8xf32>
    %98 = vector.extract_strided_slice %35 {offsets = [0, 24], sizes = [14, 8], strides = [1, 1]} : vector<14x32xf32> to vector<14x8xf32>
    %99 = vector.extract_strided_slice %39 {offsets = [0, 24], sizes = [14, 8], strides = [1, 1]} : vector<14x32xf32> to vector<14x8xf32>
    %cst_42 = arith.constant dense<0.000000e+00> : vector<14x14xf32>
    %100 = tpu.matmul %97, %98, %cst_42 {dimension_numbers = #tpu.dot_dimension_numbers<[1], [1], [0], [0], [0, 0, 1, 0], [], []>} : vector<14x8xf32>, vector<14x8xf32>, vector<14x14xf32> -> vector<14x14xf32>
    %cst_43 = arith.constant 0.353553385 : f32
    %101 = vector.broadcast %cst_43 : f32 to vector<14x14xf32>
    %102 = arith.mulf %100, %101 : vector<14x14xf32>
    %cst_44 = arith.constant dense<0xFF800000> : vector<14xf32>
    %103 = vector.multi_reduction <maximumf>, %102, %cst_44 [1] : vector<14x14xf32> to vector<14xf32>
    %104 = vector.shape_cast %103 : vector<14xf32> to vector<14x1xf32>
    %105 = vector.broadcast %104 : vector<14x1xf32> to vector<14x14xf32>
    %106 = arith.subf %102, %105 : vector<14x14xf32>
    %107 = math.exp %106 : vector<14x14xf32>
    %cst_45 = arith.constant dense<0.000000e+00> : vector<14xf32>
    %108 = vector.multi_reduction <add>, %107, %cst_45 [1] : vector<14x14xf32> to vector<14xf32>
    %109 = vector.shape_cast %108 : vector<14xf32> to vector<14x1xf32>
    %110 = vector.broadcast %109 : vector<14x1xf32> to vector<14x14xf32>
    %111 = arith.divf %107, %110 : vector<14x14xf32>
    %c0_46 = arith.constant 0 : index
    %c3_47 = arith.constant 3 : index
    %c0_48 = arith.constant 0 : index
    %c0_49 = arith.constant 0 : index
    %112 = vector.load %arg7[%c0_46, %c3_47, %c0_48, %c0_49] : memref<1x8x14x14xf32, #tpu.memory_space<vmem>>, vector<1x1x14x14xf32>
    %113 = vector.shape_cast %112 : vector<1x1x14x14xf32> to vector<14x14xf32>
    %114 = vector.shape_cast %111 : vector<14x14xf32> to vector<1x1x14x14xf32>
    tpu.vector_store %arg7[%c0_46, %c3_47, %c0_48, %c0_49], %114 {strides = array<i32>} : memref<1x8x14x14xf32, #tpu.memory_space<vmem>>, vector<1x1x14x14xf32>,
    %cst_50 = arith.constant dense<0.000000e+00> : vector<14x8xf32>
    %115 = tpu.matmul %111, %99, %cst_50 {dimension_numbers = #tpu.dot_dimension_numbers<[1], [0], [0], [1], [0, 0, 1, 1], [], []>} : vector<14x14xf32>, vector<14x8xf32>, vector<14x8xf32> -> vector<14x8xf32>
    %116 = tpu.concatenate %58, %77, %96, %115 in 1 : vector<14x8xf32>, vector<14x8xf32>, vector<14x8xf32>, vector<14x8xf32> -> vector<14x32xf32>
    %c0_51 = arith.constant 0 : index
    %c0_52 = arith.constant 0 : index
    %117 = vector.load %arg4[%c0_51, %c0_52] : memref<320x32xf32, #tpu.memory_space<vmem>>, vector<32x32xf32>
    %cst_53 = arith.constant dense<0.000000e+00> : vector<14x32xf32>
    %118 = tpu.matmul %116, %117, %cst_53 {dimension_numbers = #tpu.dot_dimension_numbers<[1], [0], [0], [1], [0, 0, 1, 1], [], []>} : vector<14x32xf32>, vector<32x32xf32>, vector<14x32xf32> -> vector<14x32xf32>
    %119 = arith.addf %1, %118 : vector<14x32xf32>
    %c5 = arith.constant 5 : index
    %c0_54 = arith.constant 0 : index
    %120 = vector.load %arg2[%c5, %c0_54] : memref<23x128xf32, #tpu.memory_space<vmem>>, vector<1x32xf32>
    %121 = vector.broadcast %120 : vector<1x32xf32> to vector<14x32xf32>
    %122 = arith.addf %119, %121 : vector<14x32xf32>
    %c6 = arith.constant 6 : index
    %c0_55 = arith.constant 0 : index
    %123 = vector.load %arg2[%c6, %c0_55] : memref<23x128xf32, #tpu.memory_space<vmem>>, vector<1x32xf32>
    %c7 = arith.constant 7 : index
    %c0_56 = arith.constant 0 : index
    %124 = vector.load %arg2[%c7, %c0_56] : memref<23x128xf32, #tpu.memory_space<vmem>>, vector<1x32xf32>
    %cst_57 = arith.constant dense<0.000000e+00> : vector<14xf32>
    %125 = vector.multi_reduction <add>, %122, %cst_57 [1] : vector<14x32xf32> to vector<14xf32>
    %126 = vector.shape_cast %125 : vector<14xf32> to vector<14x1xf32>
    %cst_58 = arith.constant 3.200000e+01 : f32
    %127 = vector.broadcast %cst_58 : f32 to vector<14x1xf32>
    %128 = arith.divf %126, %127 : vector<14x1xf32>
    %129 = vector.broadcast %128 : vector<14x1xf32> to vector<14x32xf32>
    %130 = arith.subf %122, %129 : vector<14x32xf32>
    %131 = arith.mulf %130, %130 : vector<14x32xf32>
    %cst_59 = arith.constant dense<0.000000e+00> : vector<14xf32>
    %132 = vector.multi_reduction <add>, %131, %cst_59 [1] : vector<14x32xf32> to vector<14xf32>
    %133 = vector.shape_cast %132 : vector<14xf32> to vector<14x1xf32>
    %cst_60 = arith.constant 3.200000e+01 : f32
    %134 = vector.broadcast %cst_60 : f32 to vector<14x1xf32>
    %135 = arith.divf %133, %134 : vector<14x1xf32>
    %136 = vector.broadcast %128 : vector<14x1xf32> to vector<14x32xf32>
    %137 = arith.subf %122, %136 : vector<14x32xf32>
    %cst_61 = arith.constant 9.99999974E-6 : f32
    %138 = vector.broadcast %cst_61 : f32 to vector<14x1xf32>
    %139 = arith.addf %135, %138 : vector<14x1xf32>
    %140 = math.rsqrt %139 : vector<14x1xf32>
    %141 = vector.broadcast %140 : vector<14x1xf32> to vector<14x32xf32>
    %142 = arith.mulf %137, %141 : vector<14x32xf32>
    %143 = vector.broadcast %123 : vector<1x32xf32> to vector<14x32xf32>
    %144 = arith.mulf %142, %143 : vector<14x32xf32>
    %145 = vector.broadcast %124 : vector<1x32xf32> to vector<14x32xf32>
    %146 = arith.addf %144, %145 : vector<14x32xf32>
    %c0_62 = arith.constant 0 : index
    %c0_63 = arith.constant 0 : index
    %147 = vector.load %arg5[%c0_62, %c0_63] : memref<64x128xf32, #tpu.memory_space<vmem>>, vector<32x128xf32>
    %cst_64 = arith.constant dense<0.000000e+00> : vector<14x128xf32>
    %148 = tpu.matmul %146, %147, %cst_64 {dimension_numbers = #tpu.dot_dimension_numbers<[1], [0], [0], [1], [0, 0, 1, 1], [], []>} : vector<14x32xf32>, vector<32x128xf32>, vector<14x128xf32> -> vector<14x128xf32>
    %c8 = arith.constant 8 : index
    %c0_65 = arith.constant 0 : index
    %149 = vector.load %arg2[%c8, %c0_65] : memref<23x128xf32, #tpu.memory_space<vmem>>, vector<1x128xf32>
    %150 = vector.broadcast %149 : vector<1x128xf32> to vector<14x128xf32>
    %151 = arith.addf %148, %150 : vector<14x128xf32>
    %cst_66 = arith.constant 5.000000e-01 : f32
    %152 = vector.broadcast %cst_66 : f32 to vector<14x128xf32>
    %153 = arith.mulf %152, %151 : vector<14x128xf32>
    %cst_67 = arith.constant 0.707106769 : f32
    %154 = vector.broadcast %cst_67 : f32 to vector<14x128xf32>
    %155 = arith.mulf %151, %154 : vector<14x128xf32>
    %cst_68 = arith.constant 0.000000e+00 : f32
    %156 = vector.broadcast %cst_68 : f32 to vector<14x128xf32>
    %157 = arith.cmpf oge, %155, %156 : vector<14x128xf32>
    %cst_69 = arith.constant 1.000000e+00 : f32
    %cst_70 = arith.constant -1.000000e+00 : f32
    %158 = vector.broadcast %cst_69 : f32 to vector<14x128xf32>
    %159 = vector.broadcast %cst_70 : f32 to vector<14x128xf32>
    %160 = arith.select %157, %158, %159 : vector<14x128xi1>, vector<14x128xf32>
    %161 = math.absf %155 : vector<14x128xf32>
    %cst_71 = arith.constant 0.327591091 : f32
    %162 = vector.broadcast %cst_71 : f32 to vector<14x128xf32>
    %163 = arith.mulf %162, %161 : vector<14x128xf32>
    %cst_72 = arith.constant 1.000000e+00 : f32
    %164 = vector.broadcast %cst_72 : f32 to vector<14x128xf32>
    %165 = arith.addf %164, %163 : vector<14x128xf32>
    %cst_73 = arith.constant 1.000000e+00 : f32
    %166 = vector.broadcast %cst_73 : f32 to vector<14x128xf32>
    %167 = arith.divf %166, %165 : vector<14x128xf32>
    %cst_74 = arith.constant 1.06140542 : f32
    %168 = vector.broadcast %cst_74 : f32 to vector<14x128xf32>
    %169 = arith.mulf %168, %167 : vector<14x128xf32>
    %cst_75 = arith.constant -1.45315206 : f32
    %170 = vector.broadcast %cst_75 : f32 to vector<14x128xf32>
    %171 = arith.addf %169, %170 : vector<14x128xf32>
    %172 = arith.mulf %171, %167 : vector<14x128xf32>
    %cst_76 = arith.constant 1.42141378 : f32
    %173 = vector.broadcast %cst_76 : f32 to vector<14x128xf32>
    %174 = arith.addf %172, %173 : vector<14x128xf32>
    %175 = arith.mulf %174, %167 : vector<14x128xf32>
    %cst_77 = arith.constant -0.284496725 : f32
    %176 = vector.broadcast %cst_77 : f32 to vector<14x128xf32>
    %177 = arith.addf %175, %176 : vector<14x128xf32>
    %178 = arith.mulf %177, %167 : vector<14x128xf32>
    %cst_78 = arith.constant 0.254829586 : f32
    %179 = vector.broadcast %cst_78 : f32 to vector<14x128xf32>
    %180 = arith.addf %178, %179 : vector<14x128xf32>
    %181 = arith.mulf %180, %167 : vector<14x128xf32>
    %cst_79 = arith.constant 0.000000e+00 : f32
    %182 = vector.broadcast %cst_79 : f32 to vector<14x128xf32>
    %183 = arith.subf %182, %161 : vector<14x128xf32>
    %184 = arith.mulf %183, %161 : vector<14x128xf32>
    %185 = math.exp %184 : vector<14x128xf32>
    %186 = arith.mulf %181, %185 : vector<14x128xf32>
    %cst_80 = arith.constant 1.000000e+00 : f32
    %187 = vector.broadcast %cst_80 : f32 to vector<14x128xf32>
    %188 = arith.subf %187, %186 : vector<14x128xf32>
    %189 = arith.mulf %160, %188 : vector<14x128xf32>
    %cst_81 = arith.constant 1.000000e+00 : f32
    %190 = vector.broadcast %cst_81 : f32 to vector<14x128xf32>
    %191 = arith.addf %190, %189 : vector<14x128xf32>
    %192 = arith.mulf %153, %191 : vector<14x128xf32>
    %c32 = arith.constant 32 : index
    %c0_82 = arith.constant 0 : index
    %193 = vector.load %arg4[%c32, %c0_82] : memref<320x32xf32, #tpu.memory_space<vmem>>, vector<128x32xf32>
    %cst_83 = arith.constant dense<0.000000e+00> : vector<14x32xf32>
    %194 = tpu.matmul %192, %193, %cst_83 {dimension_numbers = #tpu.dot_dimension_numbers<[1], [0], [0], [1], [0, 0, 1, 1], [], []>} : vector<14x128xf32>, vector<128x32xf32>, vector<14x32xf32> -> vector<14x32xf32>
    %195 = arith.addf %122, %194 : vector<14x32xf32>
    %c9 = arith.constant 9 : index
    %c0_84 = arith.constant 0 : index
    %196 = vector.load %arg2[%c9, %c0_84] : memref<23x128xf32, #tpu.memory_space<vmem>>, vector<1x32xf32>
    %197 = vector.broadcast %196 : vector<1x32xf32> to vector<14x32xf32>
    %198 = arith.addf %195, %197 : vector<14x32xf32>
    %c10 = arith.constant 10 : index
    %c0_85 = arith.constant 0 : index
    %199 = vector.load %arg2[%c10, %c0_85] : memref<23x128xf32, #tpu.memory_space<vmem>>, vector<1x32xf32>
    %c11 = arith.constant 11 : index
    %c0_86 = arith.constant 0 : index
    %200 = vector.load %arg2[%c11, %c0_86] : memref<23x128xf32, #tpu.memory_space<vmem>>, vector<1x32xf32>
    %cst_87 = arith.constant dense<0.000000e+00> : vector<14xf32>
    %201 = vector.multi_reduction <add>, %198, %cst_87 [1] : vector<14x32xf32> to vector<14xf32>
    %202 = vector.shape_cast %201 : vector<14xf32> to vector<14x1xf32>
    %cst_88 = arith.constant 3.200000e+01 : f32
    %203 = vector.broadcast %cst_88 : f32 to vector<14x1xf32>
    %204 = arith.divf %202, %203 : vector<14x1xf32>
    %205 = vector.broadcast %204 : vector<14x1xf32> to vector<14x32xf32>
    %206 = arith.subf %198, %205 : vector<14x32xf32>
    %207 = arith.mulf %206, %206 : vector<14x32xf32>
    %cst_89 = arith.constant dense<0.000000e+00> : vector<14xf32>
    %208 = vector.multi_reduction <add>, %207, %cst_89 [1] : vector<14x32xf32> to vector<14xf32>
    %209 = vector.shape_cast %208 : vector<14xf32> to vector<14x1xf32>
    %cst_90 = arith.constant 3.200000e+01 : f32
    %210 = vector.broadcast %cst_90 : f32 to vector<14x1xf32>
    %211 = arith.divf %209, %210 : vector<14x1xf32>
    %212 = vector.broadcast %204 : vector<14x1xf32> to vector<14x32xf32>
    %213 = arith.subf %198, %212 : vector<14x32xf32>
    %cst_91 = arith.constant 9.99999974E-6 : f32
    %214 = vector.broadcast %cst_91 : f32 to vector<14x1xf32>
    %215 = arith.addf %211, %214 : vector<14x1xf32>
    %216 = math.rsqrt %215 : vector<14x1xf32>
    %217 = vector.broadcast %216 : vector<14x1xf32> to vector<14x32xf32>
    %218 = arith.mulf %213, %217 : vector<14x32xf32>
    %219 = vector.broadcast %199 : vector<1x32xf32> to vector<14x32xf32>
    %220 = arith.mulf %218, %219 : vector<14x32xf32>
    %221 = vector.broadcast %200 : vector<1x32xf32> to vector<14x32xf32>
    %222 = arith.addf %220, %221 : vector<14x32xf32>
    %c32_92 = arith.constant 32 : index
    %c0_93 = arith.constant 0 : index
    %223 = vector.load %arg3[%c32_92, %c0_93] : memref<64x96xf32, #tpu.memory_space<vmem>>, vector<32x96xf32>
    %cst_94 = arith.constant dense<0.000000e+00> : vector<14x96xf32>
    %224 = tpu.matmul %222, %223, %cst_94 {dimension_numbers = #tpu.dot_dimension_numbers<[1], [0], [0], [1], [0, 0, 1, 1], [], []>} : vector<14x32xf32>, vector<32x96xf32>, vector<14x96xf32> -> vector<14x96xf32>
    %225 = vector.extract_strided_slice %224 {offsets = [0, 0], sizes = [14, 32], strides = [1, 1]} : vector<14x96xf32> to vector<14x32xf32>
    %c12 = arith.constant 12 : index
    %c0_95 = arith.constant 0 : index
    %226 = vector.load %arg2[%c12, %c0_95] : memref<23x128xf32, #tpu.memory_space<vmem>>, vector<1x32xf32>
    %227 = vector.broadcast %226 : vector<1x32xf32> to vector<14x32xf32>
    %228 = arith.addf %225, %227 : vector<14x32xf32>
    %229 = vector.extract_strided_slice %224 {offsets = [0, 32], sizes = [14, 32], strides = [1, 1]} : vector<14x96xf32> to vector<14x32xf32>
    %c13 = arith.constant 13 : index
    %c0_96 = arith.constant 0 : index
    %230 = vector.load %arg2[%c13, %c0_96] : memref<23x128xf32, #tpu.memory_space<vmem>>, vector<1x32xf32>
    %231 = vector.broadcast %230 : vector<1x32xf32> to vector<14x32xf32>
    %232 = arith.addf %229, %231 : vector<14x32xf32>
    %233 = vector.extract_strided_slice %224 {offsets = [0, 64], sizes = [14, 32], strides = [1, 1]} : vector<14x96xf32> to vector<14x32xf32>
    %c14 = arith.constant 14 : index
    %c0_97 = arith.constant 0 : index
    %234 = vector.load %arg2[%c14, %c0_97] : memref<23x128xf32, #tpu.memory_space<vmem>>, vector<1x32xf32>
    %235 = vector.broadcast %234 : vector<1x32xf32> to vector<14x32xf32>
    %236 = arith.addf %233, %235 : vector<14x32xf32>
    %237 = vector.extract_strided_slice %228 {offsets = [0, 0], sizes = [14, 8], strides = [1, 1]} : vector<14x32xf32> to vector<14x8xf32>
    %238 = vector.extract_strided_slice %232 {offsets = [0, 0], sizes = [14, 8], strides = [1, 1]} : vector<14x32xf32> to vector<14x8xf32>
    %239 = vector.extract_strided_slice %236 {offsets = [0, 0], sizes = [14, 8], strides = [1, 1]} : vector<14x32xf32> to vector<14x8xf32>
    %cst_98 = arith.constant dense<0.000000e+00> : vector<14x14xf32>
    %240 = tpu.matmul %237, %238, %cst_98 {dimension_numbers = #tpu.dot_dimension_numbers<[1], [1], [0], [0], [0, 0, 1, 0], [], []>} : vector<14x8xf32>, vector<14x8xf32>, vector<14x14xf32> -> vector<14x14xf32>
    %cst_99 = arith.constant 0.353553385 : f32
    %241 = vector.broadcast %cst_99 : f32 to vector<14x14xf32>
    %242 = arith.mulf %240, %241 : vector<14x14xf32>
    %cst_100 = arith.constant dense<0xFF800000> : vector<14xf32>
    %243 = vector.multi_reduction <maximumf>, %242, %cst_100 [1] : vector<14x14xf32> to vector<14xf32>
    %244 = vector.shape_cast %243 : vector<14xf32> to vector<14x1xf32>
    %245 = vector.broadcast %244 : vector<14x1xf32> to vector<14x14xf32>
    %246 = arith.subf %242, %245 : vector<14x14xf32>
    %247 = math.exp %246 : vector<14x14xf32>
    %cst_101 = arith.constant dense<0.000000e+00> : vector<14xf32>
    %248 = vector.multi_reduction <add>, %247, %cst_101 [1] : vector<14x14xf32> to vector<14xf32>
    %249 = vector.shape_cast %248 : vector<14xf32> to vector<14x1xf32>
    %250 = vector.broadcast %249 : vector<14x1xf32> to vector<14x14xf32>
    %251 = arith.divf %247, %250 : vector<14x14xf32>
    %c0_102 = arith.constant 0 : index
    %c4_103 = arith.constant 4 : index
    %c0_104 = arith.constant 0 : index
    %c0_105 = arith.constant 0 : index
    %252 = vector.load %arg7[%c0_102, %c4_103, %c0_104, %c0_105] : memref<1x8x14x14xf32, #tpu.memory_space<vmem>>, vector<1x1x14x14xf32>
    %253 = vector.shape_cast %252 : vector<1x1x14x14xf32> to vector<14x14xf32>
    %254 = vector.shape_cast %251 : vector<14x14xf32> to vector<1x1x14x14xf32>
    tpu.vector_store %arg7[%c0_102, %c4_103, %c0_104, %c0_105], %254 {strides = array<i32>} : memref<1x8x14x14xf32, #tpu.memory_space<vmem>>, vector<1x1x14x14xf32>,
    %cst_106 = arith.constant dense<0.000000e+00> : vector<14x8xf32>
    %255 = tpu.matmul %251, %239, %cst_106 {dimension_numbers = #tpu.dot_dimension_numbers<[1], [0], [0], [1], [0, 0, 1, 1], [], []>} : vector<14x14xf32>, vector<14x8xf32>, vector<14x8xf32> -> vector<14x8xf32>
    %256 = vector.extract_strided_slice %228 {offsets = [0, 8], sizes = [14, 8], strides = [1, 1]} : vector<14x32xf32> to vector<14x8xf32>
    %257 = vector.extract_strided_slice %232 {offsets = [0, 8], sizes = [14, 8], strides = [1, 1]} : vector<14x32xf32> to vector<14x8xf32>
    %258 = vector.extract_strided_slice %236 {offsets = [0, 8], sizes = [14, 8], strides = [1, 1]} : vector<14x32xf32> to vector<14x8xf32>
    %cst_107 = arith.constant dense<0.000000e+00> : vector<14x14xf32>
    %259 = tpu.matmul %256, %257, %cst_107 {dimension_numbers = #tpu.dot_dimension_numbers<[1], [1], [0], [0], [0, 0, 1, 0], [], []>} : vector<14x8xf32>, vector<14x8xf32>, vector<14x14xf32> -> vector<14x14xf32>
    %cst_108 = arith.constant 0.353553385 : f32
    %260 = vector.broadcast %cst_108 : f32 to vector<14x14xf32>
    %261 = arith.mulf %259, %260 : vector<14x14xf32>
    %cst_109 = arith.constant dense<0xFF800000> : vector<14xf32>
    %262 = vector.multi_reduction <maximumf>, %261, %cst_109 [1] : vector<14x14xf32> to vector<14xf32>
    %263 = vector.shape_cast %262 : vector<14xf32> to vector<14x1xf32>
    %264 = vector.broadcast %263 : vector<14x1xf32> to vector<14x14xf32>
    %265 = arith.subf %261, %264 : vector<14x14xf32>
    %266 = math.exp %265 : vector<14x14xf32>
    %cst_110 = arith.constant dense<0.000000e+00> : vector<14xf32>
    %267 = vector.multi_reduction <add>, %266, %cst_110 [1] : vector<14x14xf32> to vector<14xf32>
    %268 = vector.shape_cast %267 : vector<14xf32> to vector<14x1xf32>
    %269 = vector.broadcast %268 : vector<14x1xf32> to vector<14x14xf32>
    %270 = arith.divf %266, %269 : vector<14x14xf32>
    %c0_111 = arith.constant 0 : index
    %c5_112 = arith.constant 5 : index
    %c0_113 = arith.constant 0 : index
    %c0_114 = arith.constant 0 : index
    %271 = vector.load %arg7[%c0_111, %c5_112, %c0_113, %c0_114] : memref<1x8x14x14xf32, #tpu.memory_space<vmem>>, vector<1x1x14x14xf32>
    %272 = vector.shape_cast %271 : vector<1x1x14x14xf32> to vector<14x14xf32>
    %273 = vector.shape_cast %270 : vector<14x14xf32> to vector<1x1x14x14xf32>
    tpu.vector_store %arg7[%c0_111, %c5_112, %c0_113, %c0_114], %273 {strides = array<i32>} : memref<1x8x14x14xf32, #tpu.memory_space<vmem>>, vector<1x1x14x14xf32>,
    %cst_115 = arith.constant dense<0.000000e+00> : vector<14x8xf32>
    %274 = tpu.matmul %270, %258, %cst_115 {dimension_numbers = #tpu.dot_dimension_numbers<[1], [0], [0], [1], [0, 0, 1, 1], [], []>} : vector<14x14xf32>, vector<14x8xf32>, vector<14x8xf32> -> vector<14x8xf32>
    %275 = vector.extract_strided_slice %228 {offsets = [0, 16], sizes = [14, 8], strides = [1, 1]} : vector<14x32xf32> to vector<14x8xf32>
    %276 = vector.extract_strided_slice %232 {offsets = [0, 16], sizes = [14, 8], strides = [1, 1]} : vector<14x32xf32> to vector<14x8xf32>
    %277 = vector.extract_strided_slice %236 {offsets = [0, 16], sizes = [14, 8], strides = [1, 1]} : vector<14x32xf32> to vector<14x8xf32>
    %cst_116 = arith.constant dense<0.000000e+00> : vector<14x14xf32>
    %278 = tpu.matmul %275, %276, %cst_116 {dimension_numbers = #tpu.dot_dimension_numbers<[1], [1], [0], [0], [0, 0, 1, 0], [], []>} : vector<14x8xf32>, vector<14x8xf32>, vector<14x14xf32> -> vector<14x14xf32>
    %cst_117 = arith.constant 0.353553385 : f32
    %279 = vector.broadcast %cst_117 : f32 to vector<14x14xf32>
    %280 = arith.mulf %278, %279 : vector<14x14xf32>
    %cst_118 = arith.constant dense<0xFF800000> : vector<14xf32>
    %281 = vector.multi_reduction <maximumf>, %280, %cst_118 [1] : vector<14x14xf32> to vector<14xf32>
    %282 = vector.shape_cast %281 : vector<14xf32> to vector<14x1xf32>
    %283 = vector.broadcast %282 : vector<14x1xf32> to vector<14x14xf32>
    %284 = arith.subf %280, %283 : vector<14x14xf32>
    %285 = math.exp %284 : vector<14x14xf32>
    %cst_119 = arith.constant dense<0.000000e+00> : vector<14xf32>
    %286 = vector.multi_reduction <add>, %285, %cst_119 [1] : vector<14x14xf32> to vector<14xf32>
    %287 = vector.shape_cast %286 : vector<14xf32> to vector<14x1xf32>
    %288 = vector.broadcast %287 : vector<14x1xf32> to vector<14x14xf32>
    %289 = arith.divf %285, %288 : vector<14x14xf32>
    %c0_120 = arith.constant 0 : index
    %c6_121 = arith.constant 6 : index
    %c0_122 = arith.constant 0 : index
    %c0_123 = arith.constant 0 : index
    %290 = vector.load %arg7[%c0_120, %c6_121, %c0_122, %c0_123] : memref<1x8x14x14xf32, #tpu.memory_space<vmem>>, vector<1x1x14x14xf32>
    %291 = vector.shape_cast %290 : vector<1x1x14x14xf32> to vector<14x14xf32>
    %292 = vector.shape_cast %289 : vector<14x14xf32> to vector<1x1x14x14xf32>
    tpu.vector_store %arg7[%c0_120, %c6_121, %c0_122, %c0_123], %292 {strides = array<i32>} : memref<1x8x14x14xf32, #tpu.memory_space<vmem>>, vector<1x1x14x14xf32>,
    %cst_124 = arith.constant dense<0.000000e+00> : vector<14x8xf32>
    %293 = tpu.matmul %289, %277, %cst_124 {dimension_numbers = #tpu.dot_dimension_numbers<[1], [0], [0], [1], [0, 0, 1, 1], [], []>} : vector<14x14xf32>, vector<14x8xf32>, vector<14x8xf32> -> vector<14x8xf32>
    %294 = vector.extract_strided_slice %228 {offsets = [0, 24], sizes = [14, 8], strides = [1, 1]} : vector<14x32xf32> to vector<14x8xf32>
    %295 = vector.extract_strided_slice %232 {offsets = [0, 24], sizes = [14, 8], strides = [1, 1]} : vector<14x32xf32> to vector<14x8xf32>
    %296 = vector.extract_strided_slice %236 {offsets = [0, 24], sizes = [14, 8], strides = [1, 1]} : vector<14x32xf32> to vector<14x8xf32>
    %cst_125 = arith.constant dense<0.000000e+00> : vector<14x14xf32>
    %297 = tpu.matmul %294, %295, %cst_125 {dimension_numbers = #tpu.dot_dimension_numbers<[1], [1], [0], [0], [0, 0, 1, 0], [], []>} : vector<14x8xf32>, vector<14x8xf32>, vector<14x14xf32> -> vector<14x14xf32>
    %cst_126 = arith.constant 0.353553385 : f32
    %298 = vector.broadcast %cst_126 : f32 to vector<14x14xf32>
    %299 = arith.mulf %297, %298 : vector<14x14xf32>
    %cst_127 = arith.constant dense<0xFF800000> : vector<14xf32>
    %300 = vector.multi_reduction <maximumf>, %299, %cst_127 [1] : vector<14x14xf32> to vector<14xf32>
    %301 = vector.shape_cast %300 : vector<14xf32> to vector<14x1xf32>
    %302 = vector.broadcast %301 : vector<14x1xf32> to vector<14x14xf32>
    %303 = arith.subf %299, %302 : vector<14x14xf32>
    %304 = math.exp %303 : vector<14x14xf32>
    %cst_128 = arith.constant dense<0.000000e+00> : vector<14xf32>
    %305 = vector.multi_reduction <add>, %304, %cst_128 [1] : vector<14x14xf32> to vector<14xf32>
    %306 = vector.shape_cast %305 : vector<14xf32> to vector<14x1xf32>
    %307 = vector.broadcast %306 : vector<14x1xf32> to vector<14x14xf32>
    %308 = arith.divf %304, %307 : vector<14x14xf32>
    %c0_129 = arith.constant 0 : index
    %c7_130 = arith.constant 7 : index
    %c0_131 = arith.constant 0 : index
    %c0_132 = arith.constant 0 : index
    %309 = vector.load %arg7[%c0_129, %c7_130, %c0_131, %c0_132] : memref<1x8x14x14xf32, #tpu.memory_space<vmem>>, vector<1x1x14x14xf32>
    %310 = vector.shape_cast %309 : vector<1x1x14x14xf32> to vector<14x14xf32>
    %311 = vector.shape_cast %308 : vector<14x14xf32> to vector<1x1x14x14xf32>
    tpu.vector_store %arg7[%c0_129, %c7_130, %c0_131, %c0_132], %311 {strides = array<i32>} : memref<1x8x14x14xf32, #tpu.memory_space<vmem>>, vector<1x1x14x14xf32>,
    %cst_133 = arith.constant dense<0.000000e+00> : vector<14x8xf32>
    %312 = tpu.matmul %308, %296, %cst_133 {dimension_numbers = #tpu.dot_dimension_numbers<[1], [0], [0], [1], [0, 0, 1, 1], [], []>} : vector<14x14xf32>, vector<14x8xf32>, vector<14x8xf32> -> vector<14x8xf32>
    %313 = tpu.concatenate %255, %274, %293, %312 in 1 : vector<14x8xf32>, vector<14x8xf32>, vector<14x8xf32>, vector<14x8xf32> -> vector<14x32xf32>
    %c160 = arith.constant 160 : index
    %c0_134 = arith.constant 0 : index
    %314 = vector.load %arg4[%c160, %c0_134] : memref<320x32xf32, #tpu.memory_space<vmem>>, vector<32x32xf32>
    %cst_135 = arith.constant dense<0.000000e+00> : vector<14x32xf32>
    %315 = tpu.matmul %313, %314, %cst_135 {dimension_numbers = #tpu.dot_dimension_numbers<[1], [0], [0], [1], [0, 0, 1, 1], [], []>} : vector<14x32xf32>, vector<32x32xf32>, vector<14x32xf32> -> vector<14x32xf32>
    %316 = arith.addf %198, %315 : vector<14x32xf32>
    %c15 = arith.constant 15 : index
    %c0_136 = arith.constant 0 : index
    %317 = vector.load %arg2[%c15, %c0_136] : memref<23x128xf32, #tpu.memory_space<vmem>>, vector<1x32xf32>
    %318 = vector.broadcast %317 : vector<1x32xf32> to vector<14x32xf32>
    %319 = arith.addf %316, %318 : vector<14x32xf32>
    %c16 = arith.constant 16 : index
    %c0_137 = arith.constant 0 : index
    %320 = vector.load %arg2[%c16, %c0_137] : memref<23x128xf32, #tpu.memory_space<vmem>>, vector<1x32xf32>
    %c17 = arith.constant 17 : index
    %c0_138 = arith.constant 0 : index
    %321 = vector.load %arg2[%c17, %c0_138] : memref<23x128xf32, #tpu.memory_space<vmem>>, vector<1x32xf32>
    %cst_139 = arith.constant dense<0.000000e+00> : vector<14xf32>
    %322 = vector.multi_reduction <add>, %319, %cst_139 [1] : vector<14x32xf32> to vector<14xf32>
    %323 = vector.shape_cast %322 : vector<14xf32> to vector<14x1xf32>
    %cst_140 = arith.constant 3.200000e+01 : f32
    %324 = vector.broadcast %cst_140 : f32 to vector<14x1xf32>
    %325 = arith.divf %323, %324 : vector<14x1xf32>
    %326 = vector.broadcast %325 : vector<14x1xf32> to vector<14x32xf32>
    %327 = arith.subf %319, %326 : vector<14x32xf32>
    %328 = arith.mulf %327, %327 : vector<14x32xf32>
    %cst_141 = arith.constant dense<0.000000e+00> : vector<14xf32>
    %329 = vector.multi_reduction <add>, %328, %cst_141 [1] : vector<14x32xf32> to vector<14xf32>
    %330 = vector.shape_cast %329 : vector<14xf32> to vector<14x1xf32>
    %cst_142 = arith.constant 3.200000e+01 : f32
    %331 = vector.broadcast %cst_142 : f32 to vector<14x1xf32>
    %332 = arith.divf %330, %331 : vector<14x1xf32>
    %333 = vector.broadcast %325 : vector<14x1xf32> to vector<14x32xf32>
    %334 = arith.subf %319, %333 : vector<14x32xf32>
    %cst_143 = arith.constant 9.99999974E-6 : f32
    %335 = vector.broadcast %cst_143 : f32 to vector<14x1xf32>
    %336 = arith.addf %332, %335 : vector<14x1xf32>
    %337 = math.rsqrt %336 : vector<14x1xf32>
    %338 = vector.broadcast %337 : vector<14x1xf32> to vector<14x32xf32>
    %339 = arith.mulf %334, %338 : vector<14x32xf32>
    %340 = vector.broadcast %320 : vector<1x32xf32> to vector<14x32xf32>
    %341 = arith.mulf %339, %340 : vector<14x32xf32>
    %342 = vector.broadcast %321 : vector<1x32xf32> to vector<14x32xf32>
    %343 = arith.addf %341, %342 : vector<14x32xf32>
    %c32_144 = arith.constant 32 : index
    %c0_145 = arith.constant 0 : index
    %344 = vector.load %arg5[%c32_144, %c0_145] : memref<64x128xf32, #tpu.memory_space<vmem>>, vector<32x128xf32>
    %cst_146 = arith.constant dense<0.000000e+00> : vector<14x128xf32>
    %345 = tpu.matmul %343, %344, %cst_146 {dimension_numbers = #tpu.dot_dimension_numbers<[1], [0], [0], [1], [0, 0, 1, 1], [], []>} : vector<14x32xf32>, vector<32x128xf32>, vector<14x128xf32> -> vector<14x128xf32>
    %c18 = arith.constant 18 : index
    %c0_147 = arith.constant 0 : index
    %346 = vector.load %arg2[%c18, %c0_147] : memref<23x128xf32, #tpu.memory_space<vmem>>, vector<1x128xf32>
    %347 = vector.broadcast %346 : vector<1x128xf32> to vector<14x128xf32>
    %348 = arith.addf %345, %347 : vector<14x128xf32>
    %cst_148 = arith.constant 5.000000e-01 : f32
    %349 = vector.broadcast %cst_148 : f32 to vector<14x128xf32>
    %350 = arith.mulf %349, %348 : vector<14x128xf32>
    %cst_149 = arith.constant 0.707106769 : f32
    %351 = vector.broadcast %cst_149 : f32 to vector<14x128xf32>
    %352 = arith.mulf %348, %351 : vector<14x128xf32>
    %cst_150 = arith.constant 0.000000e+00 : f32
    %353 = vector.broadcast %cst_150 : f32 to vector<14x128xf32>
    %354 = arith.cmpf oge, %352, %353 : vector<14x128xf32>
    %cst_151 = arith.constant 1.000000e+00 : f32
    %cst_152 = arith.constant -1.000000e+00 : f32
    %355 = vector.broadcast %cst_151 : f32 to vector<14x128xf32>
    %356 = vector.broadcast %cst_152 : f32 to vector<14x128xf32>
    %357 = arith.select %354, %355, %356 : vector<14x128xi1>, vector<14x128xf32>
    %358 = math.absf %352 : vector<14x128xf32>
    %cst_153 = arith.constant 0.327591091 : f32
    %359 = vector.broadcast %cst_153 : f32 to vector<14x128xf32>
    %360 = arith.mulf %359, %358 : vector<14x128xf32>
    %cst_154 = arith.constant 1.000000e+00 : f32
    %361 = vector.broadcast %cst_154 : f32 to vector<14x128xf32>
    %362 = arith.addf %361, %360 : vector<14x128xf32>
    %cst_155 = arith.constant 1.000000e+00 : f32
    %363 = vector.broadcast %cst_155 : f32 to vector<14x128xf32>
    %364 = arith.divf %363, %362 : vector<14x128xf32>
    %cst_156 = arith.constant 1.06140542 : f32
    %365 = vector.broadcast %cst_156 : f32 to vector<14x128xf32>
    %366 = arith.mulf %365, %364 : vector<14x128xf32>
    %cst_157 = arith.constant -1.45315206 : f32
    %367 = vector.broadcast %cst_157 : f32 to vector<14x128xf32>
    %368 = arith.addf %366, %367 : vector<14x128xf32>
    %369 = arith.mulf %368, %364 : vector<14x128xf32>
    %cst_158 = arith.constant 1.42141378 : f32
    %370 = vector.broadcast %cst_158 : f32 to vector<14x128xf32>
    %371 = arith.addf %369, %370 : vector<14x128xf32>
    %372 = arith.mulf %371, %364 : vector<14x128xf32>
    %cst_159 = arith.constant -0.284496725 : f32
    %373 = vector.broadcast %cst_159 : f32 to vector<14x128xf32>
    %374 = arith.addf %372, %373 : vector<14x128xf32>
    %375 = arith.mulf %374, %364 : vector<14x128xf32>
    %cst_160 = arith.constant 0.254829586 : f32
    %376 = vector.broadcast %cst_160 : f32 to vector<14x128xf32>
    %377 = arith.addf %375, %376 : vector<14x128xf32>
    %378 = arith.mulf %377, %364 : vector<14x128xf32>
    %cst_161 = arith.constant 0.000000e+00 : f32
    %379 = vector.broadcast %cst_161 : f32 to vector<14x128xf32>
    %380 = arith.subf %379, %358 : vector<14x128xf32>
    %381 = arith.mulf %380, %358 : vector<14x128xf32>
    %382 = math.exp %381 : vector<14x128xf32>
    %383 = arith.mulf %378, %382 : vector<14x128xf32>
    %cst_162 = arith.constant 1.000000e+00 : f32
    %384 = vector.broadcast %cst_162 : f32 to vector<14x128xf32>
    %385 = arith.subf %384, %383 : vector<14x128xf32>
    %386 = arith.mulf %357, %385 : vector<14x128xf32>
    %cst_163 = arith.constant 1.000000e+00 : f32
    %387 = vector.broadcast %cst_163 : f32 to vector<14x128xf32>
    %388 = arith.addf %387, %386 : vector<14x128xf32>
    %389 = arith.mulf %350, %388 : vector<14x128xf32>
    %c192 = arith.constant 192 : index
    %c0_164 = arith.constant 0 : index
    %390 = vector.load %arg4[%c192, %c0_164] : memref<320x32xf32, #tpu.memory_space<vmem>>, vector<128x32xf32>
    %cst_165 = arith.constant dense<0.000000e+00> : vector<14x32xf32>
    %391 = tpu.matmul %389, %390, %cst_165 {dimension_numbers = #tpu.dot_dimension_numbers<[1], [0], [0], [1], [0, 0, 1, 1], [], []>} : vector<14x128xf32>, vector<128x32xf32>, vector<14x32xf32> -> vector<14x32xf32>
    %392 = arith.addf %319, %391 : vector<14x32xf32>
    %c19 = arith.constant 19 : index
    %c0_166 = arith.constant 0 : index
    %393 = vector.load %arg2[%c19, %c0_166] : memref<23x128xf32, #tpu.memory_space<vmem>>, vector<1x32xf32>
    %394 = vector.broadcast %393 : vector<1x32xf32> to vector<14x32xf32>
    %395 = arith.addf %392, %394 : vector<14x32xf32>
    %c20 = arith.constant 20 : index
    %c0_167 = arith.constant 0 : index
    %396 = vector.load %arg2[%c20, %c0_167] : memref<23x128xf32, #tpu.memory_space<vmem>>, vector<1x32xf32>
    %c21 = arith.constant 21 : index
    %c0_168 = arith.constant 0 : index
    %397 = vector.load %arg2[%c21, %c0_168] : memref<23x128xf32, #tpu.memory_space<vmem>>, vector<1x32xf32>
    %cst_169 = arith.constant dense<0.000000e+00> : vector<14xf32>
    %398 = vector.multi_reduction <add>, %395, %cst_169 [1] : vector<14x32xf32> to vector<14xf32>
    %399 = vector.shape_cast %398 : vector<14xf32> to vector<14x1xf32>
    %cst_170 = arith.constant 3.200000e+01 : f32
    %400 = vector.broadcast %cst_170 : f32 to vector<14x1xf32>
    %401 = arith.divf %399, %400 : vector<14x1xf32>
    %402 = vector.broadcast %401 : vector<14x1xf32> to vector<14x32xf32>
    %403 = arith.subf %395, %402 : vector<14x32xf32>
    %404 = arith.mulf %403, %403 : vector<14x32xf32>
    %cst_171 = arith.constant dense<0.000000e+00> : vector<14xf32>
    %405 = vector.multi_reduction <add>, %404, %cst_171 [1] : vector<14x32xf32> to vector<14xf32>
    %406 = vector.shape_cast %405 : vector<14xf32> to vector<14x1xf32>
    %cst_172 = arith.constant 3.200000e+01 : f32
    %407 = vector.broadcast %cst_172 : f32 to vector<14x1xf32>
    %408 = arith.divf %406, %407 : vector<14x1xf32>
    %409 = vector.broadcast %401 : vector<14x1xf32> to vector<14x32xf32>
    %410 = arith.subf %395, %409 : vector<14x32xf32>
    %cst_173 = arith.constant 9.99999974E-6 : f32
    %411 = vector.broadcast %cst_173 : f32 to vector<14x1xf32>
    %412 = arith.addf %408, %411 : vector<14x1xf32>
    %413 = math.rsqrt %412 : vector<14x1xf32>
    %414 = vector.broadcast %413 : vector<14x1xf32> to vector<14x32xf32>
    %415 = arith.mulf %410, %414 : vector<14x32xf32>
    %416 = vector.broadcast %396 : vector<1x32xf32> to vector<14x32xf32>
    %417 = arith.mulf %415, %416 : vector<14x32xf32>
    %418 = vector.broadcast %397 : vector<1x32xf32> to vector<14x32xf32>
    %419 = arith.addf %417, %418 : vector<14x32xf32>
    %c22 = arith.constant 22 : index
    %c0_174 = arith.constant 0 : index
    %420 = vector.load %arg2[%c22, %c0_174] : memref<23x128xf32, #tpu.memory_space<vmem>>, vector<1x32xf32>
    %421 = vector.broadcast %420 : vector<1x32xf32> to vector<14x32xf32>
    %422 = arith.mulf %419, %421 : vector<14x32xf32>
    %cst_175 = arith.constant dense<0.000000e+00> : vector<14xf32>
    %423 = vector.multi_reduction <add>, %422, %cst_175 [1] : vector<14x32xf32> to vector<14xf32>
    %424 = vector.shape_cast %423 : vector<14xf32> to vector<14x1xf32>
    %c0_176 = arith.constant 0 : index
    %c0_177 = arith.constant 0 : index
    %c0_178 = arith.constant 0 : index
    %425 = vector.load %arg6[%c0_176, %c0_177, %c0_178] : memref<1x14x1xf32, #tpu.memory_space<vmem>>, vector<1x14x1xf32>
    %426 = vector.shape_cast %425 : vector<1x14x1xf32> to vector<14x1xf32>
    %427 = vector.shape_cast %424 : vector<14x1xf32> to vector<1x14x1xf32>
    tpu.vector_store %arg6[%c0_176, %c0_177, %c0_178], %427 {strides = array<i32>} : memref<1x14x1xf32, #tpu.memory_space<vmem>>, vector<1x14x1xf32>,
    return
  }
  func.func @transform_0(%arg0: i32) -> (i32, i32, i32) {
    %c0_i32 = arith.constant 0 : i32
    %c0_i32_0 = arith.constant 0 : i32
    %c0_i32_1 = arith.constant 0 : i32
    return %arg0, %c0_i32, %c0_i32_0 : i32, i32, i32
  }
  func.func @transform_1(%arg0: i32) -> (i32, i32) {
    %c0_i32 = arith.constant 0 : i32
    %c0_i32_0 = arith.constant 0 : i32
    %c0_i32_1 = arith.constant 0 : i32
    return %c0_i32, %c0_i32_0 : i32, i32
  }
  func.func @transform_2(%arg0: i32) -> (i32, i32) {
    %c0_i32 = arith.constant 0 : i32
    %c0_i32_0 = arith.constant 0 : i32
    %c0_i32_1 = arith.constant 0 : i32
    return %c0_i32, %c0_i32_0 : i32, i32
  }
  func.func @transform_3(%arg0: i32) -> (i32, i32) {
    %c0_i32 = arith.constant 0 : i32
    %c0_i32_0 = arith.constant 0 : i32
    %c0_i32_1 = arith.constant 0 : i32
    return %c0_i32, %c0_i32_0 : i32, i32
  }
  func.func @transform_4(%arg0: i32) -> (i32, i32) {
    %c0_i32 = arith.constant 0 : i32
    %c0_i32_0 = arith.constant 0 : i32
    %c0_i32_1 = arith.constant 0 : i32
    return %c0_i32, %c0_i32_0 : i32, i32
  }
  func.func @transform_5(%arg0: i32) -> (i32, i32, i32) {
    %c0_i32 = arith.constant 0 : i32
    %c0_i32_0 = arith.constant 0 : i32
    %c0_i32_1 = arith.constant 0 : i32
    return %arg0, %c0_i32, %c0_i32_0 : i32, i32, i32
  }
  func.func @transform_6(%arg0: i32) -> (i32, i32, i32, i32) {
    %c0_i32 = arith.constant 0 : i32
    %c0_i32_0 = arith.constant 0 : i32
    %c0_i32_1 = arith.constant 0 : i32
    %c0_i32_2 = arith.constant 0 : i32
    return %arg0, %c0_i32, %c0_i32_0, %c0_i32_1 : i32, i32, i32, i32
  }
}

</mosaic_0001>

<llo_original>
// kernel: att_model_forward.1
$region0: #{att_model_forward.1}
  #allocation0 [shape = 'u32[]', space=smem, size = 0x4, offset = 0x4, fixed_abs, tag = 'smem constant byte address 0x4 - core index']
  #allocation1 [shape = 'u32[144,128]{1,0:T(1,128)}', space=vmem, size = 0x12000, scoped, tag = 'internal scratch']
  %s0 = inlined_call_operand.vmem [shape: f32[2,14,32], index: 0, kind: input, shape index: {}]
  %s1 = inlined_call_operand.vmem [shape: f32[23,128], index: 1, kind: input, shape index: {}]
  %s2 = inlined_call_operand.vmem [shape: f32[64,96], index: 2, kind: input, shape index: {}]
  %s3 = inlined_call_operand.vmem [shape: f32[320,32], index: 3, kind: input, shape index: {}]
  %s4 = inlined_call_operand.vmem [shape: f32[64,128], index: 4, kind: input, shape index: {}]
  %s5 = inlined_call_operand.vmem [shape: f32[2,14,1], index: 5, kind: output, shape index: {0}]
  %s6 = inlined_call_operand.vmem [shape: f32[2,8,14,14], index: 6, kind: output, shape index: {1}]
  %7 = xla_tuple %s5, %s6
  %s8 = sld [smem:[#allocation0]]
  $region61: #{att_model_forward.1} parent=0
    _
  %s10 = ssub.s32 1, %s8
  %s11 = scalar_select 0, %s10, %s8
  loop: start=0, step=1, limit=4
  $region2: #{att_model_forward.1} parent=0 // loop_pre_header
    _
  $region3: #{att_model_forward.1} parent=0 // loop_header
    %s13 = sphi 0, %s17
    %p14 = scmp.ge.s32.totalorder %s13, 4
    %s23 = sphi 0, %s25
    %s26 = sphi 0, %s23
    %s27 = sphi 0, %s26
    %s43 = sphi 0, %s27
    %s47 = sphi 0, %s47
    %s49 = sphi 0, %s47
    %s50 = sphi 0, %s49
    %s64 = sphi 0, %s50
    %s68 = sphi 0, %s68
    %s70 = sphi 0, %s68
    %s71 = sphi 0, %s70
    %s85 = sphi 0, %s71
    %s89 = sphi 0, %s89
    %s91 = sphi 0, %s89
    %s92 = sphi 0, %s91
    %s106 = sphi 0, %s92
    %s110 = sphi 0, %s110
    %s112 = sphi 0, %s110
    %s113 = sphi 0, %s112
    %s127 = sphi 0, %s113
    %s133 = sphi 0, %s135
    %s136 = sphi 0, %s133
    %s137 = sphi 0, %s136
    %s153 = sphi 0, %s137
    %s159 = sphi 0, %s161
    %s162 = sphi 0, %s159
    %s163 = sphi 0, %s162
    %s179 = sphi 0, %s163
  $region4: #{att_model_forward.1} parent=0 // loop_header_branch
    %16 = sbr.rel (%p14) target = $region8
  $region5: #{att_model_forward.1} parent=0 // loop_body
    %s18 = ssub.s32 %s13, 1
    %s19 = ssub.s32 %s13, 2
    %s20 = sadd.s32 %s13, 1
    %s21 = ssub.s32 %s13, %s20
    %p22 = scmp.eq.s32.totalorder %s21, 0
    %s24 = sadd.s32 %s23, 1
    %s25 = scalar_select %p22, %s23, %s24
    %p28 = pneg %p22
    %p29 = scmp.eq.s32.totalorder %s13, 1
    %p30 = por %p28, %p29
    %p31 = scmp.ne.s32.totalorder %s23, %s26
    %p32 = scmp.eq.s32.totalorder %s13, 0
    %p33 = por %p31, %p32
    %p34 = scmp.ne.s32.totalorder %s23, %s26
    %p35 = scmp.eq.s32.totalorder %s18, 1
    %p36 = por %p34, %p35
    %p37 = scmp.ne.s32.totalorder %s26, %s27
    %p38 = scmp.eq.s32.totalorder %s18, 0
    %p39 = por %p37, %p38
    %p40 = scmp.ne.s32.totalorder %s26, %s27
    %p41 = scmp.eq.s32.totalorder %s19, 1
    %p42 = por %p40, %p41
    %p44 = scmp.ne.s32.totalorder %s27, %s43
    %p45 = scmp.eq.s32.totalorder %s19, 0
    %p46 = por %p44, %p45
    %s48 = sadd.s32 %s47, 1
    %p51 = scmp.eq.s32.totalorder %s13, 1
    %p52 = scmp.ne.s32.totalorder %s47, %s49
    %p53 = scmp.eq.s32.totalorder %s13, 0
    %p54 = por %p52, %p53
    %p55 = scmp.ne.s32.totalorder %s47, %s49
    %p56 = scmp.eq.s32.totalorder %s18, 1
    %p57 = por %p55, %p56
    %p58 = scmp.ne.s32.totalorder %s49, %s50
    %p59 = scmp.eq.s32.totalorder %s18, 0
    %p60 = por %p58, %p59
    %p61 = scmp.ne.s32.totalorder %s49, %s50
    %p62 = scmp.eq.s32.totalorder %s19, 1
    %p63 = por %p61, %p62
    %p65 = scmp.ne.s32.totalorder %s50, %s64
    %p66 = scmp.eq.s32.totalorder %s19, 0
    %p67 = por %p65, %p66
    %s69 = sadd.s32 %s68, 1
    %p72 = scmp.eq.s32.totalorder %s13, 1
    %p73 = scmp.ne.s32.totalorder %s68, %s70
    %p74 = scmp.eq.s32.totalorder %s13, 0
    %p75 = por %p73, %p74
    %p76 = scmp.ne.s32.totalorder %s68, %s70
    %p77 = scmp.eq.s32.totalorder %s18, 1
    %p78 = por %p76, %p77
    %p79 = scmp.ne.s32.totalorder %s70, %s71
    %p80 = scmp.eq.s32.totalorder %s18, 0
    %p81 = por %p79, %p80
    %p82 = scmp.ne.s32.totalorder %s70, %s71
    %p83 = scmp.eq.s32.totalorder %s19, 1
    %p84 = por %p82, %p83
    %p86 = scmp.ne.s32.totalorder %s71, %s85
    %p87 = scmp.eq.s32.totalorder %s19, 0
    %p88 = por %p86, %p87
    %s90 = sadd.s32 %s89, 1
    %p93 = scmp.eq.s32.totalorder %s13, 1
    %p94 = scmp.ne.s32.totalorder %s89, %s91
    %p95 = scmp.eq.s32.totalorder %s13, 0
    %p96 = por %p94, %p95
    %p97 = scmp.ne.s32.totalorder %s89, %s91
    %p98 = scmp.eq.s32.totalorder %s18, 1
    %p99 = por %p97, %p98
    %p100 = scmp.ne.s32.totalorder %s91, %s92
    %p101 = scmp.eq.s32.totalorder %s18, 0
    %p102 = por %p100, %p101
    %p103 = scmp.ne.s32.totalorder %s91, %s92
    %p104 = scmp.eq.s32.totalorder %s19, 1
    %p105 = por %p103, %p104
    %p107 = scmp.ne.s32.totalorder %s92, %s106
    %p108 = scmp.eq.s32.totalorder %s19, 0
    %p109 = por %p107, %p108
    %s111 = sadd.s32 %s110, 1
    %p114 = scmp.eq.s32.totalorder %s13, 1
    %p115 = scmp.ne.s32.totalorder %s110, %s112
    %p116 = scmp.eq.s32.totalorder %s13, 0
    %p117 = por %p115, %p116
    %p118 = scmp.ne.s32.totalorder %s110, %s112
    %p119 = scmp.eq.s32.totalorder %s18, 1
    %p120 = por %p118, %p119
    %p121 = scmp.ne.s32.totalorder %s112, %s113
    %p122 = scmp.eq.s32.totalorder %s18, 0
    %p123 = por %p121, %p122
    %p124 = scmp.ne.s32.totalorder %s112, %s113
    %p125 = scmp.eq.s32.totalorder %s19, 1
    %p126 = por %p124, %p125
    %p128 = scmp.ne.s32.totalorder %s113, %s127
    %p129 = scmp.eq.s32.totalorder %s19, 0
    %p130 = por %p128, %p129
    %s131 = ssub.s32 %s13, %s20
    %p132 = scmp.eq.s32.totalorder %s131, 0
    %s134 = sadd.s32 %s133, 1
    %s135 = scalar_select %p132, %s133, %s134
    %p138 = pneg %p132
    %p139 = scmp.eq.s32.totalorder %s13, 1
    %p140 = por %p138, %p139
    %p141 = scmp.ne.s32.totalorder %s133, %s136
    %p142 = scmp.eq.s32.totalorder %s13, 0
    %p143 = por %p141, %p142
    %p144 = scmp.ne.s32.totalorder %s133, %s136
    %p145 = scmp.eq.s32.totalorder %s18, 1
    %p146 = por %p144, %p145
    %p147 = scmp.ne.s32.totalorder %s136, %s137
    %p148 = scmp.eq.s32.totalorder %s18, 0
    %p149 = por %p147, %p148
    %p150 = scmp.ne.s32.totalorder %s136, %s137
    %p151 = scmp.eq.s32.totalorder %s19, 1
    %p152 = por %p150, %p151
    %p154 = scmp.ne.s32.totalorder %s137, %s153
    %p155 = scmp.eq.s32.totalorder %s19, 0
    %p156 = por %p154, %p155
    %s157 = ssub.s32 %s13, %s20
    %p158 = scmp.eq.s32.totalorder %s157, 0
    %s160 = sadd.s32 %s159, 1
    %s161 = scalar_select %p158, %s159, %s160
    %p164 = pneg %p158
    %p165 = scmp.eq.s32.totalorder %s13, 1
    %p166 = por %p164, %p165
    %p167 = scmp.ne.s32.totalorder %s159, %s162
    %p168 = scmp.eq.s32.totalorder %s13, 0
    %p169 = por %p167, %p168
    %p170 = scmp.ne.s32.totalorder %s159, %s162
    %p171 = scmp.eq.s32.totalorder %s18, 1
    %p172 = por %p170, %p171
    %p173 = scmp.ne.s32.totalorder %s162, %s163
    %p174 = scmp.eq.s32.totalorder %s18, 0
    %p175 = por %p173, %p174
    %p176 = scmp.ne.s32.totalorder %s162, %s163
    %p177 = scmp.eq.s32.totalorder %s19, 1
    %p178 = por %p176, %p177
    %p180 = scmp.ne.s32.totalorder %s163, %s179
    %p181 = scmp.eq.s32.totalorder %s19, 0
    %p182 = por %p180, %p181
    %p183 = scmp.le.s32.totalorder 1, %s13
    %p184 = scmp.lt.s32.totalorder %s13, 3
    %p185 = pnand %p183, %p184
    %p186 = pneg %p185
    // Predicated region
    $region9: #{att_model_forward.1} parent=5 // pred_check
      _
    $region10: #{att_model_forward.1} parent=5 // pred_check_branch
      %188 = sbr.rel (%p185) target = $region12
    $region11: #{att_model_forward.1} parent=5 // pred_region
      %s189 = ssub.s32 %s13, 1
      // Predicated region
      $region13: #{att_model_forward.1} parent=11 // pred_check
        %p190 = pneg %p60
      $region14: #{att_model_forward.1} parent=11 // pred_check_branch
        %192 = sbr.rel (%p190) target = $region16
      $region15: #{att_model_forward.1} parent=11 // pred_region
        _
      $region16: #{att_model_forward.1} parent=11 // pred_fallthru
        _
      // Predicated region
      $region17: #{att_model_forward.1} parent=11 // pred_check
        %p193 = pneg %p81
      $region18: #{att_model_forward.1} parent=11 // pred_check_branch
        %195 = sbr.rel (%p193) target = $region20
      $region19: #{att_model_forward.1} parent=11 // pred_region
        _
      $region20: #{att_model_forward.1} parent=11 // pred_fallthru
        _
      // Predicated region
      $region21: #{att_model_forward.1} parent=11 // pred_check
        %p196 = pneg %p102
      $region22: #{att_model_forward.1} parent=11 // pred_check_branch
        %198 = sbr.rel (%p196) target = $region24
      $region23: #{att_model_forward.1} parent=11 // pred_region
        _
      $region24: #{att_model_forward.1} parent=11 // pred_fallthru
        _
      // Predicated region
      $region25: #{att_model_forward.1} parent=11 // pred_check
        %p199 = pneg %p123
      $region26: #{att_model_forward.1} parent=11 // pred_check_branch
        %201 = sbr.rel (%p199) target = $region28
      $region27: #{att_model_forward.1} parent=11 // pred_region
        _
      $region28: #{att_model_forward.1} parent=11 // pred_fallthru
        _
    $region12: #{att_model_forward.1} parent=5 // pred_fallthru
      _
    %p202 = scmp.lt.s32.totalorder %s13, 2
    // Predicated region
    $region29: #{att_model_forward.1} parent=5 // pred_check
      %p203 = pneg %p202
    $region30: #{att_model_forward.1} parent=5 // pred_check_branch
      %205 = sbr.rel (%p203) target = $region32
    $region31: #{att_model_forward.1} parent=5 // pred_region
      // Predicated region
      $region33: #{att_model_forward.1} parent=31 // pred_check
        %p206 = pneg %p33
      $region34: #{att_model_forward.1} parent=31 // pred_check_branch
        %208 = sbr.rel (%p206) target = $region36
      $region35: #{att_model_forward.1} parent=31 // pred_region
        %p209 = scmp.lt.s32.totalorder %s13, 1
        %s210 = scalar_select %p209, %s13, 1
        %s211 = smul.addr %s210, 2
        %s212 = smul.addr %s211, 8
        %s213 = scalar_lea.vmem %s0, %s212
      $region36: #{att_model_forward.1} parent=31 // pred_fallthru
        _
    $region32: #{att_model_forward.1} parent=5 // pred_fallthru
      _
    %p214 = scmp.le.s32.totalorder 1, %s13
    %p215 = scmp.lt.s32.totalorder %s13, 3
    %p216 = pnand %p214, %p215
    %p217 = pneg %p216
    // Predicated region
    $region37: #{att_model_forward.1} parent=5 // pred_check
      _
    $region38: #{att_model_forward.1} parent=5 // pred_check_branch
      %219 = sbr.rel (%p216) target = $region40
    $region39: #{att_model_forward.1} parent=5 // pred_region
      %s220 = ssub.s32 %s13, 1
      %p221 = scmp.lt.s32.totalorder %s18, 1
      %s222 = scalar_select %p221, %s18, 1
      %s223 = smul.addr %s222, 2
      %s224 = smul.addr %s223, 8
      %s225 = scalar_lea.vmem %s0, %s224
      %p226 = pneg %p39
      %p227 = pneg %p36
      %p228 = pneg %p60
      %p229 = pneg %p57
      %p230 = pneg %p81
      %p231 = pneg %p78
      %p232 = pneg %p102
      %p233 = pneg %p99
      %p234 = pneg %p123
      %p235 = pneg %p120
      %p236 = pneg %p149
      %p237 = pneg %p146
      %p238 = scmp.lt.s32.totalorder %s18, 1
      %s239 = scalar_select %p238, %s18, 1
      %s240 = smul.addr %s239, 2
      %s241 = smul.addr %s240, 8
      %s242 = scalar_lea.vmem %s5, %s241
      %p243 = pneg %p175
      %p244 = pneg %p172
      %p245 = scmp.lt.s32.totalorder %s18, 1
      %s246 = scalar_select %p245, %s18, 1
      %s247 = smul.addr %s246, 16
      %s248 = smul.addr %s247, 8
      %s249 = scalar_lea.vmem %s6, %s248
      %p250 = scmp.lt.s32.totalorder %s18, 1
      %s251 = scalar_select %p250, %s18, 1
      %s252 = smul.addr %s251, 2
      %s253 = smul.addr %s252, 8
      %s254 = scalar_lea.vmem %s0, %s253
      %p255 = scmp.lt.s32.totalorder %s18, 1
      %s256 = scalar_select %p255, %s18, 1
      %s257 = smul.addr %s256, 2
      %s258 = smul.addr %s257, 8
      %s259 = scalar_lea.vmem %s5, %s258
      %p260 = scmp.lt.s32.totalorder %s18, 1
      %s261 = scalar_select %p260, %s18, 1
      %s262 = smul.addr %s261, 16
      %s263 = smul.addr %s262, 8
      %s264 = scalar_lea.vmem %s6, %s263
      %v265 = vld [vmem:[%s254] sm:$0xff]
      %v266 = vld [vmem:[%s254 + $0x8] sm:$0x3f]
      %v267 = vld [vmem:[%s1] sm:$0x1]
      %v268 = vld [vmem:[%s1 + $0x1] sm:$0x1]
      %vm269 = vcmask 261120
      %v270 = vsel %vm269, %v265, 0.0
      %271 = vadd.xlane.f32.xlu0 %v270
      %v272 = vpop.xlane.xlu0 %271
      %vm273 = vcmask 259072
      %v274 = vsel %vm273, %v266, 0.0
      %275 = vadd.xlane.f32.xlu0 %v274
      %v276 = vpop.xlane.xlu0 %275
      %v277 = vrcp.pop 32.0
      %v278 = vmul.f32 %v272, %v277
      %v279 = vmul.f32 %v276, %v277
      %v280 = vsub.f32 %v265, %v278
      %v281 = vsub.f32 %v266, %v279
      %v282 = vmul.f32 %v280, %v280
      %v283 = vmul.f32 %v281, %v281
      %v284 = vsel %vm269, %v282, 0.0
      %285 = vadd.xlane.f32.xlu0 %v284
      %v286 = vpop.xlane.xlu0 %285
      %v287 = vsel %vm273, %v283, 0.0
      %288 = vadd.xlane.f32.xlu0 %v287
      %v289 = vpop.xlane.xlu0 %288
      %v290 = vmul.f32 %v286, %v277
      %v291 = vmul.f32 %v289, %v277
      %v292 = vadd.f32 %v290, 1e-05
      %v293 = vadd.f32 %v291, 1e-05
      %v294 = vrsqrt.pop %v292
      %v295 = vrsqrt.pop %v293
      %v296 = vmul.f32 %v280, %v294
      %v297 = vmul.f32 %v281, %v295
      %v298 = vlaneseq
      %v299 = vshrl.u32 %v298, 7
      %v300 = vsub.s32 0, %v299
      %v301 = vrot.slane %v267, %v300
      %v302 = vmul.f32 %v296, %v301
      %v303 = vmul.f32 %v297, %v301
      %v304 = vlaneseq
      %v305 = vshrl.u32 %v304, 7
      %v306 = vsub.s32 0, %v305
      %v307 = vrot.slane %v268, %v306
      %v308 = vadd.f32 %v302, %v307
      %v309 = vadd.f32 %v303, %v307
      %v310 = vld [vmem:[%s2] sm:$0xff]
      %v311 = vld [vmem:[%s2 + $0x8] sm:$0xff]
      %v312 = vld [vmem:[%s2 + $0x10] sm:$0xff]
      %v313 = vld [vmem:[%s2 + $0x18] sm:$0xff]
      %v315 = vsel %vm269, %v308, 0
      %v318 = vsel %vm269, %v309, 0
      %320 = vmatprep.subr.mxu0 0.0
      %321 = vmatpush1.msra.mxu0 %v310
      %322 = vmatprep.subr.mxu0 0.0
      %323 = vmatpush1.msra.mxu0 %v311
      %324 = vmatprep.subr.mxu0 0.0
      %325 = vmatpush1.msra.mxu0 %v312
      %326 = vmatprep.subr.mxu0 0.0
      %327 = vmatpush1.msra.mxu0 %v313
      %328 = vmatprep.subr.mxu0 0.0
      %329 = vmatpush1.msra.mxu0 0.0
      %330 = vmatprep.subr.mxu0 0.0
      %331 = vmatpush1.msra.mxu0 0.0
      %332 = vmatprep.subr.mxu0 0.0
      %333 = vmatpush1.msra.mxu0 0.0
      %334 = vmatprep.subr.mxu0 0.0
      %335 = vmatpush1.msra.mxu0 0.0
      %336 = vmatprep.subr.mxu0 0.0
      %337 = vmatpush1.msra.mxu0 0.0
      %338 = vmatprep.subr.mxu0 0.0
      %339 = vmatpush1.msra.mxu0 0.0
      %340 = vmatprep.subr.mxu0 0.0
      %341 = vmatpush1.msra.mxu0 0.0
      %342 = vmatprep.subr.mxu0 0.0
      %343 = vmatpush1.msra.mxu0 0.0
      %344 = vmatprep.subr.mxu0 0.0
      %345 = vmatpush1.msra.mxu0 0.0
      %346 = vmatprep.subr.mxu0 0.0
      %347 = vmatpush1.msra.mxu0 0.0
      %348 = vmatprep.subr.mxu0 0.0
      %349 = vmatpush1.msra.mxu0 0.0
      %350 = vmatprep.subr.mxu0 0.0
      %351 = vmatpush1.msra.mxu0 0.0
      %352 = vmatprep.subr.mxu0 0.0
      %353 = vmatpush1.msra.mxu0 0.0
      %354 = vmatprep.subr.mxu0 0.0
      %355 = vmatpush1.msra.mxu0 0.0
      %356 = vmatprep.subr.mxu0 0.0
      %357 = vmatpush1.msra.mxu0 0.0
      %358 = vmatprep.subr.mxu0 0.0
      %359 = vmatpush1.msra.mxu0 0.0
      %360 = vmatprep.subr.mxu0 0.0
      %361 = vmatpush1.msra.mxu0 0.0
      %362 = vmatprep.subr.mxu0 0.0
      %363 = vmatpush1.msra.mxu0 0.0
      %364 = vmatprep.subr.mxu0 0.0
      %365 = vmatpush1.msra.mxu0 0.0
      %366 = vmatprep.subr.mxu0 0.0
      %367 = vmatpush1.msra.mxu0 0.0
      %368 = vmatprep.subr.mxu0 0.0
      %369 = vmatpush1.msra.mxu0 0.0
      %370 = vmatprep.subr.mxu0 0.0
      %371 = vmatpush1.msra.mxu0 0.0
      %372 = vmatprep.subr.mxu0 0.0
      %373 = vmatpush1.msra.mxu0 0.0
      %374 = vmatprep.subr.mxu0 0.0
      %375 = vmatpush1.msra.mxu0 0.0
      %376 = vmatprep.subr.mxu0 0.0
      %377 = vmatpush1.msra.mxu0 0.0
      %378 = vmatprep.subr.mxu0 0.0
      %379 = vmatpush1.msra.mxu0 0.0
      %380 = vmatprep.subr.mxu0 0.0
      %381 = vmatpush1.msra.mxu0 0.0
      %382 = vmatprep.subr.mxu0 0.0
      %383 = vmatpush1.msra.mxu0 0.0
      %384 = vmatprep.mubr.f32.mxu0 0.0
      %385 = vmatmul.mubr.f32.gmra.mrb[0].mxu0 %v315
      %v386 = vpop.f32.mrb[0].mxu0
      %v387 = vadd.f32 0.0, %v386
      %v388 = vpop.f32.mrb[0].mxu0
      %389 = vmatprep.mubr.f32.mxu0 0.0
      %390 = vmatmul.mubr.f32.gmra.mrb[0].mxu0 %v318
      %v391 = vpop.f32.mrb[0].mxu0
      %v392 = vadd.f32 0.0, %v391
      %v393 = vpop.f32.mrb[0].mxu0
      %394 = vdwg.mxu0
      %v395 = vld [vmem:[%s1 + $0x2] sm:$0x1]
      %v396 = vlaneseq
      %v397 = vshrl.u32 %v396, 7
      %v398 = vsub.s32 0, %v397
      %v399 = vrot.slane %v395, %v398
      %v400 = vadd.f32 %v387, %v399
      %v401 = vadd.f32 %v392, %v399
      %v402 = vld [vmem:[%s1 + $0x3] sm:$0x1]
      %v403 = vlaneseq
      %v404 = vshrl.u32 %v403, 7
      %v405 = vsub.s32 0, %v404
      %v406 = vrot.slane %v402, %v405
      %408 = vrot.lane.b32.xlu0 %v406, 32
      %v409 = vpop.permute.xlu0 %408
      %v411 = vadd.f32 %v387, %v409
      %v412 = vadd.f32 %v392, %v409
      %v413 = vld [vmem:[%s1 + $0x4] sm:$0x1]
      %v414 = vlaneseq
      %v415 = vshrl.u32 %v414, 7
      %v416 = vsub.s32 0, %v415
      %v417 = vrot.slane %v413, %v416
      %419 = vrot.lane.b32.xlu0 %v417, 64
      %v420 = vpop.permute.xlu0 %419
      %v422 = vadd.f32 %v387, %v420
      %v423 = vadd.f32 %v392, %v420
      %426 = vrot.lane.b32.xlu0 %v411, 96
      %v427 = vpop.permute.xlu0 %426
      %428 = vrot.lane.b32.xlu0 %v412, 96
      %v429 = vpop.permute.xlu0 %428
      %vm430 = vcmask 64512
      %v432 = vsel %vm430, %v400, 0
      %v435 = vsel %vm430, %v401, 0
      %v437 = vsel %vm430, %v427, 0
      %v439 = vsel %vm430, %v429, 0
      %441 = vmatprep.subr.mxu0 0.0
      %442 = vmatpush1.xpose.msra.mxu0 %v437
      %443 = vmatprep.subr.mxu0 0.0
      %444 = vmatpush1.xpose.msra.mxu0 %v439
      %445 = vmatprep.subr.mxu0 0.0
      %446 = vmatpush1.xpose.msra.mxu0 0.0
      %447 = vmatprep.subr.mxu0 0.0
      %448 = vmatpush1.xpose.msra.mxu0 0.0
      %449 = vmatprep.subr.mxu0 0.0
      %450 = vmatpush1.xpose.msra.mxu0 0.0
      %451 = vmatprep.subr.mxu0 0.0
      %452 = vmatpush1.xpose.msra.mxu0 0.0
      %453 = vmatprep.subr.mxu0 0.0
      %454 = vmatpush1.xpose.msra.mxu0 0.0
      %455 = vmatprep.subr.mxu0 0.0
      %456 = vmatpush1.xpose.msra.mxu0 0.0
      %457 = vmatprep.subr.mxu0 0.0
      %458 = vmatpush1.xpose.msra.mxu0 0.0
      %459 = vmatprep.subr.mxu0 0.0
      %460 = vmatpush1.xpose.msra.mxu0 0.0
      %461 = vmatprep.subr.mxu0 0.0
      %462 = vmatpush1.xpose.msra.mxu0 0.0
      %463 = vmatprep.subr.mxu0 0.0
      %464 = vmatpush1.xpose.msra.mxu0 0.0
      %465 = vmatprep.subr.mxu0 0.0
      %466 = vmatpush1.xpose.msra.mxu0 0.0
      %467 = vmatprep.subr.mxu0 0.0
      %468 = vmatpush1.xpose.msra.mxu0 0.0
      %469 = vmatprep.subr.mxu0 0.0
      %470 = vmatpush1.xpose.msra.mxu0 0.0
      %471 = vmatprep.subr.mxu0 0.0
      %472 = vmatpush1.xpose.msra.mxu0 0.0
      %473 = vmatprep.subr.mxu0 0.0
      %474 = vmatpush1.xpose.msra.mxu0 0.0
      %475 = vmatprep.subr.mxu0 0.0
      %476 = vmatpush1.xpose.msra.mxu0 0.0
      %477 = vmatprep.subr.mxu0 0.0
      %478 = vmatpush1.xpose.msra.mxu0 0.0
      %479 = vmatprep.subr.mxu0 0.0
      %480 = vmatpush1.xpose.msra.mxu0 0.0
      %481 = vmatprep.subr.mxu0 0.0
      %482 = vmatpush1.xpose.msra.mxu0 0.0
      %483 = vmatprep.subr.mxu0 0.0
      %484 = vmatpush1.xpose.msra.mxu0 0.0
      %485 = vmatprep.subr.mxu0 0.0
      %486 = vmatpush1.xpose.msra.mxu0 0.0
      %487 = vmatprep.subr.mxu0 0.0
      %488 = vmatpush1.xpose.msra.mxu0 0.0
      %489 = vmatprep.subr.mxu0 0.0
      %490 = vmatpush1.xpose.msra.mxu0 0.0
      %491 = vmatprep.subr.mxu0 0.0
      %492 = vmatpush1.xpose.msra.mxu0 0.0
      %493 = vmatprep.subr.mxu0 0.0
      %494 = vmatpush1.xpose.msra.mxu0 0.0
      %495 = vmatprep.subr.mxu0 0.0
      %496 = vmatpush1.xpose.msra.mxu0 0.0
      %497 = vmatprep.subr.mxu0 0.0
      %498 = vmatpush1.xpose.msra.mxu0 0.0
      %499 = vmatprep.subr.mxu0 0.0
      %500 = vmatpush1.xpose.msra.mxu0 0.0
      %501 = vmatprep.subr.mxu0 0.0
      %502 = vmatpush1.xpose.msra.mxu0 0.0
      %503 = vmatprep.subr.mxu0 0.0
      %504 = vmatpush1.xpose.msra.mxu0 0.0
      %505 = vmatprep.mubr.f32.mxu0 0.0
      %506 = vmatmul.mubr.f32.gmra.mrb[0].mxu0 %v432
      %v507 = vpop.f32.mrb[0].mxu0
      %v508 = vadd.f32 0.0, %v507
      %v509 = vpop.f32.mrb[0].mxu0
      %510 = vmatprep.mubr.f32.mxu0 0.0
      %511 = vmatmul.mubr.f32.gmra.mrb[0].mxu0 %v435
      %v512 = vpop.f32.mrb[0].mxu0
      %v513 = vadd.f32 0.0, %v512
      %v514 = vpop.f32.mrb[0].mxu0
      %515 = vdwg.mxu0
      %v516 = vmul.f32 %v508, 0.35355338
      %v517 = vmul.f32 %v513, 0.35355338
      %vm518 = vcmask 113664
      %v519 = vsel %vm518, %v516, -inf
      %520 = vmax.xlane.f32.xlu0 %v519
      %v521 = vpop.xlane.xlu0 %520
      %vm522 = vcmask 111616
      %v523 = vsel %vm522, %v517, -inf
      %524 = vmax.xlane.f32.xlu0 %v523
      %v525 = vpop.xlane.xlu0 %524
      %v526 = vsub.f32 %v516, %v521
      %v527 = vsub.f32 %v517, %v525
      %v528 = vmul.f32 %v526, 1.442695
      %v529 = vpow.pop %v528
      %v530 = vmul.f32 %v527, 1.442695
      %v531 = vpow.pop %v530
      %v532 = vsel %vm518, %v529, 0.0
      %533 = vadd.xlane.f32.xlu0 %v532
      %v534 = vpop.xlane.xlu0 %533
      %v535 = vsel %vm522, %v531, 0.0
      %536 = vadd.xlane.f32.xlu0 %v535
      %v537 = vpop.xlane.xlu0 %536
      %v538 = vrcp.pop %v534
      %v539 = vmul.f32 %v529, %v538
      %v540 = vrcp.pop %v537
      %v541 = vmul.f32 %v531, %v540
      %542 = vst.msk [vmem:[%s264] sm:$0xff] %vm518, %v539
      %543 = vst.msk [vmem:[%s264 + $0x8] sm:$0x3f] %vm522, %v541
      %546 = vrot.lane.b32.xlu0 %v422, 64
      %v547 = vpop.permute.xlu0 %546
      %548 = vrot.lane.b32.xlu0 %v423, 64
      %v549 = vpop.permute.xlu0 %548
      %v552 = vsel %vm518, %v539, 0
      %v555 = vsel %vm518, %v541, 0
      %vm557 = vcmask 1045504
      %v558 = vsel %vm557, %v549, 0
      %560 = vmatprep.subr.mxu0 0.0
      %561 = vmatpush1.msra.mxu0 %v547
      %562 = vmatprep.subr.mxu0 0.0
      %563 = vmatpush1.msra.mxu0 %v558
      %564 = vmatprep.subr.mxu0 0.0
      %565 = vmatpush1.msra.mxu0 0.0
      %566 = vmatprep.subr.mxu0 0.0
      %567 = vmatpush1.msra.mxu0 0.0
      %568 = vmatprep.subr.mxu0 0.0
      %569 = vmatpush1.msra.mxu0 0.0
      %570 = vmatprep.subr.mxu0 0.0
      %571 = vmatpush1.msra.mxu0 0.0
      %572 = vmatprep.subr.mxu0 0.0
      %573 = vmatpush1.msra.mxu0 0.0
      %574 = vmatprep.subr.mxu0 0.0
      %575 = vmatpush1.msra.mxu0 0.0
      %576 = vmatprep.subr.mxu0 0.0
      %577 = vmatpush1.msra.mxu0 0.0
      %578 = vmatprep.subr.mxu0 0.0
      %579 = vmatpush1.msra.mxu0 0.0
      %580 = vmatprep.subr.mxu0 0.0
      %581 = vmatpush1.msra.mxu0 0.0
      %582 = vmatprep.subr.mxu0 0.0
      %583 = vmatpush1.msra.mxu0 0.0
      %584 = vmatprep.subr.mxu0 0.0
      %585 = vmatpush1.msra.mxu0 0.0
      %586 = vmatprep.subr.mxu0 0.0
      %587 = vmatpush1.msra.mxu0 0.0
      %588 = vmatprep.subr.mxu0 0.0
      %589 = vmatpush1.msra.mxu0 0.0
      %590 = vmatprep.subr.mxu0 0.0
      %591 = vmatpush1.msra.mxu0 0.0
      %592 = vmatprep.subr.mxu0 0.0
      %593 = vmatpush1.msra.mxu0 0.0
      %594 = vmatprep.subr.mxu0 0.0
      %595 = vmatpush1.msra.mxu0 0.0
      %596 = vmatprep.subr.mxu0 0.0
      %597 = vmatpush1.msra.mxu0 0.0
      %598 = vmatprep.subr.mxu0 0.0
      %599 = vmatpush1.msra.mxu0 0.0
      %600 = vmatprep.subr.mxu0 0.0
      %601 = vmatpush1.msra.mxu0 0.0
      %602 = vmatprep.subr.mxu0 0.0
      %603 = vmatpush1.msra.mxu0 0.0
      %604 = vmatprep.subr.mxu0 0.0
      %605 = vmatpush1.msra.mxu0 0.0
      %606 = vmatprep.subr.mxu0 0.0
      %607 = vmatpush1.msra.mxu0 0.0
      %608 = vmatprep.subr.mxu0 0.0
      %609 = vmatpush1.msra.mxu0 0.0
      %610 = vmatprep.subr.mxu0 0.0
      %611 = vmatpush1.msra.mxu0 0.0
      %612 = vmatprep.subr.mxu0 0.0
      %613 = vmatpush1.msra.mxu0 0.0
      %614 = vmatprep.subr.mxu0 0.0
      %615 = vmatpush1.msra.mxu0 0.0
      %616 = vmatprep.subr.mxu0 0.0
      %617 = vmatpush1.msra.mxu0 0.0
      %618 = vmatprep.subr.mxu0 0.0
      %619 = vmatpush1.msra.mxu0 0.0
      %620 = vmatprep.subr.mxu0 0.0
      %621 = vmatpush1.msra.mxu0 0.0
      %622 = vmatprep.subr.mxu0 0.0
      %623 = vmatpush1.msra.mxu0 0.0
      %624 = vmatprep.mubr.f32.mxu0 0.0
      %625 = vmatmul.mubr.f32.gmra.mrb[0].mxu0 %v552
      %v626 = vpop.f32.mrb[0].mxu0
      %v627 = vadd.f32 0.0, %v626
      %v628 = vpop.f32.mrb[0].mxu0
      %629 = vmatprep.mubr.f32.mxu0 0.0
      %630 = vmatmul.mubr.f32.gmra.mrb[0].mxu0 %v555
      %v631 = vpop.f32.mrb[0].mxu0
      %v632 = vadd.f32 0.0, %v631
      %v633 = vpop.f32.mrb[0].mxu0
      %634 = vdwg.mxu0
      %635 = vrot.lane.b32.xlu0 %v400, 120
      %v636 = vpop.permute.xlu0 %635
      %637 = vrot.lane.b32.xlu0 %v401, 120
      %v638 = vpop.permute.xlu0 %637
      %639 = vrot.lane.b32.xlu0 %v411, 88
      %v640 = vpop.permute.xlu0 %639
      %641 = vrot.lane.b32.xlu0 %v412, 88
      %v642 = vpop.permute.xlu0 %641
      %v643 = vsel %vm430, %v636, 0
      %v645 = vsel %vm430, %v638, 0
      %v647 = vsel %vm430, %v640, 0
      %v649 = vsel %vm430, %v642, 0
      %651 = vmatprep.subr.mxu0 0.0
      %652 = vmatpush1.xpose.msra.mxu0 %v647
      %653 = vmatprep.subr.mxu0 0.0
      %654 = vmatpush1.xpose.msra.mxu0 %v649
      %655 = vmatprep.subr.mxu0 0.0
      %656 = vmatpush1.xpose.msra.mxu0 0.0
      %657 = vmatprep.subr.mxu0 0.0
      %658 = vmatpush1.xpose.msra.mxu0 0.0
      %659 = vmatprep.subr.mxu0 0.0
      %660 = vmatpush1.xpose.msra.mxu0 0.0
      %661 = vmatprep.subr.mxu0 0.0
      %662 = vmatpush1.xpose.msra.mxu0 0.0
      %663 = vmatprep.subr.mxu0 0.0
      %664 = vmatpush1.xpose.msra.mxu0 0.0
      %665 = vmatprep.subr.mxu0 0.0
      %666 = vmatpush1.xpose.msra.mxu0 0.0
      %667 = vmatprep.subr.mxu0 0.0
      %668 = vmatpush1.xpose.msra.mxu0 0.0
      %669 = vmatprep.subr.mxu0 0.0
      %670 = vmatpush1.xpose.msra.mxu0 0.0
      %671 = vmatprep.subr.mxu0 0.0
      %672 = vmatpush1.xpose.msra.mxu0 0.0
      %673 = vmatprep.subr.mxu0 0.0
      %674 = vmatpush1.xpose.msra.mxu0 0.0
      %675 = vmatprep.subr.mxu0 0.0
      %676 = vmatpush1.xpose.msra.mxu0 0.0
      %677 = vmatprep.subr.mxu0 0.0
      %678 = vmatpush1.xpose.msra.mxu0 0.0
      %679 = vmatprep.subr.mxu0 0.0
      %680 = vmatpush1.xpose.msra.mxu0 0.0
      %681 = vmatprep.subr.mxu0 0.0
      %682 = vmatpush1.xpose.msra.mxu0 0.0
      %683 = vmatprep.subr.mxu0 0.0
      %684 = vmatpush1.xpose.msra.mxu0 0.0
      %685 = vmatprep.subr.mxu0 0.0
      %686 = vmatpush1.xpose.msra.mxu0 0.0
      %687 = vmatprep.subr.mxu0 0.0
      %688 = vmatpush1.xpose.msra.mxu0 0.0
      %689 = vmatprep.subr.mxu0 0.0
      %690 = vmatpush1.xpose.msra.mxu0 0.0
      %691 = vmatprep.subr.mxu0 0.0
      %692 = vmatpush1.xpose.msra.mxu0 0.0
      %693 = vmatprep.subr.mxu0 0.0
      %694 = vmatpush1.xpose.msra.mxu0 0.0
      %695 = vmatprep.subr.mxu0 0.0
      %696 = vmatpush1.xpose.msra.mxu0 0.0
      %697 = vmatprep.subr.mxu0 0.0
      %698 = vmatpush1.xpose.msra.mxu0 0.0
      %699 = vmatprep.subr.mxu0 0.0
      %700 = vmatpush1.xpose.msra.mxu0 0.0
      %701 = vmatprep.subr.mxu0 0.0
      %702 = vmatpush1.xpose.msra.mxu0 0.0
      %703 = vmatprep.subr.mxu0 0.0
      %704 = vmatpush1.xpose.msra.mxu0 0.0
      %705 = vmatprep.subr.mxu0 0.0
      %706 = vmatpush1.xpose.msra.mxu0 0.0
      %707 = vmatprep.subr.mxu0 0.0
      %708 = vmatpush1.xpose.msra.mxu0 0.0
      %709 = vmatprep.subr.mxu0 0.0
      %710 = vmatpush1.xpose.msra.mxu0 0.0
      %711 = vmatprep.subr.mxu0 0.0
      %712 = vmatpush1.xpose.msra.mxu0 0.0
      %713 = vmatprep.subr.mxu0 0.0
      %714 = vmatpush1.xpose.msra.mxu0 0.0
      %715 = vmatprep.mubr.f32.mxu0 0.0
      %716 = vmatmul.mubr.f32.gmra.mrb[0].mxu0 %v643
      %v717 = vpop.f32.mrb[0].mxu0
      %v718 = vadd.f32 0.0, %v717
      %v719 = vpop.f32.mrb[0].mxu0
      %720 = vmatprep.mubr.f32.mxu0 0.0
      %721 = vmatmul.mubr.f32.gmra.mrb[0].mxu0 %v645
      %v722 = vpop.f32.mrb[0].mxu0
      %v723 = vadd.f32 0.0, %v722
      %v724 = vpop.f32.mrb[0].mxu0
      %725 = vdwg.mxu0
      %v726 = vmul.f32 %v718, 0.35355338
      %v727 = vmul.f32 %v723, 0.35355338
      %v728 = vsel %vm518, %v726, -inf
      %729 = vmax.xlane.f32.xlu0 %v728
      %v730 = vpop.xlane.xlu0 %729
      %v731 = vsel %vm522, %v727, -inf
      %732 = vmax.xlane.f32.xlu0 %v731
      %v733 = vpop.xlane.xlu0 %732
      %v734 = vsub.f32 %v726, %v730
      %v735 = vsub.f32 %v727, %v733
      %v736 = vmul.f32 %v734, 1.442695
      %v737 = vpow.pop %v736
      %v738 = vmul.f32 %v735, 1.442695
      %v739 = vpow.pop %v738
      %v740 = vsel %vm518, %v737, 0.0
      %741 = vadd.xlane.f32.xlu0 %v740
      %v742 = vpop.xlane.xlu0 %741
      %v743 = vsel %vm522, %v739, 0.0
      %744 = vadd.xlane.f32.xlu0 %v743
      %v745 = vpop.xlane.xlu0 %744
      %v746 = vrcp.pop %v742
      %v747 = vmul.f32 %v737, %v746
      %v748 = vrcp.pop %v745
      %v749 = vmul.f32 %v739, %v748
      %s750 = scalar_lea.vmem %s264, 16
      %751 = vst.msk [vmem:[%s750] sm:$0xff] %vm518, %v747
      %752 = vst.msk [vmem:[%s750 + $0x8] sm:$0x3f] %vm522, %v749
      %753 = vrot.lane.b32.xlu0 %v422, 56
      %v754 = vpop.permute.xlu0 %753
      %755 = vrot.lane.b32.xlu0 %v423, 56
      %v756 = vpop.permute.xlu0 %755
      %v759 = vsel %vm518, %v747, 0
      %v762 = vsel %vm518, %v749, 0
      %v764 = vsel %vm557, %v756, 0
      %766 = vmatprep.subr.mxu0 0.0
      %767 = vmatpush1.msra.mxu0 %v754
      %768 = vmatprep.subr.mxu0 0.0
      %769 = vmatpush1.msra.mxu0 %v764
      %770 = vmatprep.subr.mxu0 0.0
      %771 = vmatpush1.msra.mxu0 0.0
      %772 = vmatprep.subr.mxu0 0.0
      %773 = vmatpush1.msra.mxu0 0.0
      %774 = vmatprep.subr.mxu0 0.0
      %775 = vmatpush1.msra.mxu0 0.0
      %776 = vmatprep.subr.mxu0 0.0
      %777 = vmatpush1.msra.mxu0 0.0
      %778 = vmatprep.subr.mxu0 0.0
      %779 = vmatpush1.msra.mxu0 0.0
      %780 = vmatprep.subr.mxu0 0.0
      %781 = vmatpush1.msra.mxu0 0.0
      %782 = vmatprep.subr.mxu0 0.0
      %783 = vmatpush1.msra.mxu0 0.0
      %784 = vmatprep.subr.mxu0 0.0
      %785 = vmatpush1.msra.mxu0 0.0
      %786 = vmatprep.subr.mxu0 0.0
      %787 = vmatpush1.msra.mxu0 0.0
      %788 = vmatprep.subr.mxu0 0.0
      %789 = vmatpush1.msra.mxu0 0.0
      %790 = vmatprep.subr.mxu0 0.0
      %791 = vmatpush1.msra.mxu0 0.0
      %792 = vmatprep.subr.mxu0 0.0
      %793 = vmatpush1.msra.mxu0 0.0
      %794 = vmatprep.subr.mxu0 0.0
      %795 = vmatpush1.msra.mxu0 0.0
      %796 = vmatprep.subr.mxu0 0.0
      %797 = vmatpush1.msra.mxu0 0.0
      %798 = vmatprep.subr.mxu0 0.0
      %799 = vmatpush1.msra.mxu0 0.0
      %800 = vmatprep.subr.mxu0 0.0
      %801 = vmatpush1.msra.mxu0 0.0
      %802 = vmatprep.subr.mxu0 0.0
      %803 = vmatpush1.msra.mxu0 0.0
      %804 = vmatprep.subr.mxu0 0.0
      %805 = vmatpush1.msra.mxu0 0.0
      %806 = vmatprep.subr.mxu0 0.0
      %807 = vmatpush1.msra.mxu0 0.0
      %808 = vmatprep.subr.mxu0 0.0
      %809 = vmatpush1.msra.mxu0 0.0
      %810 = vmatprep.subr.mxu0 0.0
      %811 = vmatpush1.msra.mxu0 0.0
      %812 = vmatprep.subr.mxu0 0.0
      %813 = vmatpush1.msra.mxu0 0.0
      %814 = vmatprep.subr.mxu0 0.0
      %815 = vmatpush1.msra.mxu0 0.0
      %816 = vmatprep.subr.mxu0 0.0
      %817 = vmatpush1.msra.mxu0 0.0
      %818 = vmatprep.subr.mxu0 0.0
      %819 = vmatpush1.msra.mxu0 0.0
      %820 = vmatprep.subr.mxu0 0.0
      %821 = vmatpush1.msra.mxu0 0.0
      %822 = vmatprep.subr.mxu0 0.0
      %823 = vmatpush1.msra.mxu0 0.0
      %824 = vmatprep.subr.mxu0 0.0
      %825 = vmatpush1.msra.mxu0 0.0
      %826 = vmatprep.subr.mxu0 0.0
      %827 = vmatpush1.msra.mxu0 0.0
      %828 = vmatprep.subr.mxu0 0.0
      %829 = vmatpush1.msra.mxu0 0.0
      %830 = vmatprep.mubr.f32.mxu0 0.0
      %831 = vmatmul.mubr.f32.gmra.mrb[0].mxu0 %v759
      %v832 = vpop.f32.mrb[0].mxu0
      %v833 = vadd.f32 0.0, %v832
      %v834 = vpop.f32.mrb[0].mxu0
      %835 = vmatprep.mubr.f32.mxu0 0.0
      %836 = vmatmul.mubr.f32.gmra.mrb[0].mxu0 %v762
      %v837 = vpop.f32.mrb[0].mxu0
      %v838 = vadd.f32 0.0, %v837
      %v839 = vpop.f32.mrb[0].mxu0
      %840 = vdwg.mxu0
      %841 = vrot.lane.b32.xlu0 %v400, 112
      %v842 = vpop.permute.xlu0 %841
      %843 = vrot.lane.b32.xlu0 %v401, 112
      %v844 = vpop.permute.xlu0 %843
      %845 = vrot.lane.b32.xlu0 %v411, 80
      %v846 = vpop.permute.xlu0 %845
      %847 = vrot.lane.b32.xlu0 %v412, 80
      %v848 = vpop.permute.xlu0 %847
      %v849 = vsel %vm430, %v842, 0
      %v851 = vsel %vm430, %v844, 0
      %v853 = vsel %vm430, %v846, 0
      %v855 = vsel %vm430, %v848, 0
      %857 = vmatprep.subr.mxu0 0.0
      %858 = vmatpush1.xpose.msra.mxu0 %v853
      %859 = vmatprep.subr.mxu0 0.0
      %860 = vmatpush1.xpose.msra.mxu0 %v855
      %861 = vmatprep.subr.mxu0 0.0
      %862 = vmatpush1.xpose.msra.mxu0 0.0
      %863 = vmatprep.subr.mxu0 0.0
      %864 = vmatpush1.xpose.msra.mxu0 0.0
      %865 = vmatprep.subr.mxu0 0.0
      %866 = vmatpush1.xpose.msra.mxu0 0.0
      %867 = vmatprep.subr.mxu0 0.0
      %868 = vmatpush1.xpose.msra.mxu0 0.0
      %869 = vmatprep.subr.mxu0 0.0
      %870 = vmatpush1.xpose.msra.mxu0 0.0
      %871 = vmatprep.subr.mxu0 0.0
      %872 = vmatpush1.xpose.msra.mxu0 0.0
      %873 = vmatprep.subr.mxu0 0.0
      %874 = vmatpush1.xpose.msra.mxu0 0.0
      %875 = vmatprep.subr.mxu0 0.0
      %876 = vmatpush1.xpose.msra.mxu0 0.0
      %877 = vmatprep.subr.mxu0 0.0
      %878 = vmatpush1.xpose.msra.mxu0 0.0
      %879 = vmatprep.subr.mxu0 0.0
      %880 = vmatpush1.xpose.msra.mxu0 0.0
      %881 = vmatprep.subr.mxu0 0.0
      %882 = vmatpush1.xpose.msra.mxu0 0.0
      %883 = vmatprep.subr.mxu0 0.0
      %884 = vmatpush1.xpose.msra.mxu0 0.0
      %885 = vmatprep.subr.mxu0 0.0
      %886 = vmatpush1.xpose.msra.mxu0 0.0
      %887 = vmatprep.subr.mxu0 0.0
      %888 = vmatpush1.xpose.msra.mxu0 0.0
      %889 = vmatprep.subr.mxu0 0.0
      %890 = vmatpush1.xpose.msra.mxu0 0.0
      %891 = vmatprep.subr.mxu0 0.0
      %892 = vmatpush1.xpose.msra.mxu0 0.0
      %893 = vmatprep.subr.mxu0 0.0
      %894 = vmatpush1.xpose.msra.mxu0 0.0
      %895 = vmatprep.subr.mxu0 0.0
      %896 = vmatpush1.xpose.msra.mxu0 0.0
      %897 = vmatprep.subr.mxu0 0.0
      %898 = vmatpush1.xpose.msra.mxu0 0.0
      %899 = vmatprep.subr.mxu0 0.0
      %900 = vmatpush1.xpose.msra.mxu0 0.0
      %901 = vmatprep.subr.mxu0 0.0
      %902 = vmatpush1.xpose.msra.mxu0 0.0
      %903 = vmatprep.subr.mxu0 0.0
      %904 = vmatpush1.xpose.msra.mxu0 0.0
      %905 = vmatprep.subr.mxu0 0.0
      %906 = vmatpush1.xpose.msra.mxu0 0.0
      %907 = vmatprep.subr.mxu0 0.0
      %908 = vmatpush1.xpose.msra.mxu0 0.0
      %909 = vmatprep.subr.mxu0 0.0
      %910 = vmatpush1.xpose.msra.mxu0 0.0
      %911 = vmatprep.subr.mxu0 0.0
      %912 = vmatpush1.xpose.msra.mxu0 0.0
      %913 = vmatprep.subr.mxu0 0.0
      %914 = vmatpush1.xpose.msra.mxu0 0.0
      %915 = vmatprep.subr.mxu0 0.0
      %916 = vmatpush1.xpose.msra.mxu0 0.0
      %917 = vmatprep.subr.mxu0 0.0
      %918 = vmatpush1.xpose.msra.mxu0 0.0
      %919 = vmatprep.subr.mxu0 0.0
      %920 = vmatpush1.xpose.msra.mxu0 0.0
      %921 = vmatprep.mubr.f32.mxu0 0.0
      %922 = vmatmul.mubr.f32.gmra.mrb[0].mxu0 %v849
      %v923 = vpop.f32.mrb[0].mxu0
      %v924 = vadd.f32 0.0, %v923
      %v925 = vpop.f32.mrb[0].mxu0
      %926 = vmatprep.mubr.f32.mxu0 0.0
      %927 = vmatmul.mubr.f32.gmra.mrb[0].mxu0 %v851
      %v928 = vpop.f32.mrb[0].mxu0
      %v929 = vadd.f32 0.0, %v928
      %v930 = vpop.f32.mrb[0].mxu0
      %931 = vdwg.mxu0
      %v932 = vmul.f32 %v924, 0.35355338
      %v933 = vmul.f32 %v929, 0.35355338
      %v934 = vsel %vm518, %v932, -inf
      %935 = vmax.xlane.f32.xlu0 %v934
      %v936 = vpop.xlane.xlu0 %935
      %v937 = vsel %vm522, %v933, -inf
      %938 = vmax.xlane.f32.xlu0 %v937
      %v939 = vpop.xlane.xlu0 %938
      %v940 = vsub.f32 %v932, %v936
      %v941 = vsub.f32 %v933, %v939
      %v942 = vmul.f32 %v940, 1.442695
      %v943 = vpow.pop %v942
      %v944 = vmul.f32 %v941, 1.442695
      %v945 = vpow.pop %v944
      %v946 = vsel %vm518, %v943, 0.0
      %947 = vadd.xlane.f32.xlu0 %v946
      %v948 = vpop.xlane.xlu0 %947
      %v949 = vsel %vm522, %v945, 0.0
      %950 = vadd.xlane.f32.xlu0 %v949
      %v951 = vpop.xlane.xlu0 %950
      %v952 = vrcp.pop %v948
      %v953 = vmul.f32 %v943, %v952
      %v954 = vrcp.pop %v951
      %v955 = vmul.f32 %v945, %v954
      %s956 = scalar_lea.vmem %s264, 32
      %957 = vst.msk [vmem:[%s956] sm:$0xff] %vm518, %v953
      %958 = vst.msk [vmem:[%s956 + $0x8] sm:$0x3f] %vm522, %v955
      %959 = vrot.lane.b32.xlu0 %v422, 48
      %v960 = vpop.permute.xlu0 %959
      %961 = vrot.lane.b32.xlu0 %v423, 48
      %v962 = vpop.permute.xlu0 %961
      %v965 = vsel %vm518, %v953, 0
      %v968 = vsel %vm518, %v955, 0
      %v970 = vsel %vm557, %v962, 0
      %972 = vmatprep.subr.mxu0 0.0
      %973 = vmatpush1.msra.mxu0 %v960
      %974 = vmatprep.subr.mxu0 0.0
      %975 = vmatpush1.msra.mxu0 %v970
      %976 = vmatprep.subr.mxu0 0.0
      %977 = vmatpush1.msra.mxu0 0.0
      %978 = vmatprep.subr.mxu0 0.0
      %979 = vmatpush1.msra.mxu0 0.0
      %980 = vmatprep.subr.mxu0 0.0
      %981 = vmatpush1.msra.mxu0 0.0
      %982 = vmatprep.subr.mxu0 0.0
      %983 = vmatpush1.msra.mxu0 0.0
      %984 = vmatprep.subr.mxu0 0.0
      %985 = vmatpush1.msra.mxu0 0.0
      %986 = vmatprep.subr.mxu0 0.0
      %987 = vmatpush1.msra.mxu0 0.0
      %988 = vmatprep.subr.mxu0 0.0
      %989 = vmatpush1.msra.mxu0 0.0
      %990 = vmatprep.subr.mxu0 0.0
      %991 = vmatpush1.msra.mxu0 0.0
      %992 = vmatprep.subr.mxu0 0.0
      %993 = vmatpush1.msra.mxu0 0.0
      %994 = vmatprep.subr.mxu0 0.0
      %995 = vmatpush1.msra.mxu0 0.0
      %996 = vmatprep.subr.mxu0 0.0
      %997 = vmatpush1.msra.mxu0 0.0
      %998 = vmatprep.subr.mxu0 0.0
      %999 = vmatpush1.msra.mxu0 0.0
      %1000 = vmatprep.subr.mxu0 0.0
      %1001 = vmatpush1.msra.mxu0 0.0
      %1002 = vmatprep.subr.mxu0 0.0
      %1003 = vmatpush1.msra.mxu0 0.0
      %1004 = vmatprep.subr.mxu0 0.0
      %1005 = vmatpush1.msra.mxu0 0.0
      %1006 = vmatprep.subr.mxu0 0.0
      %1007 = vmatpush1.msra.mxu0 0.0
      %1008 = vmatprep.subr.mxu0 0.0
      %1009 = vmatpush1.msra.mxu0 0.0
      %1010 = vmatprep.subr.mxu0 0.0
      %1011 = vmatpush1.msra.mxu0 0.0
      %1012 = vmatprep.subr.mxu0 0.0
      %1013 = vmatpush1.msra.mxu0 0.0
      %1014 = vmatprep.subr.mxu0 0.0
      %1015 = vmatpush1.msra.mxu0 0.0
      %1016 = vmatprep.subr.mxu0 0.0
      %1017 = vmatpush1.msra.mxu0 0.0
      %1018 = vmatprep.subr.mxu0 0.0
      %1019 = vmatpush1.msra.mxu0 0.0
      %1020 = vmatprep.subr.mxu0 0.0
      %1021 = vmatpush1.msra.mxu0 0.0
      %1022 = vmatprep.subr.mxu0 0.0
      %1023 = vmatpush1.msra.mxu0 0.0
      %1024 = vmatprep.subr.mxu0 0.0
      %1025 = vmatpush1.msra.mxu0 0.0
      %1026 = vmatprep.subr.mxu0 0.0
      %1027 = vmatpush1.msra.mxu0 0.0
      %1028 = vmatprep.subr.mxu0 0.0
      %1029 = vmatpush1.msra.mxu0 0.0
      %1030 = vmatprep.subr.mxu0 0.0
      %1031 = vmatpush1.msra.mxu0 0.0
      %1032 = vmatprep.subr.mxu0 0.0
      %1033 = vmatpush1.msra.mxu0 0.0
      %1034 = vmatprep.subr.mxu0 0.0
      %1035 = vmatpush1.msra.mxu0 0.0
      %1036 = vmatprep.mubr.f32.mxu0 0.0
      %1037 = vmatmul.mubr.f32.gmra.mrb[0].mxu0 %v965
      %v1038 = vpop.f32.mrb[0].mxu0
      %v1039 = vadd.f32 0.0, %v1038
      %v1040 = vpop.f32.mrb[0].mxu0
      %1041 = vmatprep.mubr.f32.mxu0 0.0
      %1042 = vmatmul.mubr.f32.gmra.mrb[0].mxu0 %v968
      %v1043 = vpop.f32.mrb[0].mxu0
      %v1044 = vadd.f32 0.0, %v1043
      %v1045 = vpop.f32.mrb[0].mxu0
      %1046 = vdwg.mxu0
      %1047 = vrot.lane.b32.xlu0 %v400, 104
      %v1048 = vpop.permute.xlu0 %1047
      %1049 = vrot.lane.b32.xlu0 %v401, 104
      %v1050 = vpop.permute.xlu0 %1049
      %1051 = vrot.lane.b32.xlu0 %v411, 72
      %v1052 = vpop.permute.xlu0 %1051
      %1053 = vrot.lane.b32.xlu0 %v412, 72
      %v1054 = vpop.permute.xlu0 %1053
      %v1055 = vsel %vm430, %v1048, 0
      %v1057 = vsel %vm430, %v1050, 0
      %v1059 = vsel %vm430, %v1052, 0
      %v1061 = vsel %vm430, %v1054, 0
      %1063 = vmatprep.subr.mxu0 0.0
      %1064 = vmatpush1.xpose.msra.mxu0 %v1059
      %1065 = vmatprep.subr.mxu0 0.0
      %1066 = vmatpush1.xpose.msra.mxu0 %v1061
      %1067 = vmatprep.subr.mxu0 0.0
      %1068 = vmatpush1.xpose.msra.mxu0 0.0
      %1069 = vmatprep.subr.mxu0 0.0
      %1070 = vmatpush1.xpose.msra.mxu0 0.0
      %1071 = vmatprep.subr.mxu0 0.0
      %1072 = vmatpush1.xpose.msra.mxu0 0.0
      %1073 = vmatprep.subr.mxu0 0.0
      %1074 = vmatpush1.xpose.msra.mxu0 0.0
      %1075 = vmatprep.subr.mxu0 0.0
      %1076 = vmatpush1.xpose.msra.mxu0 0.0
      %1077 = vmatprep.subr.mxu0 0.0
      %1078 = vmatpush1.xpose.msra.mxu0 0.0
      %1079 = vmatprep.subr.mxu0 0.0
      %1080 = vmatpush1.xpose.msra.mxu0 0.0
      %1081 = vmatprep.subr.mxu0 0.0
      %1082 = vmatpush1.xpose.msra.mxu0 0.0
      %1083 = vmatprep.subr.mxu0 0.0
      %1084 = vmatpush1.xpose.msra.mxu0 0.0
      %1085 = vmatprep.subr.mxu0 0.0
      %1086 = vmatpush1.xpose.msra.mxu0 0.0
      %1087 = vmatprep.subr.mxu0 0.0
      %1088 = vmatpush1.xpose.msra.mxu0 0.0
      %1089 = vmatprep.subr.mxu0 0.0
      %1090 = vmatpush1.xpose.msra.mxu0 0.0
      %1091 = vmatprep.subr.mxu0 0.0
      %1092 = vmatpush1.xpose.msra.mxu0 0.0
      %1093 = vmatprep.subr.mxu0 0.0
      %1094 = vmatpush1.xpose.msra.mxu0 0.0
      %1095 = vmatprep.subr.mxu0 0.0
      %1096 = vmatpush1.xpose.msra.mxu0 0.0
      %1097 = vmatprep.subr.mxu0 0.0
      %1098 = vmatpush1.xpose.msra.mxu0 0.0
      %1099 = vmatprep.subr.mxu0 0.0
      %1100 = vmatpush1.xpose.msra.mxu0 0.0
      %1101 = vmatprep.subr.mxu0 0.0
      %1102 = vmatpush1.xpose.msra.mxu0 0.0
      %1103 = vmatprep.subr.mxu0 0.0
      %1104 = vmatpush1.xpose.msra.mxu0 0.0
      %1105 = vmatprep.subr.mxu0 0.0
      %1106 = vmatpush1.xpose.msra.mxu0 0.0
      %1107 = vmatprep.subr.mxu0 0.0
      %1108 = vmatpush1.xpose.msra.mxu0 0.0
      %1109 = vmatprep.subr.mxu0 0.0
      %1110 = vmatpush1.xpose.msra.mxu0 0.0
      %1111 = vmatprep.subr.mxu0 0.0
      %1112 = vmatpush1.xpose.msra.mxu0 0.0
      %1113 = vmatprep.subr.mxu0 0.0
      %1114 = vmatpush1.xpose.msra.mxu0 0.0
      %1115 = vmatprep.subr.mxu0 0.0
      %1116 = vmatpush1.xpose.msra.mxu0 0.0
      %1117 = vmatprep.subr.mxu0 0.0
      %1118 = vmatpush1.xpose.msra.mxu0 0.0
      %1119 = vmatprep.subr.mxu0 0.0
      %1120 = vmatpush1.xpose.msra.mxu0 0.0
      %1121 = vmatprep.subr.mxu0 0.0
      %1122 = vmatpush1.xpose.msra.mxu0 0.0
      %1123 = vmatprep.subr.mxu0 0.0
      %1124 = vmatpush1.xpose.msra.mxu0 0.0
      %1125 = vmatprep.subr.mxu0 0.0
      %1126 = vmatpush1.xpose.msra.mxu0 0.0
      %1127 = vmatprep.mubr.f32.mxu0 0.0
      %1128 = vmatmul.mubr.f32.gmra.mrb[0].mxu0 %v1055
      %v1129 = vpop.f32.mrb[0].mxu0
      %v1130 = vadd.f32 0.0, %v1129
      %v1131 = vpop.f32.mrb[0].mxu0
      %1132 = vmatprep.mubr.f32.mxu0 0.0
      %1133 = vmatmul.mubr.f32.gmra.mrb[0].mxu0 %v1057
      %v1134 = vpop.f32.mrb[0].mxu0
      %v1135 = vadd.f32 0.0, %v1134
      %v1136 = vpop.f32.mrb[0].mxu0
      %1137 = vdwg.mxu0
      %v1138 = vmul.f32 %v1130, 0.35355338
      %v1139 = vmul.f32 %v1135, 0.35355338
      %v1140 = vsel %vm518, %v1138, -inf
      %1141 = vmax.xlane.f32.xlu0 %v1140
      %v1142 = vpop.xlane.xlu0 %1141
      %v1143 = vsel %vm522, %v1139, -inf
      %1144 = vmax.xlane.f32.xlu0 %v1143
      %v1145 = vpop.xlane.xlu0 %1144
      %v1146 = vsub.f32 %v1138, %v1142
      %v1147 = vsub.f32 %v1139, %v1145
      %v1148 = vmul.f32 %v1146, 1.442695
      %v1149 = vpow.pop %v1148
      %v1150 = vmul.f32 %v1147, 1.442695
      %v1151 = vpow.pop %v1150
      %v1152 = vsel %vm518, %v1149, 0.0
      %1153 = vadd.xlane.f32.xlu0 %v1152
      %v1154 = vpop.xlane.xlu0 %1153
      %v1155 = vsel %vm522, %v1151, 0.0
      %1156 = vadd.xlane.f32.xlu0 %v1155
      %v1157 = vpop.xlane.xlu0 %1156
      %v1158 = vrcp.pop %v1154
      %v1159 = vmul.f32 %v1149, %v1158
      %v1160 = vrcp.pop %v1157
      %v1161 = vmul.f32 %v1151, %v1160
      %s1162 = scalar_lea.vmem %s264, 48
      %1163 = vst.msk [vmem:[%s1162] sm:$0xff] %vm518, %v1159
      %1164 = vst.msk [vmem:[%s1162 + $0x8] sm:$0x3f] %vm522, %v1161
      %1165 = vrot.lane.b32.xlu0 %v422, 40
      %v1166 = vpop.permute.xlu0 %1165
      %1167 = vrot.lane.b32.xlu0 %v423, 40
      %v1168 = vpop.permute.xlu0 %1167
      %v1171 = vsel %vm518, %v1159, 0
      %v1174 = vsel %vm518, %v1161, 0
      %v1176 = vsel %vm557, %v1168, 0
      %1178 = vmatprep.subr.mxu0 0.0
      %1179 = vmatpush1.msra.mxu0 %v1166
      %1180 = vmatprep.subr.mxu0 0.0
      %1181 = vmatpush1.msra.mxu0 %v1176
      %1182 = vmatprep.subr.mxu0 0.0
      %1183 = vmatpush1.msra.mxu0 0.0
      %1184 = vmatprep.subr.mxu0 0.0
      %1185 = vmatpush1.msra.mxu0 0.0
      %1186 = vmatprep.subr.mxu0 0.0
      %1187 = vmatpush1.msra.mxu0 0.0
      %1188 = vmatprep.subr.mxu0 0.0
      %1189 = vmatpush1.msra.mxu0 0.0
      %1190 = vmatprep.subr.mxu0 0.0
      %1191 = vmatpush1.msra.mxu0 0.0
      %1192 = vmatprep.subr.mxu0 0.0
      %1193 = vmatpush1.msra.mxu0 0.0
      %1194 = vmatprep.subr.mxu0 0.0
      %1195 = vmatpush1.msra.mxu0 0.0
      %1196 = vmatprep.subr.mxu0 0.0
      %1197 = vmatpush1.msra.mxu0 0.0
      %1198 = vmatprep.subr.mxu0 0.0
      %1199 = vmatpush1.msra.mxu0 0.0
      %1200 = vmatprep.subr.mxu0 0.0
      %1201 = vmatpush1.msra.mxu0 0.0
      %1202 = vmatprep.subr.mxu0 0.0
      %1203 = vmatpush1.msra.mxu0 0.0
      %1204 = vmatprep.subr.mxu0 0.0
      %1205 = vmatpush1.msra.mxu0 0.0
      %1206 = vmatprep.subr.mxu0 0.0
      %1207 = vmatpush1.msra.mxu0 0.0
      %1208 = vmatprep.subr.mxu0 0.0
      %1209 = vmatpush1.msra.mxu0 0.0
      %1210 = vmatprep.subr.mxu0 0.0
      %1211 = vmatpush1.msra.mxu0 0.0
      %1212 = vmatprep.subr.mxu0 0.0
      %1213 = vmatpush1.msra.mxu0 0.0
      %1214 = vmatprep.subr.mxu0 0.0
      %1215 = vmatpush1.msra.mxu0 0.0
      %1216 = vmatprep.subr.mxu0 0.0
      %1217 = vmatpush1.msra.mxu0 0.0
      %1218 = vmatprep.subr.mxu0 0.0
      %1219 = vmatpush1.msra.mxu0 0.0
      %1220 = vmatprep.subr.mxu0 0.0
      %1221 = vmatpush1.msra.mxu0 0.0
      %1222 = vmatprep.subr.mxu0 0.0
      %1223 = vmatpush1.msra.mxu0 0.0
      %1224 = vmatprep.subr.mxu0 0.0
      %1225 = vmatpush1.msra.mxu0 0.0
      %1226 = vmatprep.subr.mxu0 0.0
      %1227 = vmatpush1.msra.mxu0 0.0
      %1228 = vmatprep.subr.mxu0 0.0
      %1229 = vmatpush1.msra.mxu0 0.0
      %1230 = vmatprep.subr.mxu0 0.0
      %1231 = vmatpush1.msra.mxu0 0.0
      %1232 = vmatprep.subr.mxu0 0.0
      %1233 = vmatpush1.msra.mxu0 0.0
      %1234 = vmatprep.subr.mxu0 0.0
      %1235 = vmatpush1.msra.mxu0 0.0
      %1236 = vmatprep.subr.mxu0 0.0
      %1237 = vmatpush1.msra.mxu0 0.0
      %1238 = vmatprep.subr.mxu0 0.0
      %1239 = vmatpush1.msra.mxu0 0.0
      %1240 = vmatprep.subr.mxu0 0.0
      %1241 = vmatpush1.msra.mxu0 0.0
      %1242 = vmatprep.mubr.f32.mxu0 0.0
      %1243 = vmatmul.mubr.f32.gmra.mrb[0].mxu0 %v1171
      %v1244 = vpop.f32.mrb[0].mxu0
      %v1245 = vadd.f32 0.0, %v1244
      %v1246 = vpop.f32.mrb[0].mxu0
      %1247 = vmatprep.mubr.f32.mxu0 0.0
      %1248 = vmatmul.mubr.f32.gmra.mrb[0].mxu0 %v1174
      %v1249 = vpop.f32.mrb[0].mxu0
      %v1250 = vadd.f32 0.0, %v1249
      %v1251 = vpop.f32.mrb[0].mxu0
      %1252 = vdwg.mxu0
      %1255 = vrot.lane.b32.xlu0 %v833, 8
      %v1256 = vpop.permute.xlu0 %1255
      %1257 = vrot.lane.b32.xlu0 %v838, 8
      %v1258 = vpop.permute.xlu0 %1257
      %1263 = vrot.lane.b32.xlu0 %v1039, 16
      %v1264 = vpop.permute.xlu0 %1263
      %1265 = vrot.lane.b32.xlu0 %v1044, 16
      %v1266 = vpop.permute.xlu0 %1265
      %1271 = vrot.lane.b32.xlu0 %v1245, 24
      %v1272 = vpop.permute.xlu0 %1271
      %1273 = vrot.lane.b32.xlu0 %v1250, 24
      %v1274 = vpop.permute.xlu0 %1273
      %v1277 = vsel %vm430, %v627, %v1256
      %v1278 = vsel %vm430, %v632, %v1258
      %vm1279 = vcmask 130048
      %v1280 = vsel %vm1279, %v1277, %v1264
      %v1281 = vsel %vm1279, %v1278, %v1266
      %vm1282 = vcmask 195584
      %v1283 = vsel %vm1282, %v1280, %v1272
      %v1284 = vsel %vm1282, %v1281, %v1274
      %v1285 = vld [vmem:[%s3] sm:$0xff]
      %v1286 = vld [vmem:[%s3 + $0x8] sm:$0xff]
      %v1287 = vld [vmem:[%s3 + $0x10] sm:$0xff]
      %v1288 = vld [vmem:[%s3 + $0x18] sm:$0xff]
      %v1290 = vsel %vm269, %v1283, 0
      %v1293 = vsel %vm269, %v1284, 0
      %1295 = vmatprep.subr.mxu0 0.0
      %1296 = vmatpush1.msra.mxu0 %v1285
      %1297 = vmatprep.subr.mxu0 0.0
      %1298 = vmatpush1.msra.mxu0 %v1286
      %1299 = vmatprep.subr.mxu0 0.0
      %1300 = vmatpush1.msra.mxu0 %v1287
      %1301 = vmatprep.subr.mxu0 0.0
      %1302 = vmatpush1.msra.mxu0 %v1288
      %1303 = vmatprep.subr.mxu0 0.0
      %1304 = vmatpush1.msra.mxu0 0.0
      %1305 = vmatprep.subr.mxu0 0.0
      %1306 = vmatpush1.msra.mxu0 0.0
      %1307 = vmatprep.subr.mxu0 0.0
      %1308 = vmatpush1.msra.mxu0 0.0
      %1309 = vmatprep.subr.mxu0 0.0
      %1310 = vmatpush1.msra.mxu0 0.0
      %1311 = vmatprep.subr.mxu0 0.0
      %1312 = vmatpush1.msra.mxu0 0.0
      %1313 = vmatprep.subr.mxu0 0.0
      %1314 = vmatpush1.msra.mxu0 0.0
      %1315 = vmatprep.subr.mxu0 0.0
      %1316 = vmatpush1.msra.mxu0 0.0
      %1317 = vmatprep.subr.mxu0 0.0
      %1318 = vmatpush1.msra.mxu0 0.0
      %1319 = vmatprep.subr.mxu0 0.0
      %1320 = vmatpush1.msra.mxu0 0.0
      %1321 = vmatprep.subr.mxu0 0.0
      %1322 = vmatpush1.msra.mxu0 0.0
      %1323 = vmatprep.subr.mxu0 0.0
      %1324 = vmatpush1.msra.mxu0 0.0
      %1325 = vmatprep.subr.mxu0 0.0
      %1326 = vmatpush1.msra.mxu0 0.0
      %1327 = vmatprep.subr.mxu0 0.0
      %1328 = vmatpush1.msra.mxu0 0.0
      %1329 = vmatprep.subr.mxu0 0.0
      %1330 = vmatpush1.msra.mxu0 0.0
      %1331 = vmatprep.subr.mxu0 0.0
      %1332 = vmatpush1.msra.mxu0 0.0
      %1333 = vmatprep.subr.mxu0 0.0
      %1334 = vmatpush1.msra.mxu0 0.0
      %1335 = vmatprep.subr.mxu0 0.0
      %1336 = vmatpush1.msra.mxu0 0.0
      %1337 = vmatprep.subr.mxu0 0.0
      %1338 = vmatpush1.msra.mxu0 0.0
      %1339 = vmatprep.subr.mxu0 0.0
      %1340 = vmatpush1.msra.mxu0 0.0
      %1341 = vmatprep.subr.mxu0 0.0
      %1342 = vmatpush1.msra.mxu0 0.0
      %1343 = vmatprep.subr.mxu0 0.0
      %1344 = vmatpush1.msra.mxu0 0.0
      %1345 = vmatprep.subr.mxu0 0.0
      %1346 = vmatpush1.msra.mxu0 0.0
      %1347 = vmatprep.subr.mxu0 0.0
      %1348 = vmatpush1.msra.mxu0 0.0
      %1349 = vmatprep.subr.mxu0 0.0
      %1350 = vmatpush1.msra.mxu0 0.0
      %1351 = vmatprep.subr.mxu0 0.0
      %1352 = vmatpush1.msra.mxu0 0.0
      %1353 = vmatprep.subr.mxu0 0.0
      %1354 = vmatpush1.msra.mxu0 0.0
      %1355 = vmatprep.subr.mxu0 0.0
      %1356 = vmatpush1.msra.mxu0 0.0
      %1357 = vmatprep.subr.mxu0 0.0
      %1358 = vmatpush1.msra.mxu0 0.0
      %1359 = vmatprep.mubr.f32.mxu0 0.0
      %1360 = vmatmul.mubr.f32.gmra.mrb[0].mxu0 %v1290
      %v1361 = vpop.f32.mrb[0].mxu0
      %v1362 = vadd.f32 0.0, %v1361
      %v1363 = vpop.f32.mrb[0].mxu0
      %1364 = vmatprep.mubr.f32.mxu0 0.0
      %1365 = vmatmul.mubr.f32.gmra.mrb[0].mxu0 %v1293
      %v1366 = vpop.f32.mrb[0].mxu0
      %v1367 = vadd.f32 0.0, %v1366
      %v1368 = vpop.f32.mrb[0].mxu0
      %1369 = vdwg.mxu0
      %v1370 = vadd.f32 %v265, %v1362
      %v1371 = vadd.f32 %v266, %v1367
      %v1372 = vld [vmem:[%s1 + $0x5] sm:$0x1]
      %v1373 = vlaneseq
      %v1374 = vshrl.u32 %v1373, 7
      %v1375 = vsub.s32 0, %v1374
      %v1376 = vrot.slane %v1372, %v1375
      %v1377 = vadd.f32 %v1370, %v1376
      %v1378 = vadd.f32 %v1371, %v1376
      %v1379 = vld [vmem:[%s1 + $0x6] sm:$0x1]
      %v1380 = vld [vmem:[%s1 + $0x7] sm:$0x1]
      %v1381 = vsel %vm269, %v1377, 0.0
      %1382 = vadd.xlane.f32.xlu0 %v1381
      %v1383 = vpop.xlane.xlu0 %1382
      %v1384 = vsel %vm273, %v1378, 0.0
      %1385 = vadd.xlane.f32.xlu0 %v1384
      %v1386 = vpop.xlane.xlu0 %1385
      %v1387 = vmul.f32 %v1383, %v277
      %v1388 = vmul.f32 %v1386, %v277
      %v1389 = vsub.f32 %v1377, %v1387
      %v1390 = vsub.f32 %v1378, %v1388
      %v1391 = vmul.f32 %v1389, %v1389
      %v1392 = vmul.f32 %v1390, %v1390
      %v1393 = vsel %vm269, %v1391, 0.0
      %1394 = vadd.xlane.f32.xlu0 %v1393
      %v1395 = vpop.xlane.xlu0 %1394
      %v1396 = vsel %vm273, %v1392, 0.0
      %1397 = vadd.xlane.f32.xlu0 %v1396
      %v1398 = vpop.xlane.xlu0 %1397
      %v1399 = vmul.f32 %v1395, %v277
      %v1400 = vmul.f32 %v1398, %v277
      %v1401 = vadd.f32 %v1399, 1e-05
      %v1402 = vadd.f32 %v1400, 1e-05
      %v1403 = vrsqrt.pop %v1401
      %v1404 = vrsqrt.pop %v1402
      %v1405 = vmul.f32 %v1389, %v1403
      %v1406 = vmul.f32 %v1390, %v1404
      %v1407 = vlaneseq
      %v1408 = vshrl.u32 %v1407, 7
      %v1409 = vsub.s32 0, %v1408
      %v1410 = vrot.slane %v1379, %v1409
      %v1411 = vmul.f32 %v1405, %v1410
      %v1412 = vmul.f32 %v1406, %v1410
      %v1413 = vlaneseq
      %v1414 = vshrl.u32 %v1413, 7
      %v1415 = vsub.s32 0, %v1414
      %v1416 = vrot.slane %v1380, %v1415
      %v1417 = vadd.f32 %v1411, %v1416
      %v1418 = vadd.f32 %v1412, %v1416
      %v1419 = vld [vmem:[%s4] sm:$0xff]
      %v1420 = vld [vmem:[%s4 + $0x8] sm:$0xff]
      %v1421 = vld [vmem:[%s4 + $0x10] sm:$0xff]
      %v1422 = vld [vmem:[%s4 + $0x18] sm:$0xff]
      %v1423 = vld [vmem:[%s1 + $0x8] sm:$0x1]
      %v1424 = vlaneseq
      %v1425 = vshrl.u32 %v1424, 7
      %v1426 = vsub.s32 0, %v1425
      %v1427 = vrot.slane %v1423, %v1426
      %v1429 = vsel %vm269, %v1417, 0
      %v1432 = vsel %vm269, %v1418, 0
      %1434 = vmatprep.subr.mxu0 0.0
      %1435 = vmatpush1.msra.mxu0 %v1419
      %1436 = vmatprep.subr.mxu0 0.0
      %1437 = vmatpush1.msra.mxu0 %v1420
      %1438 = vmatprep.subr.mxu0 0.0
      %1439 = vmatpush1.msra.mxu0 %v1421
      %1440 = vmatprep.subr.mxu0 0.0
      %1441 = vmatpush1.msra.mxu0 %v1422
      %1442 = vmatprep.subr.mxu0 0.0
      %1443 = vmatpush1.msra.mxu0 0.0
      %1444 = vmatprep.subr.mxu0 0.0
      %1445 = vmatpush1.msra.mxu0 0.0
      %1446 = vmatprep.subr.mxu0 0.0
      %1447 = vmatpush1.msra.mxu0 0.0
      %1448 = vmatprep.subr.mxu0 0.0
      %1449 = vmatpush1.msra.mxu0 0.0
      %1450 = vmatprep.subr.mxu0 0.0
      %1451 = vmatpush1.msra.mxu0 0.0
      %1452 = vmatprep.subr.mxu0 0.0
      %1453 = vmatpush1.msra.mxu0 0.0
      %1454 = vmatprep.subr.mxu0 0.0
      %1455 = vmatpush1.msra.mxu0 0.0
      %1456 = vmatprep.subr.mxu0 0.0
      %1457 = vmatpush1.msra.mxu0 0.0
      %1458 = vmatprep.subr.mxu0 0.0
      %1459 = vmatpush1.msra.mxu0 0.0
      %1460 = vmatprep.subr.mxu0 0.0
      %1461 = vmatpush1.msra.mxu0 0.0
      %1462 = vmatprep.subr.mxu0 0.0
      %1463 = vmatpush1.msra.mxu0 0.0
      %1464 = vmatprep.subr.mxu0 0.0
      %1465 = vmatpush1.msra.mxu0 0.0
      %1466 = vmatprep.subr.mxu0 0.0
      %1467 = vmatpush1.msra.mxu0 0.0
      %1468 = vmatprep.subr.mxu0 0.0
      %1469 = vmatpush1.msra.mxu0 0.0
      %1470 = vmatprep.subr.mxu0 0.0
      %1471 = vmatpush1.msra.mxu0 0.0
      %1472 = vmatprep.subr.mxu0 0.0
      %1473 = vmatpush1.msra.mxu0 0.0
      %1474 = vmatprep.subr.mxu0 0.0
      %1475 = vmatpush1.msra.mxu0 0.0
      %1476 = vmatprep.subr.mxu0 0.0
      %1477 = vmatpush1.msra.mxu0 0.0
      %1478 = vmatprep.subr.mxu0 0.0
      %1479 = vmatpush1.msra.mxu0 0.0
      %1480 = vmatprep.subr.mxu0 0.0
      %1481 = vmatpush1.msra.mxu0 0.0
      %1482 = vmatprep.subr.mxu0 0.0
      %1483 = vmatpush1.msra.mxu0 0.0
      %1484 = vmatprep.subr.mxu0 0.0
      %1485 = vmatpush1.msra.mxu0 0.0
      %1486 = vmatprep.subr.mxu0 0.0
      %1487 = vmatpush1.msra.mxu0 0.0
      %1488 = vmatprep.subr.mxu0 0.0
      %1489 = vmatpush1.msra.mxu0 0.0
      %1490 = vmatprep.subr.mxu0 0.0
      %1491 = vmatpush1.msra.mxu0 0.0
      %1492 = vmatprep.subr.mxu0 0.0
      %1493 = vmatpush1.msra.mxu0 0.0
      %1494 = vmatprep.subr.mxu0 0.0
      %1495 = vmatpush1.msra.mxu0 0.0
      %1496 = vmatprep.subr.mxu0 0.0
      %1497 = vmatpush1.msra.mxu0 0.0
      %1498 = vmatprep.mubr.f32.mxu0 0.0
      %1499 = vmatmul.mubr.f32.gmra.mrb[0].mxu0 %v1429
      %v1500 = vpop.f32.mrb[0].mxu0
      %v1501 = vadd.f32 %v1427, %v1500
      %v1502 = vpop.f32.mrb[0].mxu0
      %1503 = vmatprep.mubr.f32.mxu0 0.0
      %1504 = vmatmul.mubr.f32.gmra.mrb[0].mxu0 %v1432
      %v1505 = vpop.f32.mrb[0].mxu0
      %v1506 = vadd.f32 %v1427, %v1505
      %v1507 = vpop.f32.mrb[0].mxu0
      %1508 = vdwg.mxu0
      %v1509 = vmul.f32 %v1501, 0.5
      %v1510 = vmul.f32 %v1506, 0.5
      %v1511 = vmul.f32 %v1501, 0.70710677
      %v1512 = vmul.f32 %v1506, 0.70710677
      %vm1513 = vcmp.ge.f32.partialorder %v1511, 0.0
      %vm1514 = vcmp.ge.f32.partialorder %v1512, 0.0
      %v1515 = vsel %vm1513, 1.0, -1.0
      %v1516 = vsel %vm1514, 1.0, -1.0
      %v1517 = vand.u32 2147483647, %v1511
      %v1518 = vand.u32 2147483647, %v1512
      %v1519 = vmul.f32 %v1517, 0.3275911
      %v1520 = vmul.f32 %v1518, 0.3275911
      %v1521 = vadd.f32 %v1519, 1.0
      %v1522 = vadd.f32 %v1520, 1.0
      %v1523 = vrcp.pop %v1521
      %v1524 = vmul.f32 1.0, %v1523
      %v1525 = vrcp.pop %v1522
      %v1526 = vmul.f32 1.0, %v1525
      %v1527 = vmul.f32 %v1524, 1.0614054
      %v1528 = vmul.f32 %v1526, 1.0614054
      %v1529 = vadd.f32 %v1527, -1.4531521
      %v1530 = vadd.f32 %v1528, -1.4531521
      %v1531 = vmul.f32 %v1529, %v1524
      %v1532 = vmul.f32 %v1530, %v1526
      %v1533 = vadd.f32 %v1531, 1.4214138
      %v1534 = vadd.f32 %v1532, 1.4214138
      %v1535 = vmul.f32 %v1533, %v1524
      %v1536 = vmul.f32 %v1534, %v1526
      %v1537 = vadd.f32 %v1535, -0.28449672
      %v1538 = vadd.f32 %v1536, -0.28449672
      %v1539 = vmul.f32 %v1537, %v1524
      %v1540 = vmul.f32 %v1538, %v1526
      %v1541 = vadd.f32 %v1539, 0.2548296
      %v1542 = vadd.f32 %v1540, 0.2548296
      %v1543 = vmul.f32 %v1541, %v1524
      %v1544 = vmul.f32 %v1542, %v1526
      %v1545 = vsub.f32 0.0, %v1517
      %v1546 = vsub.f32 0.0, %v1518
      %v1547 = vmul.f32 %v1545, %v1517
      %v1548 = vmul.f32 %v1546, %v1518
      %v1549 = vmul.f32 %v1547, 1.442695
      %v1550 = vpow.pop %v1549
      %v1551 = vmul.f32 %v1548, 1.442695
      %v1552 = vpow.pop %v1551
      %v1553 = vmul.f32 %v1543, %v1550
      %v1554 = vmul.f32 %v1544, %v1552
      %v1555 = vsub.f32 1.0, %v1553
      %v1556 = vsub.f32 1.0, %v1554
      %v1557 = vmul.f32 %v1515, %v1555
      %v1558 = vmul.f32 %v1516, %v1556
      %v1559 = vadd.f32 %v1557, 1.0
      %v1560 = vadd.f32 %v1558, 1.0
      %v1561 = vmul.f32 %v1509, %v1559
      %v1562 = vmul.f32 %v1510, %v1560
      %v1563 = vld [vmem:[%s3 + $0x20] sm:$0xff]
      %v1564 = vld [vmem:[%s3 + $0x28] sm:$0xff]
      %v1565 = vld [vmem:[%s3 + $0x30] sm:$0xff]
      %v1566 = vld [vmem:[%s3 + $0x38] sm:$0xff]
      %v1567 = vld [vmem:[%s3 + $0x40] sm:$0xff]
      %v1568 = vld [vmem:[%s3 + $0x48] sm:$0xff]
      %v1569 = vld [vmem:[%s3 + $0x50] sm:$0xff]
      %v1570 = vld [vmem:[%s3 + $0x58] sm:$0xff]
      %v1571 = vld [vmem:[%s3 + $0x60] sm:$0xff]
      %v1572 = vld [vmem:[%s3 + $0x68] sm:$0xff]
      %v1573 = vld [vmem:[%s3 + $0x70] sm:$0xff]
      %v1574 = vld [vmem:[%s3 + $0x78] sm:$0xff]
      %v1575 = vld [vmem:[%s3 + $0x80] sm:$0xff]
      %v1576 = vld [vmem:[%s3 + $0x88] sm:$0xff]
      %v1577 = vld [vmem:[%s3 + $0x90] sm:$0xff]
      %v1578 = vld [vmem:[%s3 + $0x98] sm:$0xff]
      %1579 = vmatprep.subr.mxu0 0.0
      %1580 = vmatpush1.msra.mxu0 %v1563
      %1581 = vmatprep.subr.mxu0 0.0
      %1582 = vmatpush1.msra.mxu0 %v1564
      %1583 = vmatprep.subr.mxu0 0.0
      %1584 = vmatpush1.msra.mxu0 %v1565
      %1585 = vmatprep.subr.mxu0 0.0
      %1586 = vmatpush1.msra.mxu0 %v1566
      %1587 = vmatprep.subr.mxu0 0.0
      %1588 = vmatpush1.msra.mxu0 %v1567
      %1589 = vmatprep.subr.mxu0 0.0
      %1590 = vmatpush1.msra.mxu0 %v1568
      %1591 = vmatprep.subr.mxu0 0.0
      %1592 = vmatpush1.msra.mxu0 %v1569
      %1593 = vmatprep.subr.mxu0 0.0
      %1594 = vmatpush1.msra.mxu0 %v1570
      %1595 = vmatprep.subr.mxu0 0.0
      %1596 = vmatpush1.msra.mxu0 %v1571
      %1597 = vmatprep.subr.mxu0 0.0
      %1598 = vmatpush1.msra.mxu0 %v1572
      %1599 = vmatprep.subr.mxu0 0.0
      %1600 = vmatpush1.msra.mxu0 %v1573
      %1601 = vmatprep.subr.mxu0 0.0
      %1602 = vmatpush1.msra.mxu0 %v1574
      %1603 = vmatprep.subr.mxu0 0.0
      %1604 = vmatpush1.msra.mxu0 %v1575
      %1605 = vmatprep.subr.mxu0 0.0
      %1606 = vmatpush1.msra.mxu0 %v1576
      %1607 = vmatprep.subr.mxu0 0.0
      %1608 = vmatpush1.msra.mxu0 %v1577
      %1609 = vmatprep.subr.mxu0 0.0
      %1610 = vmatpush1.msra.mxu0 %v1578
      %1611 = vmatprep.subr.mxu0 0.0
      %1612 = vmatpush1.msra.mxu0 0.0
      %1613 = vmatprep.subr.mxu0 0.0
      %1614 = vmatpush1.msra.mxu0 0.0
      %1615 = vmatprep.subr.mxu0 0.0
      %1616 = vmatpush1.msra.mxu0 0.0
      %1617 = vmatprep.subr.mxu0 0.0
      %1618 = vmatpush1.msra.mxu0 0.0
      %1619 = vmatprep.subr.mxu0 0.0
      %1620 = vmatpush1.msra.mxu0 0.0
      %1621 = vmatprep.subr.mxu0 0.0
      %1622 = vmatpush1.msra.mxu0 0.0
      %1623 = vmatprep.subr.mxu0 0.0
      %1624 = vmatpush1.msra.mxu0 0.0
      %1625 = vmatprep.subr.mxu0 0.0
      %1626 = vmatpush1.msra.mxu0 0.0
      %1627 = vmatprep.subr.mxu0 0.0
      %1628 = vmatpush1.msra.mxu0 0.0
      %1629 = vmatprep.subr.mxu0 0.0
      %1630 = vmatpush1.msra.mxu0 0.0
      %1631 = vmatprep.subr.mxu0 0.0
      %1632 = vmatpush1.msra.mxu0 0.0
      %1633 = vmatprep.subr.mxu0 0.0
      %1634 = vmatpush1.msra.mxu0 0.0
      %1635 = vmatprep.subr.mxu0 0.0
      %1636 = vmatpush1.msra.mxu0 0.0
      %1637 = vmatprep.subr.mxu0 0.0
      %1638 = vmatpush1.msra.mxu0 0.0
      %1639 = vmatprep.subr.mxu0 0.0
      %1640 = vmatpush1.msra.mxu0 0.0
      %1641 = vmatprep.subr.mxu0 0.0
      %1642 = vmatpush1.msra.mxu0 0.0
      %1643 = vmatprep.mubr.f32.mxu0 0.0
      %1644 = vmatmul.mubr.f32.gmra.mrb[0].mxu0 %v1561
      %v1645 = vpop.f32.mrb[0].mxu0
      %v1646 = vadd.f32 0.0, %v1645
      %v1647 = vpop.f32.mrb[0].mxu0
      %1648 = vmatprep.mubr.f32.mxu0 0.0
      %1649 = vmatmul.mubr.f32.gmra.mrb[0].mxu0 %v1562
      %v1650 = vpop.f32.mrb[0].mxu0
      %v1651 = vadd.f32 0.0, %v1650
      %v1652 = vpop.f32.mrb[0].mxu0
      %1653 = vdwg.mxu0
      %v1654 = vadd.f32 %v1377, %v1646
      %v1655 = vadd.f32 %v1378, %v1651
      %v1656 = vld [vmem:[%s1 + $0x9] sm:$0x1]
      %v1657 = vlaneseq
      %v1658 = vshrl.u32 %v1657, 7
      %v1659 = vsub.s32 0, %v1658
      %v1660 = vrot.slane %v1656, %v1659
      %v1661 = vadd.f32 %v1654, %v1660
      %v1662 = vadd.f32 %v1655, %v1660
      %v1663 = vld [vmem:[%s1 + $0xa] sm:$0x1]
      %v1664 = vld [vmem:[%s1 + $0xb] sm:$0x1]
      %v1665 = vsel %vm269, %v1661, 0.0
      %1666 = vadd.xlane.f32.xlu0 %v1665
      %v1667 = vpop.xlane.xlu0 %1666
      %v1668 = vsel %vm273, %v1662, 0.0
      %1669 = vadd.xlane.f32.xlu0 %v1668
      %v1670 = vpop.xlane.xlu0 %1669
      %v1671 = vmul.f32 %v1667, %v277
      %v1672 = vmul.f32 %v1670, %v277
      %v1673 = vsub.f32 %v1661, %v1671
      %v1674 = vsub.f32 %v1662, %v1672
      %v1675 = vmul.f32 %v1673, %v1673
      %v1676 = vmul.f32 %v1674, %v1674
      %v1677 = vsel %vm269, %v1675, 0.0
      %1678 = vadd.xlane.f32.xlu0 %v1677
      %v1679 = vpop.xlane.xlu0 %1678
      %v1680 = vsel %vm273, %v1676, 0.0
      %1681 = vadd.xlane.f32.xlu0 %v1680
      %v1682 = vpop.xlane.xlu0 %1681
      %v1683 = vmul.f32 %v1679, %v277
      %v1684 = vmul.f32 %v1682, %v277
      %v1685 = vadd.f32 %v1683, 1e-05
      %v1686 = vadd.f32 %v1684, 1e-05
      %v1687 = vrsqrt.pop %v1685
      %v1688 = vrsqrt.pop %v1686
      %v1689 = vmul.f32 %v1673, %v1687
      %v1690 = vmul.f32 %v1674, %v1688
      %v1691 = vlaneseq
      %v1692 = vshrl.u32 %v1691, 7
      %v1693 = vsub.s32 0, %v1692
      %v1694 = vrot.slane %v1663, %v1693
      %v1695 = vmul.f32 %v1689, %v1694
      %v1696 = vmul.f32 %v1690, %v1694
      %v1697 = vlaneseq
      %v1698 = vshrl.u32 %v1697, 7
      %v1699 = vsub.s32 0, %v1698
      %v1700 = vrot.slane %v1664, %v1699
      %v1701 = vadd.f32 %v1695, %v1700
      %v1702 = vadd.f32 %v1696, %v1700
      %v1703 = vld [vmem:[%s2 + $0x20] sm:$0xff]
      %v1704 = vld [vmem:[%s2 + $0x28] sm:$0xff]
      %v1705 = vld [vmem:[%s2 + $0x30] sm:$0xff]
      %v1706 = vld [vmem:[%s2 + $0x38] sm:$0xff]
      %v1708 = vsel %vm269, %v1701, 0
      %v1711 = vsel %vm269, %v1702, 0
      %1713 = vmatprep.subr.mxu0 0.0
      %1714 = vmatpush1.msra.mxu0 %v1703
      %1715 = vmatprep.subr.mxu0 0.0
      %1716 = vmatpush1.msra.mxu0 %v1704
      %1717 = vmatprep.subr.mxu0 0.0
      %1718 = vmatpush1.msra.mxu0 %v1705
      %1719 = vmatprep.subr.mxu0 0.0
      %1720 = vmatpush1.msra.mxu0 %v1706
      %1721 = vmatprep.subr.mxu0 0.0
      %1722 = vmatpush1.msra.mxu0 0.0
      %1723 = vmatprep.subr.mxu0 0.0
      %1724 = vmatpush1.msra.mxu0 0.0
      %1725 = vmatprep.subr.mxu0 0.0
      %1726 = vmatpush1.msra.mxu0 0.0
      %1727 = vmatprep.subr.mxu0 0.0
      %1728 = vmatpush1.msra.mxu0 0.0
      %1729 = vmatprep.subr.mxu0 0.0
      %1730 = vmatpush1.msra.mxu0 0.0
      %1731 = vmatprep.subr.mxu0 0.0
      %1732 = vmatpush1.msra.mxu0 0.0
      %1733 = vmatprep.subr.mxu0 0.0
      %1734 = vmatpush1.msra.mxu0 0.0
      %1735 = vmatprep.subr.mxu0 0.0
      %1736 = vmatpush1.msra.mxu0 0.0
      %1737 = vmatprep.subr.mxu0 0.0
      %1738 = vmatpush1.msra.mxu0 0.0
      %1739 = vmatprep.subr.mxu0 0.0
      %1740 = vmatpush1.msra.mxu0 0.0
      %1741 = vmatprep.subr.mxu0 0.0
      %1742 = vmatpush1.msra.mxu0 0.0
      %1743 = vmatprep.subr.mxu0 0.0
      %1744 = vmatpush1.msra.mxu0 0.0
      %1745 = vmatprep.subr.mxu0 0.0
      %1746 = vmatpush1.msra.mxu0 0.0
      %1747 = vmatprep.subr.mxu0 0.0
      %1748 = vmatpush1.msra.mxu0 0.0
      %1749 = vmatprep.subr.mxu0 0.0
      %1750 = vmatpush1.msra.mxu0 0.0
      %1751 = vmatprep.subr.mxu0 0.0
      %1752 = vmatpush1.msra.mxu0 0.0
      %1753 = vmatprep.subr.mxu0 0.0
      %1754 = vmatpush1.msra.mxu0 0.0
      %1755 = vmatprep.subr.mxu0 0.0
      %1756 = vmatpush1.msra.mxu0 0.0
      %1757 = vmatprep.subr.mxu0 0.0
      %1758 = vmatpush1.msra.mxu0 0.0
      %1759 = vmatprep.subr.mxu0 0.0
      %1760 = vmatpush1.msra.mxu0 0.0
      %1761 = vmatprep.subr.mxu0 0.0
      %1762 = vmatpush1.msra.mxu0 0.0
      %1763 = vmatprep.subr.mxu0 0.0
      %1764 = vmatpush1.msra.mxu0 0.0
      %1765 = vmatprep.subr.mxu0 0.0
      %1766 = vmatpush1.msra.mxu0 0.0
      %1767 = vmatprep.subr.mxu0 0.0
      %1768 = vmatpush1.msra.mxu0 0.0
      %1769 = vmatprep.subr.mxu0 0.0
      %1770 = vmatpush1.msra.mxu0 0.0
      %1771 = vmatprep.subr.mxu0 0.0
      %1772 = vmatpush1.msra.mxu0 0.0
      %1773 = vmatprep.subr.mxu0 0.0
      %1774 = vmatpush1.msra.mxu0 0.0
      %1775 = vmatprep.subr.mxu0 0.0
      %1776 = vmatpush1.msra.mxu0 0.0
      %1777 = vmatprep.mubr.f32.mxu0 0.0
      %1778 = vmatmul.mubr.f32.gmra.mrb[0].mxu0 %v1708
      %v1779 = vpop.f32.mrb[0].mxu0
      %v1780 = vadd.f32 0.0, %v1779
      %v1781 = vpop.f32.mrb[0].mxu0
      %1782 = vmatprep.mubr.f32.mxu0 0.0
      %1783 = vmatmul.mubr.f32.gmra.mrb[0].mxu0 %v1711
      %v1784 = vpop.f32.mrb[0].mxu0
      %v1785 = vadd.f32 0.0, %v1784
      %v1786 = vpop.f32.mrb[0].mxu0
      %1787 = vdwg.mxu0
      %v1788 = vld [vmem:[%s1 + $0xc] sm:$0x1]
      %v1789 = vlaneseq
      %v1790 = vshrl.u32 %v1789, 7
      %v1791 = vsub.s32 0, %v1790
      %v1792 = vrot.slane %v1788, %v1791
      %v1793 = vadd.f32 %v1780, %v1792
      %v1794 = vadd.f32 %v1785, %v1792
      %v1795 = vld [vmem:[%s1 + $0xd] sm:$0x1]
      %v1796 = vlaneseq
      %v1797 = vshrl.u32 %v1796, 7
      %v1798 = vsub.s32 0, %v1797
      %v1799 = vrot.slane %v1795, %v1798
      %1801 = vrot.lane.b32.xlu0 %v1799, 32
      %v1802 = vpop.permute.xlu0 %1801
      %v1804 = vadd.f32 %v1780, %v1802
      %v1805 = vadd.f32 %v1785, %v1802
      %v1806 = vld [vmem:[%s1 + $0xe] sm:$0x1]
      %v1807 = vlaneseq
      %v1808 = vshrl.u32 %v1807, 7
      %v1809 = vsub.s32 0, %v1808
      %v1810 = vrot.slane %v1806, %v1809
      %1812 = vrot.lane.b32.xlu0 %v1810, 64
      %v1813 = vpop.permute.xlu0 %1812
      %v1815 = vadd.f32 %v1780, %v1813
      %v1816 = vadd.f32 %v1785, %v1813
      %1819 = vrot.lane.b32.xlu0 %v1804, 96
      %v1820 = vpop.permute.xlu0 %1819
      %1821 = vrot.lane.b32.xlu0 %v1805, 96
      %v1822 = vpop.permute.xlu0 %1821
      %v1824 = vsel %vm430, %v1793, 0
      %v1827 = vsel %vm430, %v1794, 0
      %v1829 = vsel %vm430, %v1820, 0
      %v1831 = vsel %vm430, %v1822, 0
      %1833 = vmatprep.subr.mxu0 0.0
      %1834 = vmatpush1.xpose.msra.mxu0 %v1829
      %1835 = vmatprep.subr.mxu0 0.0
      %1836 = vmatpush1.xpose.msra.mxu0 %v1831
      %1837 = vmatprep.subr.mxu0 0.0
      %1838 = vmatpush1.xpose.msra.mxu0 0.0
      %1839 = vmatprep.subr.mxu0 0.0
      %1840 = vmatpush1.xpose.msra.mxu0 0.0
      %1841 = vmatprep.subr.mxu0 0.0
      %1842 = vmatpush1.xpose.msra.mxu0 0.0
      %1843 = vmatprep.subr.mxu0 0.0
      %1844 = vmatpush1.xpose.msra.mxu0 0.0
      %1845 = vmatprep.subr.mxu0 0.0
      %1846 = vmatpush1.xpose.msra.mxu0 0.0
      %1847 = vmatprep.subr.mxu0 0.0
      %1848 = vmatpush1.xpose.msra.mxu0 0.0
      %1849 = vmatprep.subr.mxu0 0.0
      %1850 = vmatpush1.xpose.msra.mxu0 0.0
      %1851 = vmatprep.subr.mxu0 0.0
      %1852 = vmatpush1.xpose.msra.mxu0 0.0
      %1853 = vmatprep.subr.mxu0 0.0
      %1854 = vmatpush1.xpose.msra.mxu0 0.0
      %1855 = vmatprep.subr.mxu0 0.0
      %1856 = vmatpush1.xpose.msra.mxu0 0.0
      %1857 = vmatprep.subr.mxu0 0.0
      %1858 = vmatpush1.xpose.msra.mxu0 0.0
      %1859 = vmatprep.subr.mxu0 0.0
      %1860 = vmatpush1.xpose.msra.mxu0 0.0
      %1861 = vmatprep.subr.mxu0 0.0
      %1862 = vmatpush1.xpose.msra.mxu0 0.0
      %1863 = vmatprep.subr.mxu0 0.0
      %1864 = vmatpush1.xpose.msra.mxu0 0.0
      %1865 = vmatprep.subr.mxu0 0.0
      %1866 = vmatpush1.xpose.msra.mxu0 0.0
      %1867 = vmatprep.subr.mxu0 0.0
      %1868 = vmatpush1.xpose.msra.mxu0 0.0
      %1869 = vmatprep.subr.mxu0 0.0
      %1870 = vmatpush1.xpose.msra.mxu0 0.0
      %1871 = vmatprep.subr.mxu0 0.0
      %1872 = vmatpush1.xpose.msra.mxu0 0.0
      %1873 = vmatprep.subr.mxu0 0.0
      %1874 = vmatpush1.xpose.msra.mxu0 0.0
      %1875 = vmatprep.subr.mxu0 0.0
      %1876 = vmatpush1.xpose.msra.mxu0 0.0
      %1877 = vmatprep.subr.mxu0 0.0
      %1878 = vmatpush1.xpose.msra.mxu0 0.0
      %1879 = vmatprep.subr.mxu0 0.0
      %1880 = vmatpush1.xpose.msra.mxu0 0.0
      %1881 = vmatprep.subr.mxu0 0.0
      %1882 = vmatpush1.xpose.msra.mxu0 0.0
      %1883 = vmatprep.subr.mxu0 0.0
      %1884 = vmatpush1.xpose.msra.mxu0 0.0
      %1885 = vmatprep.subr.mxu0 0.0
      %1886 = vmatpush1.xpose.msra.mxu0 0.0
      %1887 = vmatprep.subr.mxu0 0.0
      %1888 = vmatpush1.xpose.msra.mxu0 0.0
      %1889 = vmatprep.subr.mxu0 0.0
      %1890 = vmatpush1.xpose.msra.mxu0 0.0
      %1891 = vmatprep.subr.mxu0 0.0
      %1892 = vmatpush1.xpose.msra.mxu0 0.0
      %1893 = vmatprep.subr.mxu0 0.0
      %1894 = vmatpush1.xpose.msra.mxu0 0.0
      %1895 = vmatprep.subr.mxu0 0.0
      %1896 = vmatpush1.xpose.msra.mxu0 0.0
      %1897 = vmatprep.mubr.f32.mxu0 0.0
      %1898 = vmatmul.mubr.f32.gmra.mrb[0].mxu0 %v1824
      %v1899 = vpop.f32.mrb[0].mxu0
      %v1900 = vadd.f32 0.0, %v1899
      %v1901 = vpop.f32.mrb[0].mxu0
      %1902 = vmatprep.mubr.f32.mxu0 0.0
      %1903 = vmatmul.mubr.f32.gmra.mrb[0].mxu0 %v1827
      %v1904 = vpop.f32.mrb[0].mxu0
      %v1905 = vadd.f32 0.0, %v1904
      %v1906 = vpop.f32.mrb[0].mxu0
      %1907 = vdwg.mxu0
      %v1908 = vmul.f32 %v1900, 0.35355338
      %v1909 = vmul.f32 %v1905, 0.35355338
      %v1910 = vsel %vm518, %v1908, -inf
      %1911 = vmax.xlane.f32.xlu0 %v1910
      %v1912 = vpop.xlane.xlu0 %1911
      %v1913 = vsel %vm522, %v1909, -inf
      %1914 = vmax.xlane.f32.xlu0 %v1913
      %v1915 = vpop.xlane.xlu0 %1914
      %v1916 = vsub.f32 %v1908, %v1912
      %v1917 = vsub.f32 %v1909, %v1915
      %v1918 = vmul.f32 %v1916, 1.442695
      %v1919 = vpow.pop %v1918
      %v1920 = vmul.f32 %v1917, 1.442695
      %v1921 = vpow.pop %v1920
      %v1922 = vsel %vm518, %v1919, 0.0
      %1923 = vadd.xlane.f32.xlu0 %v1922
      %v1924 = vpop.xlane.xlu0 %1923
      %v1925 = vsel %vm522, %v1921, 0.0
      %1926 = vadd.xlane.f32.xlu0 %v1925
      %v1927 = vpop.xlane.xlu0 %1926
      %v1928 = vrcp.pop %v1924
      %v1929 = vmul.f32 %v1919, %v1928
      %v1930 = vrcp.pop %v1927
      %v1931 = vmul.f32 %v1921, %v1930
      %s1932 = scalar_lea.vmem %s264, 64
      %1933 = vst.msk [vmem:[%s1932] sm:$0xff] %vm518, %v1929
      %1934 = vst.msk [vmem:[%s1932 + $0x8] sm:$0x3f] %vm522, %v1931
      %1937 = vrot.lane.b32.xlu0 %v1815, 64
      %v1938 = vpop.permute.xlu0 %1937
      %1939 = vrot.lane.b32.xlu0 %v1816, 64
      %v1940 = vpop.permute.xlu0 %1939
      %v1943 = vsel %vm518, %v1929, 0
      %v1946 = vsel %vm518, %v1931, 0
      %v1948 = vsel %vm557, %v1940, 0
      %1950 = vmatprep.subr.mxu0 0.0
      %1951 = vmatpush1.msra.mxu0 %v1938
      %1952 = vmatprep.subr.mxu0 0.0
      %1953 = vmatpush1.msra.mxu0 %v1948
      %1954 = vmatprep.subr.mxu0 0.0
      %1955 = vmatpush1.msra.mxu0 0.0
      %1956 = vmatprep.subr.mxu0 0.0
      %1957 = vmatpush1.msra.mxu0 0.0
      %1958 = vmatprep.subr.mxu0 0.0
      %1959 = vmatpush1.msra.mxu0 0.0
      %1960 = vmatprep.subr.mxu0 0.0
      %1961 = vmatpush1.msra.mxu0 0.0
      %1962 = vmatprep.subr.mxu0 0.0
      %1963 = vmatpush1.msra.mxu0 0.0
      %1964 = vmatprep.subr.mxu0 0.0
      %1965 = vmatpush1.msra.mxu0 0.0
      %1966 = vmatprep.subr.mxu0 0.0
      %1967 = vmatpush1.msra.mxu0 0.0
      %1968 = vmatprep.subr.mxu0 0.0
      %1969 = vmatpush1.msra.mxu0 0.0
      %1970 = vmatprep.subr.mxu0 0.0
      %1971 = vmatpush1.msra.mxu0 0.0
      %1972 = vmatprep.subr.mxu0 0.0
      %1973 = vmatpush1.msra.mxu0 0.0
      %1974 = vmatprep.subr.mxu0 0.0
      %1975 = vmatpush1.msra.mxu0 0.0
      %1976 = vmatprep.subr.mxu0 0.0
      %1977 = vmatpush1.msra.mxu0 0.0
      %1978 = vmatprep.subr.mxu0 0.0
      %1979 = vmatpush1.msra.mxu0 0.0
      %1980 = vmatprep.subr.mxu0 0.0
      %1981 = vmatpush1.msra.mxu0 0.0
      %1982 = vmatprep.subr.mxu0 0.0
      %1983 = vmatpush1.msra.mxu0 0.0
      %1984 = vmatprep.subr.mxu0 0.0
      %1985 = vmatpush1.msra.mxu0 0.0
      %1986 = vmatprep.subr.mxu0 0.0
      %1987 = vmatpush1.msra.mxu0 0.0
      %1988 = vmatprep.subr.mxu0 0.0
      %1989 = vmatpush1.msra.mxu0 0.0
      %1990 = vmatprep.subr.mxu0 0.0
      %1991 = vmatpush1.msra.mxu0 0.0
      %1992 = vmatprep.subr.mxu0 0.0
      %1993 = vmatpush1.msra.mxu0 0.0
      %1994 = vmatprep.subr.mxu0 0.0
      %1995 = vmatpush1.msra.mxu0 0.0
      %1996 = vmatprep.subr.mxu0 0.0
      %1997 = vmatpush1.msra.mxu0 0.0
      %1998 = vmatprep.subr.mxu0 0.0
      %1999 = vmatpush1.msra.mxu0 0.0
      %2000 = vmatprep.subr.mxu0 0.0
      %2001 = vmatpush1.msra.mxu0 0.0
      %2002 = vmatprep.subr.mxu0 0.0
      %2003 = vmatpush1.msra.mxu0 0.0
      %2004 = vmatprep.subr.mxu0 0.0
      %2005 = vmatpush1.msra.mxu0 0.0
      %2006 = vmatprep.subr.mxu0 0.0
      %2007 = vmatpush1.msra.mxu0 0.0
      %2008 = vmatprep.subr.mxu0 0.0
      %2009 = vmatpush1.msra.mxu0 0.0
      %2010 = vmatprep.subr.mxu0 0.0
      %2011 = vmatpush1.msra.mxu0 0.0
      %2012 = vmatprep.subr.mxu0 0.0
      %2013 = vmatpush1.msra.mxu0 0.0
      %2014 = vmatprep.mubr.f32.mxu0 0.0
      %2015 = vmatmul.mubr.f32.gmra.mrb[0].mxu0 %v1943
      %v2016 = vpop.f32.mrb[0].mxu0
      %v2017 = vadd.f32 0.0, %v2016
      %v2018 = vpop.f32.mrb[0].mxu0
      %2019 = vmatprep.mubr.f32.mxu0 0.0
      %2020 = vmatmul.mubr.f32.gmra.mrb[0].mxu0 %v1946
      %v2021 = vpop.f32.mrb[0].mxu0
      %v2022 = vadd.f32 0.0, %v2021
      %v2023 = vpop.f32.mrb[0].mxu0
      %2024 = vdwg.mxu0
      %2025 = vrot.lane.b32.xlu0 %v1793, 120
      %v2026 = vpop.permute.xlu0 %2025
      %2027 = vrot.lane.b32.xlu0 %v1794, 120
      %v2028 = vpop.permute.xlu0 %2027
      %2029 = vrot.lane.b32.xlu0 %v1804, 88
      %v2030 = vpop.permute.xlu0 %2029
      %2031 = vrot.lane.b32.xlu0 %v1805, 88
      %v2032 = vpop.permute.xlu0 %2031
      %v2033 = vsel %vm430, %v2026, 0
      %v2035 = vsel %vm430, %v2028, 0
      %v2037 = vsel %vm430, %v2030, 0
      %v2039 = vsel %vm430, %v2032, 0
      %2041 = vmatprep.subr.mxu0 0.0
      %2042 = vmatpush1.xpose.msra.mxu0 %v2037
      %2043 = vmatprep.subr.mxu0 0.0
      %2044 = vmatpush1.xpose.msra.mxu0 %v2039
      %2045 = vmatprep.subr.mxu0 0.0
      %2046 = vmatpush1.xpose.msra.mxu0 0.0
      %2047 = vmatprep.subr.mxu0 0.0
      %2048 = vmatpush1.xpose.msra.mxu0 0.0
      %2049 = vmatprep.subr.mxu0 0.0
      %2050 = vmatpush1.xpose.msra.mxu0 0.0
      %2051 = vmatprep.subr.mxu0 0.0
      %2052 = vmatpush1.xpose.msra.mxu0 0.0
      %2053 = vmatprep.subr.mxu0 0.0
      %2054 = vmatpush1.xpose.msra.mxu0 0.0
      %2055 = vmatprep.subr.mxu0 0.0
      %2056 = vmatpush1.xpose.msra.mxu0 0.0
      %2057 = vmatprep.subr.mxu0 0.0
      %2058 = vmatpush1.xpose.msra.mxu0 0.0
      %2059 = vmatprep.subr.mxu0 0.0
      %2060 = vmatpush1.xpose.msra.mxu0 0.0
      %2061 = vmatprep.subr.mxu0 0.0
      %2062 = vmatpush1.xpose.msra.mxu0 0.0
      %2063 = vmatprep.subr.mxu0 0.0
      %2064 = vmatpush1.xpose.msra.mxu0 0.0
      %2065 = vmatprep.subr.mxu0 0.0
      %2066 = vmatpush1.xpose.msra.mxu0 0.0
      %2067 = vmatprep.subr.mxu0 0.0
      %2068 = vmatpush1.xpose.msra.mxu0 0.0
      %2069 = vmatprep.subr.mxu0 0.0
      %2070 = vmatpush1.xpose.msra.mxu0 0.0
      %2071 = vmatprep.subr.mxu0 0.0
      %2072 = vmatpush1.xpose.msra.mxu0 0.0
      %2073 = vmatprep.subr.mxu0 0.0
      %2074 = vmatpush1.xpose.msra.mxu0 0.0
      %2075 = vmatprep.subr.mxu0 0.0
      %2076 = vmatpush1.xpose.msra.mxu0 0.0
      %2077 = vmatprep.subr.mxu0 0.0
      %2078 = vmatpush1.xpose.msra.mxu0 0.0
      %2079 = vmatprep.subr.mxu0 0.0
      %2080 = vmatpush1.xpose.msra.mxu0 0.0
      %2081 = vmatprep.subr.mxu0 0.0
      %2082 = vmatpush1.xpose.msra.mxu0 0.0
      %2083 = vmatprep.subr.mxu0 0.0
      %2084 = vmatpush1.xpose.msra.mxu0 0.0
      %2085 = vmatprep.subr.mxu0 0.0
      %2086 = vmatpush1.xpose.msra.mxu0 0.0
      %2087 = vmatprep.subr.mxu0 0.0
      %2088 = vmatpush1.xpose.msra.mxu0 0.0
      %2089 = vmatprep.subr.mxu0 0.0
      %2090 = vmatpush1.xpose.msra.mxu0 0.0
      %2091 = vmatprep.subr.mxu0 0.0
      %2092 = vmatpush1.xpose.msra.mxu0 0.0
      %2093 = vmatprep.subr.mxu0 0.0
      %2094 = vmatpush1.xpose.msra.mxu0 0.0
      %2095 = vmatprep.subr.mxu0 0.0
      %2096 = vmatpush1.xpose.msra.mxu0 0.0
      %2097 = vmatprep.subr.mxu0 0.0
      %2098 = vmatpush1.xpose.msra.mxu0 0.0
      %2099 = vmatprep.subr.mxu0 0.0
      %2100 = vmatpush1.xpose.msra.mxu0 0.0
      %2101 = vmatprep.subr.mxu0 0.0
      %2102 = vmatpush1.xpose.msra.mxu0 0.0
      %2103 = vmatprep.subr.mxu0 0.0
      %2104 = vmatpush1.xpose.msra.mxu0 0.0
      %2105 = vmatprep.mubr.f32.mxu0 0.0
      %2106 = vmatmul.mubr.f32.gmra.mrb[0].mxu0 %v2033
      %v2107 = vpop.f32.mrb[0].mxu0
      %v2108 = vadd.f32 0.0, %v2107
      %v2109 = vpop.f32.mrb[0].mxu0
      %2110 = vmatprep.mubr.f32.mxu0 0.0
      %2111 = vmatmul.mubr.f32.gmra.mrb[0].mxu0 %v2035
      %v2112 = vpop.f32.mrb[0].mxu0
      %v2113 = vadd.f32 0.0, %v2112
      %v2114 = vpop.f32.mrb[0].mxu0
      %2115 = vdwg.mxu0
      %v2116 = vmul.f32 %v2108, 0.35355338
      %v2117 = vmul.f32 %v2113, 0.35355338
      %v2118 = vsel %vm518, %v2116, -inf
      %2119 = vmax.xlane.f32.xlu0 %v2118
      %v2120 = vpop.xlane.xlu0 %2119
      %v2121 = vsel %vm522, %v2117, -inf
      %2122 = vmax.xlane.f32.xlu0 %v2121
      %v2123 = vpop.xlane.xlu0 %2122
      %v2124 = vsub.f32 %v2116, %v2120
      %v2125 = vsub.f32 %v2117, %v2123
      %v2126 = vmul.f32 %v2124, 1.442695
      %v2127 = vpow.pop %v2126
      %v2128 = vmul.f32 %v2125, 1.442695
      %v2129 = vpow.pop %v2128
      %v2130 = vsel %vm518, %v2127, 0.0
      %2131 = vadd.xlane.f32.xlu0 %v2130
      %v2132 = vpop.xlane.xlu0 %2131
      %v2133 = vsel %vm522, %v2129, 0.0
      %2134 = vadd.xlane.f32.xlu0 %v2133
      %v2135 = vpop.xlane.xlu0 %2134
      %v2136 = vrcp.pop %v2132
      %v2137 = vmul.f32 %v2127, %v2136
      %v2138 = vrcp.pop %v2135
      %v2139 = vmul.f32 %v2129, %v2138
      %s2140 = scalar_lea.vmem %s264, 80
      %2141 = vst.msk [vmem:[%s2140] sm:$0xff] %vm518, %v2137
      %2142 = vst.msk [vmem:[%s2140 + $0x8] sm:$0x3f] %vm522, %v2139
      %2143 = vrot.lane.b32.xlu0 %v1815, 56
      %v2144 = vpop.permute.xlu0 %2143
      %2145 = vrot.lane.b32.xlu0 %v1816, 56
      %v2146 = vpop.permute.xlu0 %2145
      %v2149 = vsel %vm518, %v2137, 0
      %v2152 = vsel %vm518, %v2139, 0
      %v2154 = vsel %vm557, %v2146, 0
      %2156 = vmatprep.subr.mxu0 0.0
      %2157 = vmatpush1.msra.mxu0 %v2144
      %2158 = vmatprep.subr.mxu0 0.0
      %2159 = vmatpush1.msra.mxu0 %v2154
      %2160 = vmatprep.subr.mxu0 0.0
      %2161 = vmatpush1.msra.mxu0 0.0
      %2162 = vmatprep.subr.mxu0 0.0
      %2163 = vmatpush1.msra.mxu0 0.0
      %2164 = vmatprep.subr.mxu0 0.0
      %2165 = vmatpush1.msra.mxu0 0.0
      %2166 = vmatprep.subr.mxu0 0.0
      %2167 = vmatpush1.msra.mxu0 0.0
      %2168 = vmatprep.subr.mxu0 0.0
      %2169 = vmatpush1.msra.mxu0 0.0
      %2170 = vmatprep.subr.mxu0 0.0
      %2171 = vmatpush1.msra.mxu0 0.0
      %2172 = vmatprep.subr.mxu0 0.0
      %2173 = vmatpush1.msra.mxu0 0.0
      %2174 = vmatprep.subr.mxu0 0.0
      %2175 = vmatpush1.msra.mxu0 0.0
      %2176 = vmatprep.subr.mxu0 0.0
      %2177 = vmatpush1.msra.mxu0 0.0
      %2178 = vmatprep.subr.mxu0 0.0
      %2179 = vmatpush1.msra.mxu0 0.0
      %2180 = vmatprep.subr.mxu0 0.0
      %2181 = vmatpush1.msra.mxu0 0.0
      %2182 = vmatprep.subr.mxu0 0.0
      %2183 = vmatpush1.msra.mxu0 0.0
      %2184 = vmatprep.subr.mxu0 0.0
      %2185 = vmatpush1.msra.mxu0 0.0
      %2186 = vmatprep.subr.mxu0 0.0
      %2187 = vmatpush1.msra.mxu0 0.0
      %2188 = vmatprep.subr.mxu0 0.0
      %2189 = vmatpush1.msra.mxu0 0.0
      %2190 = vmatprep.subr.mxu0 0.0
      %2191 = vmatpush1.msra.mxu0 0.0
      %2192 = vmatprep.subr.mxu0 0.0
      %2193 = vmatpush1.msra.mxu0 0.0
      %2194 = vmatprep.subr.mxu0 0.0
      %2195 = vmatpush1.msra.mxu0 0.0
      %2196 = vmatprep.subr.mxu0 0.0
      %2197 = vmatpush1.msra.mxu0 0.0
      %2198 = vmatprep.subr.mxu0 0.0
      %2199 = vmatpush1.msra.mxu0 0.0
      %2200 = vmatprep.subr.mxu0 0.0
      %2201 = vmatpush1.msra.mxu0 0.0
      %2202 = vmatprep.subr.mxu0 0.0
      %2203 = vmatpush1.msra.mxu0 0.0
      %2204 = vmatprep.subr.mxu0 0.0
      %2205 = vmatpush1.msra.mxu0 0.0
      %2206 = vmatprep.subr.mxu0 0.0
      %2207 = vmatpush1.msra.mxu0 0.0
      %2208 = vmatprep.subr.mxu0 0.0
      %2209 = vmatpush1.msra.mxu0 0.0
      %2210 = vmatprep.subr.mxu0 0.0
      %2211 = vmatpush1.msra.mxu0 0.0
      %2212 = vmatprep.subr.mxu0 0.0
      %2213 = vmatpush1.msra.mxu0 0.0
      %2214 = vmatprep.subr.mxu0 0.0
      %2215 = vmatpush1.msra.mxu0 0.0
      %2216 = vmatprep.subr.mxu0 0.0
      %2217 = vmatpush1.msra.mxu0 0.0
      %2218 = vmatprep.subr.mxu0 0.0
      %2219 = vmatpush1.msra.mxu0 0.0
      %2220 = vmatprep.mubr.f32.mxu0 0.0
      %2221 = vmatmul.mubr.f32.gmra.mrb[0].mxu0 %v2149
      %v2222 = vpop.f32.mrb[0].mxu0
      %v2223 = vadd.f32 0.0, %v2222
      %v2224 = vpop.f32.mrb[0].mxu0
      %2225 = vmatprep.mubr.f32.mxu0 0.0
      %2226 = vmatmul.mubr.f32.gmra.mrb[0].mxu0 %v2152
      %v2227 = vpop.f32.mrb[0].mxu0
      %v2228 = vadd.f32 0.0, %v2227
      %v2229 = vpop.f32.mrb[0].mxu0
      %2230 = vdwg.mxu0
      %2231 = vrot.lane.b32.xlu0 %v1793, 112
      %v2232 = vpop.permute.xlu0 %2231
      %2233 = vrot.lane.b32.xlu0 %v1794, 112
      %v2234 = vpop.permute.xlu0 %2233
      %2235 = vrot.lane.b32.xlu0 %v1804, 80
      %v2236 = vpop.permute.xlu0 %2235
      %2237 = vrot.lane.b32.xlu0 %v1805, 80
      %v2238 = vpop.permute.xlu0 %2237
      %v2239 = vsel %vm430, %v2232, 0
      %v2241 = vsel %vm430, %v2234, 0
      %v2243 = vsel %vm430, %v2236, 0
      %v2245 = vsel %vm430, %v2238, 0
      %2247 = vmatprep.subr.mxu0 0.0
      %2248 = vmatpush1.xpose.msra.mxu0 %v2243
      %2249 = vmatprep.subr.mxu0 0.0
      %2250 = vmatpush1.xpose.msra.mxu0 %v2245
      %2251 = vmatprep.subr.mxu0 0.0
      %2252 = vmatpush1.xpose.msra.mxu0 0.0
      %2253 = vmatprep.subr.mxu0 0.0
      %2254 = vmatpush1.xpose.msra.mxu0 0.0
      %2255 = vmatprep.subr.mxu0 0.0
      %2256 = vmatpush1.xpose.msra.mxu0 0.0
      %2257 = vmatprep.subr.mxu0 0.0
      %2258 = vmatpush1.xpose.msra.mxu0 0.0
      %2259 = vmatprep.subr.mxu0 0.0
      %2260 = vmatpush1.xpose.msra.mxu0 0.0
      %2261 = vmatprep.subr.mxu0 0.0
      %2262 = vmatpush1.xpose.msra.mxu0 0.0
      %2263 = vmatprep.subr.mxu0 0.0
      %2264 = vmatpush1.xpose.msra.mxu0 0.0
      %2265 = vmatprep.subr.mxu0 0.0
      %2266 = vmatpush1.xpose.msra.mxu0 0.0
      %2267 = vmatprep.subr.mxu0 0.0
      %2268 = vmatpush1.xpose.msra.mxu0 0.0
      %2269 = vmatprep.subr.mxu0 0.0
      %2270 = vmatpush1.xpose.msra.mxu0 0.0
      %2271 = vmatprep.subr.mxu0 0.0
      %2272 = vmatpush1.xpose.msra.mxu0 0.0
      %2273 = vmatprep.subr.mxu0 0.0
      %2274 = vmatpush1.xpose.msra.mxu0 0.0
      %2275 = vmatprep.subr.mxu0 0.0
      %2276 = vmatpush1.xpose.msra.mxu0 0.0
      %2277 = vmatprep.subr.mxu0 0.0
      %2278 = vmatpush1.xpose.msra.mxu0 0.0
      %2279 = vmatprep.subr.mxu0 0.0
      %2280 = vmatpush1.xpose.msra.mxu0 0.0
      %2281 = vmatprep.subr.mxu0 0.0
      %2282 = vmatpush1.xpose.msra.mxu0 0.0
      %2283 = vmatprep.subr.mxu0 0.0
      %2284 = vmatpush1.xpose.msra.mxu0 0.0
      %2285 = vmatprep.subr.mxu0 0.0
      %2286 = vmatpush1.xpose.msra.mxu0 0.0
      %2287 = vmatprep.subr.mxu0 0.0
      %2288 = vmatpush1.xpose.msra.mxu0 0.0
      %2289 = vmatprep.subr.mxu0 0.0
      %2290 = vmatpush1.xpose.msra.mxu0 0.0
      %2291 = vmatprep.subr.mxu0 0.0
      %2292 = vmatpush1.xpose.msra.mxu0 0.0
      %2293 = vmatprep.subr.mxu0 0.0
      %2294 = vmatpush1.xpose.msra.mxu0 0.0
      %2295 = vmatprep.subr.mxu0 0.0
      %2296 = vmatpush1.xpose.msra.mxu0 0.0
      %2297 = vmatprep.subr.mxu0 0.0
      %2298 = vmatpush1.xpose.msra.mxu0 0.0
      %2299 = vmatprep.subr.mxu0 0.0
      %2300 = vmatpush1.xpose.msra.mxu0 0.0
      %2301 = vmatprep.subr.mxu0 0.0
      %2302 = vmatpush1.xpose.msra.mxu0 0.0
      %2303 = vmatprep.subr.mxu0 0.0
      %2304 = vmatpush1.xpose.msra.mxu0 0.0
      %2305 = vmatprep.subr.mxu0 0.0
      %2306 = vmatpush1.xpose.msra.mxu0 0.0
      %2307 = vmatprep.subr.mxu0 0.0
      %2308 = vmatpush1.xpose.msra.mxu0 0.0
      %2309 = vmatprep.subr.mxu0 0.0
      %2310 = vmatpush1.xpose.msra.mxu0 0.0
      %2311 = vmatprep.mubr.f32.mxu0 0.0
      %2312 = vmatmul.mubr.f32.gmra.mrb[0].mxu0 %v2239
      %v2313 = vpop.f32.mrb[0].mxu0
      %v2314 = vadd.f32 0.0, %v2313
      %v2315 = vpop.f32.mrb[0].mxu0
      %2316 = vmatprep.mubr.f32.mxu0 0.0
      %2317 = vmatmul.mubr.f32.gmra.mrb[0].mxu0 %v2241
      %v2318 = vpop.f32.mrb[0].mxu0
      %v2319 = vadd.f32 0.0, %v2318
      %v2320 = vpop.f32.mrb[0].mxu0
      %2321 = vdwg.mxu0
      %v2322 = vmul.f32 %v2314, 0.35355338
      %v2323 = vmul.f32 %v2319, 0.35355338
      %v2324 = vsel %vm518, %v2322, -inf
      %2325 = vmax.xlane.f32.xlu0 %v2324
      %v2326 = vpop.xlane.xlu0 %2325
      %v2327 = vsel %vm522, %v2323, -inf
      %2328 = vmax.xlane.f32.xlu0 %v2327
      %v2329 = vpop.xlane.xlu0 %2328
      %v2330 = vsub.f32 %v2322, %v2326
      %v2331 = vsub.f32 %v2323, %v2329
      %v2332 = vmul.f32 %v2330, 1.442695
      %v2333 = vpow.pop %v2332
      %v2334 = vmul.f32 %v2331, 1.442695
      %v2335 = vpow.pop %v2334
      %v2336 = vsel %vm518, %v2333, 0.0
      %2337 = vadd.xlane.f32.xlu0 %v2336
      %v2338 = vpop.xlane.xlu0 %2337
      %v2339 = vsel %vm522, %v2335, 0.0
      %2340 = vadd.xlane.f32.xlu0 %v2339
      %v2341 = vpop.xlane.xlu0 %2340
      %v2342 = vrcp.pop %v2338
      %v2343 = vmul.f32 %v2333, %v2342
      %v2344 = vrcp.pop %v2341
      %v2345 = vmul.f32 %v2335, %v2344
      %s2346 = scalar_lea.vmem %s264, 96
      %2347 = vst.msk [vmem:[%s2346] sm:$0xff] %vm518, %v2343
      %2348 = vst.msk [vmem:[%s2346 + $0x8] sm:$0x3f] %vm522, %v2345
      %2349 = vrot.lane.b32.xlu0 %v1815, 48
      %v2350 = vpop.permute.xlu0 %2349
      %2351 = vrot.lane.b32.xlu0 %v1816, 48
      %v2352 = vpop.permute.xlu0 %2351
      %v2355 = vsel %vm518, %v2343, 0
      %v2358 = vsel %vm518, %v2345, 0
      %v2360 = vsel %vm557, %v2352, 0
      %2362 = vmatprep.subr.mxu0 0.0
      %2363 = vmatpush1.msra.mxu0 %v2350
      %2364 = vmatprep.subr.mxu0 0.0
      %2365 = vmatpush1.msra.mxu0 %v2360
      %2366 = vmatprep.subr.mxu0 0.0
      %2367 = vmatpush1.msra.mxu0 0.0
      %2368 = vmatprep.subr.mxu0 0.0
      %2369 = vmatpush1.msra.mxu0 0.0
      %2370 = vmatprep.subr.mxu0 0.0
      %2371 = vmatpush1.msra.mxu0 0.0
      %2372 = vmatprep.subr.mxu0 0.0
      %2373 = vmatpush1.msra.mxu0 0.0
      %2374 = vmatprep.subr.mxu0 0.0
      %2375 = vmatpush1.msra.mxu0 0.0
      %2376 = vmatprep.subr.mxu0 0.0
      %2377 = vmatpush1.msra.mxu0 0.0
      %2378 = vmatprep.subr.mxu0 0.0
      %2379 = vmatpush1.msra.mxu0 0.0
      %2380 = vmatprep.subr.mxu0 0.0
      %2381 = vmatpush1.msra.mxu0 0.0
      %2382 = vmatprep.subr.mxu0 0.0
      %2383 = vmatpush1.msra.mxu0 0.0
      %2384 = vmatprep.subr.mxu0 0.0
      %2385 = vmatpush1.msra.mxu0 0.0
      %2386 = vmatprep.subr.mxu0 0.0
      %2387 = vmatpush1.msra.mxu0 0.0
      %2388 = vmatprep.subr.mxu0 0.0
      %2389 = vmatpush1.msra.mxu0 0.0
      %2390 = vmatprep.subr.mxu0 0.0
      %2391 = vmatpush1.msra.mxu0 0.0
      %2392 = vmatprep.subr.mxu0 0.0
      %2393 = vmatpush1.msra.mxu0 0.0
      %2394 = vmatprep.subr.mxu0 0.0
      %2395 = vmatpush1.msra.mxu0 0.0
      %2396 = vmatprep.subr.mxu0 0.0
      %2397 = vmatpush1.msra.mxu0 0.0
      %2398 = vmatprep.subr.mxu0 0.0
      %2399 = vmatpush1.msra.mxu0 0.0
      %2400 = vmatprep.subr.mxu0 0.0
      %2401 = vmatpush1.msra.mxu0 0.0
      %2402 = vmatprep.subr.mxu0 0.0
      %2403 = vmatpush1.msra.mxu0 0.0
      %2404 = vmatprep.subr.mxu0 0.0
      %2405 = vmatpush1.msra.mxu0 0.0
      %2406 = vmatprep.subr.mxu0 0.0
      %2407 = vmatpush1.msra.mxu0 0.0
      %2408 = vmatprep.subr.mxu0 0.0
      %2409 = vmatpush1.msra.mxu0 0.0
      %2410 = vmatprep.subr.mxu0 0.0
      %2411 = vmatpush1.msra.mxu0 0.0
      %2412 = vmatprep.subr.mxu0 0.0
      %2413 = vmatpush1.msra.mxu0 0.0
      %2414 = vmatprep.subr.mxu0 0.0
      %2415 = vmatpush1.msra.mxu0 0.0
      %2416 = vmatprep.subr.mxu0 0.0
      %2417 = vmatpush1.msra.mxu0 0.0
      %2418 = vmatprep.subr.mxu0 0.0
      %2419 = vmatpush1.msra.mxu0 0.0
      %2420 = vmatprep.subr.mxu0 0.0
      %2421 = vmatpush1.msra.mxu0 0.0
      %2422 = vmatprep.subr.mxu0 0.0
      %2423 = vmatpush1.msra.mxu0 0.0
      %2424 = vmatprep.subr.mxu0 0.0
      %2425 = vmatpush1.msra.mxu0 0.0
      %2426 = vmatprep.mubr.f32.mxu0 0.0
      %2427 = vmatmul.mubr.f32.gmra.mrb[0].mxu0 %v2355
      %v2428 = vpop.f32.mrb[0].mxu0
      %v2429 = vadd.f32 0.0, %v2428
      %v2430 = vpop.f32.mrb[0].mxu0
      %2431 = vmatprep.mubr.f32.mxu0 0.0
      %2432 = vmatmul.mubr.f32.gmra.mrb[0].mxu0 %v2358
      %v2433 = vpop.f32.mrb[0].mxu0
      %v2434 = vadd.f32 0.0, %v2433
      %v2435 = vpop.f32.mrb[0].mxu0
      %2436 = vdwg.mxu0
      %2437 = vrot.lane.b32.xlu0 %v1793, 104
      %v2438 = vpop.permute.xlu0 %2437
      %2439 = vrot.lane.b32.xlu0 %v1794, 104
      %v2440 = vpop.permute.xlu0 %2439
      %2441 = vrot.lane.b32.xlu0 %v1804, 72
      %v2442 = vpop.permute.xlu0 %2441
      %2443 = vrot.lane.b32.xlu0 %v1805, 72
      %v2444 = vpop.permute.xlu0 %2443
      %v2445 = vsel %vm430, %v2438, 0
      %v2447 = vsel %vm430, %v2440, 0
      %v2449 = vsel %vm430, %v2442, 0
      %v2451 = vsel %vm430, %v2444, 0
      %2453 = vmatprep.subr.mxu0 0.0
      %2454 = vmatpush1.xpose.msra.mxu0 %v2449
      %2455 = vmatprep.subr.mxu0 0.0
      %2456 = vmatpush1.xpose.msra.mxu0 %v2451
      %2457 = vmatprep.subr.mxu0 0.0
      %2458 = vmatpush1.xpose.msra.mxu0 0.0
      %2459 = vmatprep.subr.mxu0 0.0
      %2460 = vmatpush1.xpose.msra.mxu0 0.0
      %2461 = vmatprep.subr.mxu0 0.0
      %2462 = vmatpush1.xpose.msra.mxu0 0.0
      %2463 = vmatprep.subr.mxu0 0.0
      %2464 = vmatpush1.xpose.msra.mxu0 0.0
      %2465 = vmatprep.subr.mxu0 0.0
      %2466 = vmatpush1.xpose.msra.mxu0 0.0
      %2467 = vmatprep.subr.mxu0 0.0
      %2468 = vmatpush1.xpose.msra.mxu0 0.0
      %2469 = vmatprep.subr.mxu0 0.0
      %2470 = vmatpush1.xpose.msra.mxu0 0.0
      %2471 = vmatprep.subr.mxu0 0.0
      %2472 = vmatpush1.xpose.msra.mxu0 0.0
      %2473 = vmatprep.subr.mxu0 0.0
      %2474 = vmatpush1.xpose.msra.mxu0 0.0
      %2475 = vmatprep.subr.mxu0 0.0
      %2476 = vmatpush1.xpose.msra.mxu0 0.0
      %2477 = vmatprep.subr.mxu0 0.0
      %2478 = vmatpush1.xpose.msra.mxu0 0.0
      %2479 = vmatprep.subr.mxu0 0.0
      %2480 = vmatpush1.xpose.msra.mxu0 0.0
      %2481 = vmatprep.subr.mxu0 0.0
      %2482 = vmatpush1.xpose.msra.mxu0 0.0
      %2483 = vmatprep.subr.mxu0 0.0
      %2484 = vmatpush1.xpose.msra.mxu0 0.0
      %2485 = vmatprep.subr.mxu0 0.0
      %2486 = vmatpush1.xpose.msra.mxu0 0.0
      %2487 = vmatprep.subr.mxu0 0.0
      %2488 = vmatpush1.xpose.msra.mxu0 0.0
      %2489 = vmatprep.subr.mxu0 0.0
      %2490 = vmatpush1.xpose.msra.mxu0 0.0
      %2491 = vmatprep.subr.mxu0 0.0
      %2492 = vmatpush1.xpose.msra.mxu0 0.0
      %2493 = vmatprep.subr.mxu0 0.0
      %2494 = vmatpush1.xpose.msra.mxu0 0.0
      %2495 = vmatprep.subr.mxu0 0.0
      %2496 = vmatpush1.xpose.msra.mxu0 0.0
      %2497 = vmatprep.subr.mxu0 0.0
      %2498 = vmatpush1.xpose.msra.mxu0 0.0
      %2499 = vmatprep.subr.mxu0 0.0
      %2500 = vmatpush1.xpose.msra.mxu0 0.0
      %2501 = vmatprep.subr.mxu0 0.0
      %2502 = vmatpush1.xpose.msra.mxu0 0.0
      %2503 = vmatprep.subr.mxu0 0.0
      %2504 = vmatpush1.xpose.msra.mxu0 0.0
      %2505 = vmatprep.subr.mxu0 0.0
      %2506 = vmatpush1.xpose.msra.mxu0 0.0
      %2507 = vmatprep.subr.mxu0 0.0
      %2508 = vmatpush1.xpose.msra.mxu0 0.0
      %2509 = vmatprep.subr.mxu0 0.0
      %2510 = vmatpush1.xpose.msra.mxu0 0.0
      %2511 = vmatprep.subr.mxu0 0.0
      %2512 = vmatpush1.xpose.msra.mxu0 0.0
      %2513 = vmatprep.subr.mxu0 0.0
      %2514 = vmatpush1.xpose.msra.mxu0 0.0
      %2515 = vmatprep.subr.mxu0 0.0
      %2516 = vmatpush1.xpose.msra.mxu0 0.0
      %2517 = vmatprep.mubr.f32.mxu0 0.0
      %2518 = vmatmul.mubr.f32.gmra.mrb[0].mxu0 %v2445
      %v2519 = vpop.f32.mrb[0].mxu0
      %v2520 = vadd.f32 0.0, %v2519
      %v2521 = vpop.f32.mrb[0].mxu0
      %2522 = vmatprep.mubr.f32.mxu0 0.0
      %2523 = vmatmul.mubr.f32.gmra.mrb[0].mxu0 %v2447
      %v2524 = vpop.f32.mrb[0].mxu0
      %v2525 = vadd.f32 0.0, %v2524
      %v2526 = vpop.f32.mrb[0].mxu0
      %2527 = vdwg.mxu0
      %v2528 = vmul.f32 %v2520, 0.35355338
      %v2529 = vmul.f32 %v2525, 0.35355338
      %v2530 = vsel %vm518, %v2528, -inf
      %2531 = vmax.xlane.f32.xlu0 %v2530
      %v2532 = vpop.xlane.xlu0 %2531
      %v2533 = vsel %vm522, %v2529, -inf
      %2534 = vmax.xlane.f32.xlu0 %v2533
      %v2535 = vpop.xlane.xlu0 %2534
      %v2536 = vsub.f32 %v2528, %v2532
      %v2537 = vsub.f32 %v2529, %v2535
      %v2538 = vmul.f32 %v2536, 1.442695
      %v2539 = vpow.pop %v2538
      %v2540 = vmul.f32 %v2537, 1.442695
      %v2541 = vpow.pop %v2540
      %v2542 = vsel %vm518, %v2539, 0.0
      %2543 = vadd.xlane.f32.xlu0 %v2542
      %v2544 = vpop.xlane.xlu0 %2543
      %v2545 = vsel %vm522, %v2541, 0.0
      %2546 = vadd.xlane.f32.xlu0 %v2545
      %v2547 = vpop.xlane.xlu0 %2546
      %v2548 = vrcp.pop %v2544
      %v2549 = vmul.f32 %v2539, %v2548
      %v2550 = vrcp.pop %v2547
      %v2551 = vmul.f32 %v2541, %v2550
      %s2552 = scalar_lea.vmem %s264, 112
      %2553 = vst.msk [vmem:[%s2552] sm:$0xff] %vm518, %v2549
      %2554 = vst.msk [vmem:[%s2552 + $0x8] sm:$0x3f] %vm522, %v2551
      %2555 = vrot.lane.b32.xlu0 %v1815, 40
      %v2556 = vpop.permute.xlu0 %2555
      %2557 = vrot.lane.b32.xlu0 %v1816, 40
      %v2558 = vpop.permute.xlu0 %2557
      %v2561 = vsel %vm518, %v2549, 0
      %v2564 = vsel %vm518, %v2551, 0
      %v2566 = vsel %vm557, %v2558, 0
      %2568 = vmatprep.subr.mxu0 0.0
      %2569 = vmatpush1.msra.mxu0 %v2556
      %2570 = vmatprep.subr.mxu0 0.0
      %2571 = vmatpush1.msra.mxu0 %v2566
      %2572 = vmatprep.subr.mxu0 0.0
      %2573 = vmatpush1.msra.mxu0 0.0
      %2574 = vmatprep.subr.mxu0 0.0
      %2575 = vmatpush1.msra.mxu0 0.0
      %2576 = vmatprep.subr.mxu0 0.0
      %2577 = vmatpush1.msra.mxu0 0.0
      %2578 = vmatprep.subr.mxu0 0.0
      %2579 = vmatpush1.msra.mxu0 0.0
      %2580 = vmatprep.subr.mxu0 0.0
      %2581 = vmatpush1.msra.mxu0 0.0
      %2582 = vmatprep.subr.mxu0 0.0
      %2583 = vmatpush1.msra.mxu0 0.0
      %2584 = vmatprep.subr.mxu0 0.0
      %2585 = vmatpush1.msra.mxu0 0.0
      %2586 = vmatprep.subr.mxu0 0.0
      %2587 = vmatpush1.msra.mxu0 0.0
      %2588 = vmatprep.subr.mxu0 0.0
      %2589 = vmatpush1.msra.mxu0 0.0
      %2590 = vmatprep.subr.mxu0 0.0
      %2591 = vmatpush1.msra.mxu0 0.0
      %2592 = vmatprep.subr.mxu0 0.0
      %2593 = vmatpush1.msra.mxu0 0.0
      %2594 = vmatprep.subr.mxu0 0.0
      %2595 = vmatpush1.msra.mxu0 0.0
      %2596 = vmatprep.subr.mxu0 0.0
      %2597 = vmatpush1.msra.mxu0 0.0
      %2598 = vmatprep.subr.mxu0 0.0
      %2599 = vmatpush1.msra.mxu0 0.0
      %2600 = vmatprep.subr.mxu0 0.0
      %2601 = vmatpush1.msra.mxu0 0.0
      %2602 = vmatprep.subr.mxu0 0.0
      %2603 = vmatpush1.msra.mxu0 0.0
      %2604 = vmatprep.subr.mxu0 0.0
      %2605 = vmatpush1.msra.mxu0 0.0
      %2606 = vmatprep.subr.mxu0 0.0
      %2607 = vmatpush1.msra.mxu0 0.0
      %2608 = vmatprep.subr.mxu0 0.0
      %2609 = vmatpush1.msra.mxu0 0.0
      %2610 = vmatprep.subr.mxu0 0.0
      %2611 = vmatpush1.msra.mxu0 0.0
      %2612 = vmatprep.subr.mxu0 0.0
      %2613 = vmatpush1.msra.mxu0 0.0
      %2614 = vmatprep.subr.mxu0 0.0
      %2615 = vmatpush1.msra.mxu0 0.0
      %2616 = vmatprep.subr.mxu0 0.0
      %2617 = vmatpush1.msra.mxu0 0.0
      %2618 = vmatprep.subr.mxu0 0.0
      %2619 = vmatpush1.msra.mxu0 0.0
      %2620 = vmatprep.subr.mxu0 0.0
      %2621 = vmatpush1.msra.mxu0 0.0
      %2622 = vmatprep.subr.mxu0 0.0
      %2623 = vmatpush1.msra.mxu0 0.0
      %2624 = vmatprep.subr.mxu0 0.0
      %2625 = vmatpush1.msra.mxu0 0.0
      %2626 = vmatprep.subr.mxu0 0.0
      %2627 = vmatpush1.msra.mxu0 0.0
      %2628 = vmatprep.subr.mxu0 0.0
      %2629 = vmatpush1.msra.mxu0 0.0
      %2630 = vmatprep.subr.mxu0 0.0
      %2631 = vmatpush1.msra.mxu0 0.0
      %2632 = vmatprep.mubr.f32.mxu0 0.0
      %2633 = vmatmul.mubr.f32.gmra.mrb[0].mxu0 %v2561
      %v2634 = vpop.f32.mrb[0].mxu0
      %v2635 = vadd.f32 0.0, %v2634
      %v2636 = vpop.f32.mrb[0].mxu0
      %2637 = vmatprep.mubr.f32.mxu0 0.0
      %2638 = vmatmul.mubr.f32.gmra.mrb[0].mxu0 %v2564
      %v2639 = vpop.f32.mrb[0].mxu0
      %v2640 = vadd.f32 0.0, %v2639
      %v2641 = vpop.f32.mrb[0].mxu0
      %2642 = vdwg.mxu0
      %2645 = vrot.lane.b32.xlu0 %v2223, 8
      %v2646 = vpop.permute.xlu0 %2645
      %2647 = vrot.lane.b32.xlu0 %v2228, 8
      %v2648 = vpop.permute.xlu0 %2647
      %2653 = vrot.lane.b32.xlu0 %v2429, 16
      %v2654 = vpop.permute.xlu0 %2653
      %2655 = vrot.lane.b32.xlu0 %v2434, 16
      %v2656 = vpop.permute.xlu0 %2655
      %2661 = vrot.lane.b32.xlu0 %v2635, 24
      %v2662 = vpop.permute.xlu0 %2661
      %2663 = vrot.lane.b32.xlu0 %v2640, 24
      %v2664 = vpop.permute.xlu0 %2663
      %v2667 = vsel %vm430, %v2017, %v2646
      %v2668 = vsel %vm430, %v2022, %v2648
      %v2669 = vsel %vm1279, %v2667, %v2654
      %v2670 = vsel %vm1279, %v2668, %v2656
      %v2671 = vsel %vm1282, %v2669, %v2662
      %v2672 = vsel %vm1282, %v2670, %v2664
      %v2673 = vld [vmem:[%s3 + $0xa0] sm:$0xff]
      %v2674 = vld [vmem:[%s3 + $0xa8] sm:$0xff]
      %v2675 = vld [vmem:[%s3 + $0xb0] sm:$0xff]
      %v2676 = vld [vmem:[%s3 + $0xb8] sm:$0xff]
      %v2678 = vsel %vm269, %v2671, 0
      %v2681 = vsel %vm269, %v2672, 0
      %2683 = vmatprep.subr.mxu0 0.0
      %2684 = vmatpush1.msra.mxu0 %v2673
      %2685 = vmatprep.subr.mxu0 0.0
      %2686 = vmatpush1.msra.mxu0 %v2674
      %2687 = vmatprep.subr.mxu0 0.0
      %2688 = vmatpush1.msra.mxu0 %v2675
      %2689 = vmatprep.subr.mxu0 0.0
      %2690 = vmatpush1.msra.mxu0 %v2676
      %2691 = vmatprep.subr.mxu0 0.0
      %2692 = vmatpush1.msra.mxu0 0.0
      %2693 = vmatprep.subr.mxu0 0.0
      %2694 = vmatpush1.msra.mxu0 0.0
      %2695 = vmatprep.subr.mxu0 0.0
      %2696 = vmatpush1.msra.mxu0 0.0
      %2697 = vmatprep.subr.mxu0 0.0
      %2698 = vmatpush1.msra.mxu0 0.0
      %2699 = vmatprep.subr.mxu0 0.0
      %2700 = vmatpush1.msra.mxu0 0.0
      %2701 = vmatprep.subr.mxu0 0.0
      %2702 = vmatpush1.msra.mxu0 0.0
      %2703 = vmatprep.subr.mxu0 0.0
      %2704 = vmatpush1.msra.mxu0 0.0
      %2705 = vmatprep.subr.mxu0 0.0
      %2706 = vmatpush1.msra.mxu0 0.0
      %2707 = vmatprep.subr.mxu0 0.0
      %2708 = vmatpush1.msra.mxu0 0.0
      %2709 = vmatprep.subr.mxu0 0.0
      %2710 = vmatpush1.msra.mxu0 0.0
      %2711 = vmatprep.subr.mxu0 0.0
      %2712 = vmatpush1.msra.mxu0 0.0
      %2713 = vmatprep.subr.mxu0 0.0
      %2714 = vmatpush1.msra.mxu0 0.0
      %2715 = vmatprep.subr.mxu0 0.0
      %2716 = vmatpush1.msra.mxu0 0.0
      %2717 = vmatprep.subr.mxu0 0.0
      %2718 = vmatpush1.msra.mxu0 0.0
      %2719 = vmatprep.subr.mxu0 0.0
      %2720 = vmatpush1.msra.mxu0 0.0
      %2721 = vmatprep.subr.mxu0 0.0
      %2722 = vmatpush1.msra.mxu0 0.0
      %2723 = vmatprep.subr.mxu0 0.0
      %2724 = vmatpush1.msra.mxu0 0.0
      %2725 = vmatprep.subr.mxu0 0.0
      %2726 = vmatpush1.msra.mxu0 0.0
      %2727 = vmatprep.subr.mxu0 0.0
      %2728 = vmatpush1.msra.mxu0 0.0
      %2729 = vmatprep.subr.mxu0 0.0
      %2730 = vmatpush1.msra.mxu0 0.0
      %2731 = vmatprep.subr.mxu0 0.0
      %2732 = vmatpush1.msra.mxu0 0.0
      %2733 = vmatprep.subr.mxu0 0.0
      %2734 = vmatpush1.msra.mxu0 0.0
      %2735 = vmatprep.subr.mxu0 0.0
      %2736 = vmatpush1.msra.mxu0 0.0
      %2737 = vmatprep.subr.mxu0 0.0
      %2738 = vmatpush1.msra.mxu0 0.0
      %2739 = vmatprep.subr.mxu0 0.0
      %2740 = vmatpush1.msra.mxu0 0.0
      %2741 = vmatprep.subr.mxu0 0.0
      %2742 = vmatpush1.msra.mxu0 0.0
      %2743 = vmatprep.subr.mxu0 0.0
      %2744 = vmatpush1.msra.mxu0 0.0
      %2745 = vmatprep.subr.mxu0 0.0
      %2746 = vmatpush1.msra.mxu0 0.0
      %2747 = vmatprep.mubr.f32.mxu0 0.0
      %2748 = vmatmul.mubr.f32.gmra.mrb[0].mxu0 %v2678
      %v2749 = vpop.f32.mrb[0].mxu0
      %v2750 = vadd.f32 0.0, %v2749
      %v2751 = vpop.f32.mrb[0].mxu0
      %2752 = vmatprep.mubr.f32.mxu0 0.0
      %2753 = vmatmul.mubr.f32.gmra.mrb[0].mxu0 %v2681
      %v2754 = vpop.f32.mrb[0].mxu0
      %v2755 = vadd.f32 0.0, %v2754
      %v2756 = vpop.f32.mrb[0].mxu0
      %2757 = vdwg.mxu0
      %v2758 = vadd.f32 %v1661, %v2750
      %v2759 = vadd.f32 %v1662, %v2755
      %v2760 = vld [vmem:[%s1 + $0xf] sm:$0x1]
      %v2761 = vlaneseq
      %v2762 = vshrl.u32 %v2761, 7
      %v2763 = vsub.s32 0, %v2762
      %v2764 = vrot.slane %v2760, %v2763
      %v2765 = vadd.f32 %v2758, %v2764
      %v2766 = vadd.f32 %v2759, %v2764
      %v2767 = vld [vmem:[%s1 + $0x10] sm:$0x1]
      %v2768 = vld [vmem:[%s1 + $0x11] sm:$0x1]
      %v2769 = vsel %vm269, %v2765, 0.0
      %2770 = vadd.xlane.f32.xlu0 %v2769
      %v2771 = vpop.xlane.xlu0 %2770
      %v2772 = vsel %vm273, %v2766, 0.0
      %2773 = vadd.xlane.f32.xlu0 %v2772
      %v2774 = vpop.xlane.xlu0 %2773
      %v2775 = vmul.f32 %v2771, %v277
      %v2776 = vmul.f32 %v2774, %v277
      %v2777 = vsub.f32 %v2765, %v2775
      %v2778 = vsub.f32 %v2766, %v2776
      %v2779 = vmul.f32 %v2777, %v2777
      %v2780 = vmul.f32 %v2778, %v2778
      %v2781 = vsel %vm269, %v2779, 0.0
      %2782 = vadd.xlane.f32.xlu0 %v2781
      %v2783 = vpop.xlane.xlu0 %2782
      %v2784 = vsel %vm273, %v2780, 0.0
      %2785 = vadd.xlane.f32.xlu0 %v2784
      %v2786 = vpop.xlane.xlu0 %2785
      %v2787 = vmul.f32 %v2783, %v277
      %v2788 = vmul.f32 %v2786, %v277
      %v2789 = vadd.f32 %v2787, 1e-05
      %v2790 = vadd.f32 %v2788, 1e-05
      %v2791 = vrsqrt.pop %v2789
      %v2792 = vrsqrt.pop %v2790
      %v2793 = vmul.f32 %v2777, %v2791
      %v2794 = vmul.f32 %v2778, %v2792
      %v2795 = vlaneseq
      %v2796 = vshrl.u32 %v2795, 7
      %v2797 = vsub.s32 0, %v2796
      %v2798 = vrot.slane %v2767, %v2797
      %v2799 = vmul.f32 %v2793, %v2798
      %v2800 = vmul.f32 %v2794, %v2798
      %v2801 = vlaneseq
      %v2802 = vshrl.u32 %v2801, 7
      %v2803 = vsub.s32 0, %v2802
      %v2804 = vrot.slane %v2768, %v2803
      %v2805 = vadd.f32 %v2799, %v2804
      %v2806 = vadd.f32 %v2800, %v2804
      %v2807 = vld [vmem:[%s4 + $0x20] sm:$0xff]
      %v2808 = vld [vmem:[%s4 + $0x28] sm:$0xff]
      %v2809 = vld [vmem:[%s4 + $0x30] sm:$0xff]
      %v2810 = vld [vmem:[%s4 + $0x38] sm:$0xff]
      %v2811 = vld [vmem:[%s1 + $0x12] sm:$0x1]
      %v2812 = vlaneseq
      %v2813 = vshrl.u32 %v2812, 7
      %v2814 = vsub.s32 0, %v2813
      %v2815 = vrot.slane %v2811, %v2814
      %v2817 = vsel %vm269, %v2805, 0
      %v2820 = vsel %vm269, %v2806, 0
      %2822 = vmatprep.subr.mxu0 0.0
      %2823 = vmatpush1.msra.mxu0 %v2807
      %2824 = vmatprep.subr.mxu0 0.0
      %2825 = vmatpush1.msra.mxu0 %v2808
      %2826 = vmatprep.subr.mxu0 0.0
      %2827 = vmatpush1.msra.mxu0 %v2809
      %2828 = vmatprep.subr.mxu0 0.0
      %2829 = vmatpush1.msra.mxu0 %v2810
      %2830 = vmatprep.subr.mxu0 0.0
      %2831 = vmatpush1.msra.mxu0 0.0
      %2832 = vmatprep.subr.mxu0 0.0
      %2833 = vmatpush1.msra.mxu0 0.0
      %2834 = vmatprep.subr.mxu0 0.0
      %2835 = vmatpush1.msra.mxu0 0.0
      %2836 = vmatprep.subr.mxu0 0.0
      %2837 = vmatpush1.msra.mxu0 0.0
      %2838 = vmatprep.subr.mxu0 0.0
      %2839 = vmatpush1.msra.mxu0 0.0
      %2840 = vmatprep.subr.mxu0 0.0
      %2841 = vmatpush1.msra.mxu0 0.0
      %2842 = vmatprep.subr.mxu0 0.0
      %2843 = vmatpush1.msra.mxu0 0.0
      %2844 = vmatprep.subr.mxu0 0.0
      %2845 = vmatpush1.msra.mxu0 0.0
      %2846 = vmatprep.subr.mxu0 0.0
      %2847 = vmatpush1.msra.mxu0 0.0
      %2848 = vmatprep.subr.mxu0 0.0
      %2849 = vmatpush1.msra.mxu0 0.0
      %2850 = vmatprep.subr.mxu0 0.0
      %2851 = vmatpush1.msra.mxu0 0.0
      %2852 = vmatprep.subr.mxu0 0.0
      %2853 = vmatpush1.msra.mxu0 0.0
      %2854 = vmatprep.subr.mxu0 0.0
      %2855 = vmatpush1.msra.mxu0 0.0
      %2856 = vmatprep.subr.mxu0 0.0
      %2857 = vmatpush1.msra.mxu0 0.0
      %2858 = vmatprep.subr.mxu0 0.0
      %2859 = vmatpush1.msra.mxu0 0.0
      %2860 = vmatprep.subr.mxu0 0.0
      %2861 = vmatpush1.msra.mxu0 0.0
      %2862 = vmatprep.subr.mxu0 0.0
      %2863 = vmatpush1.msra.mxu0 0.0
      %2864 = vmatprep.subr.mxu0 0.0
      %2865 = vmatpush1.msra.mxu0 0.0
      %2866 = vmatprep.subr.mxu0 0.0
      %2867 = vmatpush1.msra.mxu0 0.0
      %2868 = vmatprep.subr.mxu0 0.0
      %2869 = vmatpush1.msra.mxu0 0.0
      %2870 = vmatprep.subr.mxu0 0.0
      %2871 = vmatpush1.msra.mxu0 0.0
      %2872 = vmatprep.subr.mxu0 0.0
      %2873 = vmatpush1.msra.mxu0 0.0
      %2874 = vmatprep.subr.mxu0 0.0
      %2875 = vmatpush1.msra.mxu0 0.0
      %2876 = vmatprep.subr.mxu0 0.0
      %2877 = vmatpush1.msra.mxu0 0.0
      %2878 = vmatprep.subr.mxu0 0.0
      %2879 = vmatpush1.msra.mxu0 0.0
      %2880 = vmatprep.subr.mxu0 0.0
      %2881 = vmatpush1.msra.mxu0 0.0
      %2882 = vmatprep.subr.mxu0 0.0
      %2883 = vmatpush1.msra.mxu0 0.0
      %2884 = vmatprep.subr.mxu0 0.0
      %2885 = vmatpush1.msra.mxu0 0.0
      %2886 = vmatprep.mubr.f32.mxu0 0.0
      %2887 = vmatmul.mubr.f32.gmra.mrb[0].mxu0 %v2817
      %v2888 = vpop.f32.mrb[0].mxu0
      %v2889 = vadd.f32 %v2815, %v2888
      %v2890 = vpop.f32.mrb[0].mxu0
      %2891 = vmatprep.mubr.f32.mxu0 0.0
      %2892 = vmatmul.mubr.f32.gmra.mrb[0].mxu0 %v2820
      %v2893 = vpop.f32.mrb[0].mxu0
      %v2894 = vadd.f32 %v2815, %v2893
      %v2895 = vpop.f32.mrb[0].mxu0
      %2896 = vdwg.mxu0
      %v2897 = vmul.f32 %v2889, 0.5
      %v2898 = vmul.f32 %v2894, 0.5
      %v2899 = vmul.f32 %v2889, 0.70710677
      %v2900 = vmul.f32 %v2894, 0.70710677
      %vm2901 = vcmp.ge.f32.partialorder %v2899, 0.0
      %vm2902 = vcmp.ge.f32.partialorder %v2900, 0.0
      %v2903 = vsel %vm2901, 1.0, -1.0
      %v2904 = vsel %vm2902, 1.0, -1.0
      %v2905 = vand.u32 2147483647, %v2899
      %v2906 = vand.u32 2147483647, %v2900
      %v2907 = vmul.f32 %v2905, 0.3275911
      %v2908 = vmul.f32 %v2906, 0.3275911
      %v2909 = vadd.f32 %v2907, 1.0
      %v2910 = vadd.f32 %v2908, 1.0
      %v2911 = vrcp.pop %v2909
      %v2912 = vmul.f32 1.0, %v2911
      %v2913 = vrcp.pop %v2910
      %v2914 = vmul.f32 1.0, %v2913
      %v2915 = vmul.f32 %v2912, 1.0614054
      %v2916 = vmul.f32 %v2914, 1.0614054
      %v2917 = vadd.f32 %v2915, -1.4531521
      %v2918 = vadd.f32 %v2916, -1.4531521
      %v2919 = vmul.f32 %v2917, %v2912
      %v2920 = vmul.f32 %v2918, %v2914
      %v2921 = vadd.f32 %v2919, 1.4214138
      %v2922 = vadd.f32 %v2920, 1.4214138
      %v2923 = vmul.f32 %v2921, %v2912
      %v2924 = vmul.f32 %v2922, %v2914
      %v2925 = vadd.f32 %v2923, -0.28449672
      %v2926 = vadd.f32 %v2924, -0.28449672
      %v2927 = vmul.f32 %v2925, %v2912
      %v2928 = vmul.f32 %v2926, %v2914
      %v2929 = vadd.f32 %v2927, 0.2548296
      %v2930 = vadd.f32 %v2928, 0.2548296
      %v2931 = vmul.f32 %v2929, %v2912
      %v2932 = vmul.f32 %v2930, %v2914
      %v2933 = vsub.f32 0.0, %v2905
      %v2934 = vsub.f32 0.0, %v2906
      %v2935 = vmul.f32 %v2933, %v2905
      %v2936 = vmul.f32 %v2934, %v2906
      %v2937 = vmul.f32 %v2935, 1.442695
      %v2938 = vpow.pop %v2937
      %v2939 = vmul.f32 %v2936, 1.442695
      %v2940 = vpow.pop %v2939
      %v2941 = vmul.f32 %v2931, %v2938
      %v2942 = vmul.f32 %v2932, %v2940
      %v2943 = vsub.f32 1.0, %v2941
      %v2944 = vsub.f32 1.0, %v2942
      %v2945 = vmul.f32 %v2903, %v2943
      %v2946 = vmul.f32 %v2904, %v2944
      %v2947 = vadd.f32 %v2945, 1.0
      %v2948 = vadd.f32 %v2946, 1.0
      %v2949 = vmul.f32 %v2897, %v2947
      %v2950 = vmul.f32 %v2898, %v2948
      %v2951 = vld [vmem:[%s3 + $0xc0] sm:$0xff]
      %v2952 = vld [vmem:[%s3 + $0xc8] sm:$0xff]
      %v2953 = vld [vmem:[%s3 + $0xd0] sm:$0xff]
      %v2954 = vld [vmem:[%s3 + $0xd8] sm:$0xff]
      %v2955 = vld [vmem:[%s3 + $0xe0] sm:$0xff]
      %v2956 = vld [vmem:[%s3 + $0xe8] sm:$0xff]
      %v2957 = vld [vmem:[%s3 + $0xf0] sm:$0xff]
      %v2958 = vld [vmem:[%s3 + $0xf8] sm:$0xff]
      %v2959 = vld [vmem:[%s3 + $0x100] sm:$0xff]
      %v2960 = vld [vmem:[%s3 + $0x108] sm:$0xff]
      %v2961 = vld [vmem:[%s3 + $0x110] sm:$0xff]
      %v2962 = vld [vmem:[%s3 + $0x118] sm:$0xff]
      %v2963 = vld [vmem:[%s3 + $0x120] sm:$0xff]
      %v2964 = vld [vmem:[%s3 + $0x128] sm:$0xff]
      %v2965 = vld [vmem:[%s3 + $0x130] sm:$0xff]
      %v2966 = vld [vmem:[%s3 + $0x138] sm:$0xff]
      %2967 = vmatprep.subr.mxu0 0.0
      %2968 = vmatpush1.msra.mxu0 %v2951
      %2969 = vmatprep.subr.mxu0 0.0
      %2970 = vmatpush1.msra.mxu0 %v2952
      %2971 = vmatprep.subr.mxu0 0.0
      %2972 = vmatpush1.msra.mxu0 %v2953
      %2973 = vmatprep.subr.mxu0 0.0
      %2974 = vmatpush1.msra.mxu0 %v2954
      %2975 = vmatprep.subr.mxu0 0.0
      %2976 = vmatpush1.msra.mxu0 %v2955
      %2977 = vmatprep.subr.mxu0 0.0
      %2978 = vmatpush1.msra.mxu0 %v2956
      %2979 = vmatprep.subr.mxu0 0.0
      %2980 = vmatpush1.msra.mxu0 %v2957
      %2981 = vmatprep.subr.mxu0 0.0
      %2982 = vmatpush1.msra.mxu0 %v2958
      %2983 = vmatprep.subr.mxu0 0.0
      %2984 = vmatpush1.msra.mxu0 %v2959
      %2985 = vmatprep.subr.mxu0 0.0
      %2986 = vmatpush1.msra.mxu0 %v2960
      %2987 = vmatprep.subr.mxu0 0.0
      %2988 = vmatpush1.msra.mxu0 %v2961
      %2989 = vmatprep.subr.mxu0 0.0
      %2990 = vmatpush1.msra.mxu0 %v2962
      %2991 = vmatprep.subr.mxu0 0.0
      %2992 = vmatpush1.msra.mxu0 %v2963
      %2993 = vmatprep.subr.mxu0 0.0
      %2994 = vmatpush1.msra.mxu0 %v2964
      %2995 = vmatprep.subr.mxu0 0.0
      %2996 = vmatpush1.msra.mxu0 %v2965
      %2997 = vmatprep.subr.mxu0 0.0
      %2998 = vmatpush1.msra.mxu0 %v2966
      %2999 = vmatprep.subr.mxu0 0.0
      %3000 = vmatpush1.msra.mxu0 0.0
      %3001 = vmatprep.subr.mxu0 0.0
      %3002 = vmatpush1.msra.mxu0 0.0
      %3003 = vmatprep.subr.mxu0 0.0
      %3004 = vmatpush1.msra.mxu0 0.0
      %3005 = vmatprep.subr.mxu0 0.0
      %3006 = vmatpush1.msra.mxu0 0.0
      %3007 = vmatprep.subr.mxu0 0.0
      %3008 = vmatpush1.msra.mxu0 0.0
      %3009 = vmatprep.subr.mxu0 0.0
      %3010 = vmatpush1.msra.mxu0 0.0
      %3011 = vmatprep.subr.mxu0 0.0
      %3012 = vmatpush1.msra.mxu0 0.0
      %3013 = vmatprep.subr.mxu0 0.0
      %3014 = vmatpush1.msra.mxu0 0.0
      %3015 = vmatprep.subr.mxu0 0.0
      %3016 = vmatpush1.msra.mxu0 0.0
      %3017 = vmatprep.subr.mxu0 0.0
      %3018 = vmatpush1.msra.mxu0 0.0
      %3019 = vmatprep.subr.mxu0 0.0
      %3020 = vmatpush1.msra.mxu0 0.0
      %3021 = vmatprep.subr.mxu0 0.0
      %3022 = vmatpush1.msra.mxu0 0.0
      %3023 = vmatprep.subr.mxu0 0.0
      %3024 = vmatpush1.msra.mxu0 0.0
      %3025 = vmatprep.subr.mxu0 0.0
      %3026 = vmatpush1.msra.mxu0 0.0
      %3027 = vmatprep.subr.mxu0 0.0
      %3028 = vmatpush1.msra.mxu0 0.0
      %3029 = vmatprep.subr.mxu0 0.0
      %3030 = vmatpush1.msra.mxu0 0.0
      %3031 = vmatprep.mubr.f32.mxu0 0.0
      %3032 = vmatmul.mubr.f32.gmra.mrb[0].mxu0 %v2949
      %v3033 = vpop.f32.mrb[0].mxu0
      %v3034 = vadd.f32 0.0, %v3033
      %v3035 = vpop.f32.mrb[0].mxu0
      %3036 = vmatprep.mubr.f32.mxu0 0.0
      %3037 = vmatmul.mubr.f32.gmra.mrb[0].mxu0 %v2950
      %v3038 = vpop.f32.mrb[0].mxu0
      %v3039 = vadd.f32 0.0, %v3038
      %v3040 = vpop.f32.mrb[0].mxu0
      %3041 = vdwg.mxu0
      %v3042 = vadd.f32 %v2765, %v3034
      %v3043 = vadd.f32 %v2766, %v3039
      %v3044 = vld [vmem:[%s1 + $0x13] sm:$0x1]
      %v3045 = vlaneseq
      %v3046 = vshrl.u32 %v3045, 7
      %v3047 = vsub.s32 0, %v3046
      %v3048 = vrot.slane %v3044, %v3047
      %v3049 = vadd.f32 %v3042, %v3048
      %v3050 = vadd.f32 %v3043, %v3048
      %v3051 = vld [vmem:[%s1 + $0x14] sm:$0x1]
      %v3052 = vld [vmem:[%s1 + $0x15] sm:$0x1]
      %v3053 = vsel %vm269, %v3049, 0.0
      %3054 = vadd.xlane.f32.xlu0 %v3053
      %v3055 = vpop.xlane.xlu0 %3054
      %v3056 = vsel %vm273, %v3050, 0.0
      %3057 = vadd.xlane.f32.xlu0 %v3056
      %v3058 = vpop.xlane.xlu0 %3057
      %v3059 = vmul.f32 %v3055, %v277
      %v3060 = vmul.f32 %v3058, %v277
      %v3061 = vsub.f32 %v3049, %v3059
      %v3062 = vsub.f32 %v3050, %v3060
      %v3063 = vmul.f32 %v3061, %v3061
      %v3064 = vmul.f32 %v3062, %v3062
      %v3065 = vsel %vm269, %v3063, 0.0
      %3066 = vadd.xlane.f32.xlu0 %v3065
      %v3067 = vpop.xlane.xlu0 %3066
      %v3068 = vsel %vm273, %v3064, 0.0
      %3069 = vadd.xlane.f32.xlu0 %v3068
      %v3070 = vpop.xlane.xlu0 %3069
      %v3071 = vmul.f32 %v3067, %v277
      %v3072 = vmul.f32 %v3070, %v277
      %v3073 = vadd.f32 %v3071, 1e-05
      %v3074 = vadd.f32 %v3072, 1e-05
      %v3075 = vrsqrt.pop %v3073
      %v3076 = vrsqrt.pop %v3074
      %v3077 = vmul.f32 %v3061, %v3075
      %v3078 = vmul.f32 %v3062, %v3076
      %v3079 = vlaneseq
      %v3080 = vshrl.u32 %v3079, 7
      %v3081 = vsub.s32 0, %v3080
      %v3082 = vrot.slane %v3051, %v3081
      %v3083 = vmul.f32 %v3077, %v3082
      %v3084 = vmul.f32 %v3078, %v3082
      %v3085 = vlaneseq
      %v3086 = vshrl.u32 %v3085, 7
      %v3087 = vsub.s32 0, %v3086
      %v3088 = vrot.slane %v3052, %v3087
      %v3089 = vadd.f32 %v3083, %v3088
      %v3090 = vadd.f32 %v3084, %v3088
      %v3091 = vld [vmem:[%s1 + $0x16] sm:$0x1]
      %v3092 = vlaneseq
      %v3093 = vshrl.u32 %v3092, 7
      %v3094 = vsub.s32 0, %v3093
      %v3095 = vrot.slane %v3091, %v3094
      %v3096 = vmul.f32 %v3089, %v3095
      %v3097 = vmul.f32 %v3090, %v3095
      %v3098 = vsel %vm269, %v3096, 0.0
      %3099 = vadd.xlane.f32.xlu0 %v3098
      %v3100 = vpop.xlane.xlu0 %3099
      %v3101 = vsel %vm273, %v3097, 0.0
      %3102 = vadd.xlane.f32.xlu0 %v3101
      %v3103 = vpop.xlane.xlu0 %3102
      %vm3104 = vcmask 7168
      %3105 = vst.msk [vmem:[%s259] sm:$0xff] %vm3104, %v3100
      %vm3106 = vcmask 5120
      %3107 = vst.msk [vmem:[%s259 + $0x8] sm:$0x3f] %vm3106, %v3103
      %p3108 = scmp.lt.s32.totalorder %s18, 1
      %s3109 = scalar_select %p3108, %s18, 1
      %s3110 = smul.addr %s3109, 2
      %s3111 = smul.addr %s3110, 8
      %s3112 = scalar_lea.vmem %s5, %s3111
      %p3113 = scmp.lt.s32.totalorder %s18, 1
      %s3114 = scalar_select %p3113, %s18, 1
      %s3115 = smul.addr %s3114, 16
      %s3116 = smul.addr %s3115, 8
      %s3117 = scalar_lea.vmem %s6, %s3116
      // Predicated region
      $region41: #{att_model_forward.1} parent=39 // pred_check
        %p3118 = pneg %p146
      $region42: #{att_model_forward.1} parent=39 // pred_check_branch
        %3120 = sbr.rel (%p3118) target = $region44
      $region43: #{att_model_forward.1} parent=39 // pred_region
        _
      $region44: #{att_model_forward.1} parent=39 // pred_fallthru
        _
      // Predicated region
      $region45: #{att_model_forward.1} parent=39 // pred_check
        %p3121 = pneg %p172
      $region46: #{att_model_forward.1} parent=39 // pred_check_branch
        %3123 = sbr.rel (%p3121) target = $region48
      $region47: #{att_model_forward.1} parent=39 // pred_region
        _
      $region48: #{att_model_forward.1} parent=39 // pred_fallthru
        _
    $region40: #{att_model_forward.1} parent=5 // pred_fallthru
      _
    %p3124 = scmp.le.s32.totalorder 2, %s13
    // Predicated region
    $region49: #{att_model_forward.1} parent=5 // pred_check
      %p3125 = pneg %p3124
    $region50: #{att_model_forward.1} parent=5 // pred_check_branch
      %3127 = sbr.rel (%p3125) target = $region52
    $region51: #{att_model_forward.1} parent=5 // pred_region
      %s3128 = ssub.s32 %s13, 2
      // Predicated region
      $region53: #{att_model_forward.1} parent=51 // pred_check
        %p3129 = pneg %p152
      $region54: #{att_model_forward.1} parent=51 // pred_check_branch
        %3131 = sbr.rel (%p3129) target = $region56
      $region55: #{att_model_forward.1} parent=51 // pred_region
        %p3132 = scmp.lt.s32.totalorder %s19, 1
        %s3133 = scalar_select %p3132, %s19, 1
        %s3134 = smul.addr %s3133, 2
        %s3135 = smul.addr %s3134, 8
        %s3136 = scalar_lea.vmem %s5, %s3135
      $region56: #{att_model_forward.1} parent=51 // pred_fallthru
        _
      // Predicated region
      $region57: #{att_model_forward.1} parent=51 // pred_check
        %p3137 = pneg %p178
      $region58: #{att_model_forward.1} parent=51 // pred_check_branch
        %3139 = sbr.rel (%p3137) target = $region60
      $region59: #{att_model_forward.1} parent=51 // pred_region
        %p3140 = scmp.lt.s32.totalorder %s19, 1
        %s3141 = scalar_select %p3140, %s19, 1
        %s3142 = smul.addr %s3141, 16
        %s3143 = smul.addr %s3142, 8
        %s3144 = scalar_lea.vmem %s6, %s3143
      $region60: #{att_model_forward.1} parent=51 // pred_fallthru
        _
    $region52: #{att_model_forward.1} parent=5 // pred_fallthru
      _
  $region6: #{att_model_forward.1} parent=0 // loop_footer
    %s17 = sadd.s32 1, %s13
  $region7: #{att_model_forward.1} parent=0 // loop_footer_branch
    %12 = sbr.rel target = $region3
  $region8: #{att_model_forward.1} parent=0 // loop_exit
    _

</llo_original>
